<compile_context>
chip_gen: v7x
topology: tpu7x:2x2x1
jax: 0.10.0
libtpu: 0.0.40
codegen_flags: <defaults>
</compile_context>

<pallas_src>
import math
import jax
import jax.numpy as jnp
from jax.experimental import pallas as pl
from jax.experimental.pallas import tpu as pltpu

THRESHOLD = 1.0   # snn.Leaky default threshold
BN_EPS = 1e-5


def _round_up(x, m):
    return ((x + m - 1) // m) * m


def _ceil_div(a, b):
    return -(-a // b)


def _pick_tile(n, cap):
    """Largest multiple of 8 that divides n, is <= cap and (when possible)
    leaves >= 2 tiles so the 'parallel' grid axis can split across the two
    v7x TensorCores.  n must be a positive multiple of 8."""
    assert n >= 8 and n % 8 == 0
    target = min(cap, n if n < 16 else max(8, (n // 2) // 8 * 8))
    t = max(8, (target // 8) * 8)
    while t > 8 and n % t != 0:
        t -= 8
    return t


# -------------------------------------------- lane-dense conv GEMM + stats --
def _conv_gemm_kernel(a_ref, b_ref, y_ref, stat_ref):
    # Single full-K block: no K grid loop, no accumulator scratch.
    acc = jnp.dot(a_ref[...], b_ref[...],
                  preferred_element_type=jnp.float32)        # (tm, 128) f32
    y_ref[...] = acc.astype(y_ref.dtype)                     # lane-dense bf16
    # Fused tdBN partials (kept in f32; per lane, reduced over this M tile).
    s1 = jnp.sum(acc, axis=0, keepdims=True)                 # (1, 128)
    s2 = jnp.sum(acc * acc, axis=0, keepdims=True)           # (1, 128)
    stat_ref[...] = jnp.concatenate([s1, s2], axis=0)[None]  # (1, 2, 128)


def conv_gemm(lhs, wbd, tm_cap=1024):
    """y[bf16] = lhs[bf16] @ wbd[bf16]  (f32 MXU accumulation), plus per-tile
    per-lane sum / sum-of-squares partials in f32.  wbd is the block-diagonal
    (kron) weight, so N == 128 and every store is a full-width unmasked vst."""
    Mg, Kg = lhs.shape
    _, N = wbd.shape
    tm = _pick_tile(Mg, tm_cap)
    nt = Mg // tm
    return pl.pallas_call(
        _conv_gemm_kernel,
        out_shape=(jax.ShapeDtypeStruct((Mg, N), jnp.bfloat16),
                   jax.ShapeDtypeStruct((nt, 2, N), jnp.float32)),
        grid_spec=pltpu.PrefetchScalarGridSpec(
            num_scalar_prefetch=0,
            grid=(nt,),
            in_specs=[pl.BlockSpec((tm, Kg), lambda i: (i, 0)),
                      pl.BlockSpec((Kg, N), lambda i: (0, 0))],
            out_specs=[pl.BlockSpec((tm, N), lambda i: (i, 0)),
                       pl.BlockSpec((1, 2, N), lambda i: (i, 0, 0))]),
        compiler_params=pltpu.CompilerParams(
            dimension_semantics=("parallel",)),
    )(lhs, wbd)


# ------------------------------------------------- fused tdBN-affine + LIF --
def _make_lif_kernel(beta, has_affine, has_res):
    def kernel(*refs):
        idx = 0
        x_ref = refs[idx]; idx += 1
        if has_affine:
            scale_ref, shift_ref = refs[idx], refs[idx + 1]; idx += 2
        if has_res:
            res_ref = refs[idx]; idx += 1
        o_ref, mem_ref = refs[idx], refs[idx + 1]

        @pl.when(pl.program_id(1) == 0)      # first timestep: reset membrane
        def _():
            mem_ref[...] = jnp.zeros_like(mem_ref)

        x = x_ref[0].astype(jnp.float32)
        if has_affine:                        # fused tdBN affine ([1,128] bcast)
            x = x * scale_ref[...] + shift_ref[...]
        if has_res:                           # fused residual add
            x = x + res_ref[0].astype(jnp.float32)

        # snn.Leaky (init_hidden=True, reset_mechanism="subtract"):
        #   reset_t = (mem_{t-1} > thr)
        #   mem_t   = beta * mem_{t-1} + x_t - thr * reset_t
        #   spk_t   = (mem_t > thr)
        mem = mem_ref[...]
        reset = (mem > THRESHOLD).astype(jnp.float32)
        mem = beta * mem + x - THRESHOLD * reset
        mem_ref[...] = mem
        o_ref[0] = (mem > THRESHOLD).astype(o_ref.dtype)
    return kernel


def fused_lif(x_lane, beta, scale=None, shift=None, res_lane=None, m_cap=512):
    """(optional tdBN affine) + (optional residual) + LIF recurrence.

    x_lane / res_lane: [T, rows, 128] lane-dense (channel-fastest) bf16.
    scale / shift:     [1, 128] f32 per-lane BN affine, or None.
    Returns bf16 spikes, shape [T, rows, 128], same lane layout.
    """
    T, rows, L = x_lane.shape
    m_tile = _pick_tile(rows, m_cap)
    block3 = pl.BlockSpec((1, m_tile, 128), lambda m, t: (t, m, 0))

    inputs, in_specs = [x_lane], [block3]
    if scale is not None:
        inputs += [scale, shift]
        in_specs += [pl.BlockSpec((1, 128), lambda m, t: (0, 0))] * 2
    if res_lane is not None:
        inputs.append(res_lane)
        in_specs.append(block3)

    # NOTE(review item 9): pipeline_mode=pl.Buffered(3) on the x/res specs is a
    # possible few-% win once DMA latency shows; left at the default 2 buffers.
    return pl.pallas_call(
        _make_lif_kernel(beta, scale is not None, res_lane is not None),
        out_shape=jax.ShapeDtypeStruct((T, rows, 128), jnp.bfloat16),
        grid_spec=pltpu.PrefetchScalarGridSpec(
            num_scalar_prefetch=0,
            grid=(rows // m_tile, T),        # T innermost: recurrence axis
            in_specs=in_specs,
            out_specs=block3,
            scratch_shapes=[pltpu.VMEM((m_tile, 128), jnp.float32)]),
        compiler_params=pltpu.CompilerParams(
            dimension_semantics=("parallel", "arbitrary")),
    )(*inputs)


# -------------------------------------------------------- conv + tdBN glue --
def _im2col(x, kh, kw, stride, pad):
    """x: [N, H, W, C] -> cols [N*Ho*Wo, kh*kw*C] (taps outer, channel inner)."""
    if pad:
        x = jnp.pad(x, ((0, 0), (pad, pad), (pad, pad), (0, 0)))
    N, Hp, Wp, C = x.shape
    Ho = (Hp - kh) // stride + 1
    Wo = (Wp - kw) // stride + 1
    pieces = []
    for i in range(kh):
        for j in range(kw):
            pieces.append(
                x[:, i:i + stride * (Ho - 1) + 1:stride,
                     j:j + stride * (Wo - 1) + 1:stride, :])
    cols = jnp.concatenate(pieces, axis=-1)
    return cols.reshape(N * Ho * Wo, kh * kw * C), Ho, Wo


def conv_bn_lane(x, w, stride, alpha, gamma, beta_bn):
    """Conv (no bias) with tdBN folded into a per-lane affine.

    x: [T, B, H, W, Cin].  Returns (y_lane [T, rows, 128] bf16 lane-dense conv
    output, scale [1,128], shift [1,128], (B, Ho, Wo, Cout)).  The affine
    implements  alpha * Vth * gamma * (y - mean) * rsqrt(var + eps) + beta_bn
    with batch stats over (T, B, H, W) per channel, computed from the GEMM's
    fused f32 partial sums, and is applied inside the fused LIF kernel."""
    T, B, H, W, Cin = x.shape
    kh, kw, _, Cout = w.shape
    assert 128 % Cout == 0, "lane-dense packing needs Cout to divide 128"
    g = 128 // Cout
    pad = (kh - 1) // 2                      # 1 for 3x3 'same', 0 for 1x1
    # TODO(synk): replace explicit im2col with an implicit GEMM (shifted
    # in-kernel loads) to avoid the kh*kw-replicated activation in HBM.
    cols, Ho, Wo = _im2col(x.reshape(T * B, H, W, Cin).astype(jnp.bfloat16),
                           kh, kw, stride, pad)
    K = kh * kw * Cin
    Bs = B * Ho * Wo                         # true positions per timestep
    rows = _round_up(_ceil_div(Bs, g), 8)    # grouped rows per timestep
    Bs_p = rows * g
    if Bs_p != Bs:                           # zero rows: contribute 0 to stats
        cols = jnp.pad(cols.reshape(T, Bs, K),
                       ((0, 0), (0, Bs_p - Bs), (0, 0))).reshape(T * Bs_p, K)
    lhs = cols.reshape(T * rows, g * K)      # g im2col rows fused per GEMM row
    wbd = jnp.kron(jnp.eye(g, dtype=jnp.bfloat16),
                   w.reshape(K, Cout).astype(jnp.bfloat16))      # (g*K, 128)

    y, stats = conv_gemm(lhs, wbd)           # y bf16 (T*rows,128), stats f32

    # tdBN statistics from the fused partials (lane l -> channel l % Cout).
    lane_sum = stats[:, 0, :].sum(axis=0)
    lane_sq = stats[:, 1, :].sum(axis=0)
    count = float(T * Bs)
    ch_sum = lane_sum.reshape(g, Cout).sum(axis=0)
    ch_sq = lane_sq.reshape(g, Cout).sum(axis=0)
    mean = ch_sum / count
    var = jnp.maximum(ch_sq / count - mean * mean, 0.0)     # biased, BN-style
    ch_scale = alpha * THRESHOLD * gamma * jax.lax.rsqrt(var + BN_EPS)
    ch_shift = beta_bn - ch_scale * mean
    scale = jnp.tile(ch_scale, g).reshape(1, 128)
    shift = jnp.tile(ch_shift, g).reshape(1, 128)
    return y.reshape(T, rows, 128), scale, shift, (B, Ho, Wo, Cout)


def _lane_to_spatial(spk, B, Ho, Wo, C):
    """[T, rows, 128] lane-dense spikes -> [T, B, Ho, Wo, C] (drops any pad)."""
    T, rows, _ = spk.shape
    g = 128 // C
    Bs = B * Ho * Wo
    return spk.reshape(T, rows * g, C)[:, :Bs, :].reshape(T, B, Ho, Wo, C)


# ------------------------------------------------------------------- model --
def sresnet_block(spk_in, meta_in, p, beta):
    """spk_in: [T, rows, 128] bf16 lane-dense spikes, meta_in = (B, H, W, Cin)."""
    B, H, W, Cin = meta_in
    x_sp = _lane_to_spatial(spk_in, B, H, W, Cin)
    y1, s1, b1, meta = conv_bn_lane(x_sp, p["w1"], p["stride"],
                                    1.0, p["g1"], p["b1"])
    spk1 = fused_lif(y1, beta, s1, b1)
    sp1 = _lane_to_spatial(spk1, *meta)
    y2, s2, b2, _ = conv_bn_lane(sp1, p["w2"], 1,
                                 1.0 / math.sqrt(2.0), p["g2"], p["b2"])
    spk2 = fused_lif(y2, beta, s2, b2)
    if "w_sc" in p:
        # 1x1 projection shortcut: its tdBN affine AND the residual add with
        # spk2 are fused into the final LIF kernel (lif3).
        ysc, ssc, bsc, _ = conv_bn_lane(x_sp, p["w_sc"], p["stride"],
                                        1.0 / math.sqrt(2.0),
                                        p["g_sc"], p["b_sc"])
        out = fused_lif(ysc, beta, ssc, bsc, res_lane=spk2)
    else:
        # identity shortcut: lif3(spk2 + input spikes), both already lane-dense.
        out = fused_lif(spk2, beta, res_lane=spk_in)
    return out, meta


def sresnet_forward(x_tbchw, params, beta):
    # [T, B, C, H, W] -> channels-last [T, B, H, W, C]
    x = jnp.transpose(x_tbchw, (0, 1, 3, 4, 2)).astype(jnp.float32)
    y, s, b, meta = conv_bn_lane(x, params["stem_w"], 1, 1.0,
                                 params["stem_g"], params["stem_b"])
    spk = fused_lif(y, beta, s, b)
    for stage in params["stages"]:
        for blk in stage:
            spk, meta = sresnet_block(spk, meta, blk, beta)
    B, Ho, Wo, C = meta
    sp = _lane_to_spatial(spk, B, Ho, Wo, C).astype(jnp.float32)
    # AdaptiveAvgPool2d((1,1)) over H, W -> [T, B, C]  (tiny glue reduction)
    feat = jnp.mean(sp, axis=(2, 3))
    # MLP head (fc_hidden_dims=None): single bias-free Linear, [T*B,16]@[16,10]
    # is far below any useful Pallas tile -> plain XLA dot.
    logits = jnp.einsum("tbc,ck->tbk", feat, params["fc_w"])
    return logits        # training-mode output [T, B, K]


# ------------------------------------------------------------------ params --
def init_params(key, in_channels, num_classes, stem_channels,
                stage_blocks, stage_channels):
    keys = iter(jax.random.split(key, 64))

    def conv_w(k, kh, kw, cin, cout):
        scale = math.sqrt(2.0 / (kh * kw * cin))       # kaiming-normal-ish
        return scale * jax.random.normal(k, (kh, kw, cin, cout), jnp.float32)

    params = {
        "stem_w": conv_w(next(keys), 3, 3, in_channels, stem_channels),
        "stem_g": jnp.ones((stem_channels,), jnp.float32),
        "stem_b": jnp.zeros((stem_channels,), jnp.float32),
        "stages": [],
    }
    cin = stem_channels
    for blocks, out_c in zip(stage_blocks, stage_channels):
        stage = []
        for bi in range(blocks):
            stride = 2 if (bi == 0 and cin != out_c) else 1
            blk = {
                "stride": stride,
                "w1": conv_w(next(keys), 3, 3, cin, out_c),
                "g1": jnp.ones((out_c,), jnp.float32),
                "b1": jnp.zeros((out_c,), jnp.float32),
                "w2": conv_w(next(keys), 3, 3, out_c, out_c),
                "g2": jnp.ones((out_c,), jnp.float32),
                "b2": jnp.zeros((out_c,), jnp.float32),
            }
            if stride != 1 or cin != out_c:
                blk["w_sc"] = conv_w(next(keys), 1, 1, cin, out_c)
                blk["g_sc"] = jnp.ones((out_c,), jnp.float32)
                blk["b_sc"] = jnp.zeros((out_c,), jnp.float32)
            stage.append(blk)
            cin = out_c
        params["stages"].append(stage)
    fc_scale = math.sqrt(1.0 / stage_channels[-1])
    params["fc_w"] = fc_scale * jax.random.normal(
        next(keys), (stage_channels[-1], num_classes), jnp.float32)
    return params


if __name__ == "__main__":
    # SResNet(in_channels=2, num_classes=10, beta=0.9, stem_channels=8,
    #         stage_blocks=[1, 1], stage_channels=[8, 16], fc_hidden_dims=None)
    T, B, C_IN, H, W = 4, 2, 2, 16, 16
    NUM_CLASSES, BETA = 10, 0.9
    STEM_C, STAGE_BLOCKS, STAGE_CHANNELS = 8, [1, 1], [8, 16]

    key = jax.random.PRNGKey(0)
    k_x, k_p = jax.random.split(key)
    x = jax.random.normal(k_x, (T, B, C_IN, H, W), jnp.float32)
    params = init_params(k_p, C_IN, NUM_CLASSES, STEM_C,
                         STAGE_BLOCKS, STAGE_CHANNELS)

    fwd = jax.jit(lambda inp: sresnet_forward(inp, params, BETA))
    logits = fwd(x)
    jax.block_until_ready(logits)
    assert logits.shape == (T, B, NUM_CLASSES), logits.shape
    assert bool(jnp.all(jnp.isfinite(logits)))
    print("KERNEL_OK")
</pallas_src>

<mosaic_0001>
module attributes {stable_mosaic.version = 11 : i64} {
  func.func @_conv_gemm_kernel(%arg0: i32, %arg1: memref<64x288xbf16, #tpu.memory_space<vmem>>, %arg2: memref<288x128xbf16, #tpu.memory_space<vmem>>, %arg3: memref<64x128xbf16, #tpu.memory_space<vmem>>, %arg4: memref<1x2x128xf32, #tpu.memory_space<vmem>>) attributes {dimension_semantics = [#tpu.dimension_semantics<parallel>], iteration_bounds = array<i64: 2>, scalar_prefetch = 0 : i64, scratch_operands = 0 : i64, tpu.core_type = #tpu.core_type<tc>, window_params = [{transform_indices = @transform_0, window_bounds = array<i64: 64, 288>}, {pipeline_mode = #tpu.pipeline_mode<synchronous>, transform_indices = @transform_1, window_bounds = array<i64: 288, 128>}, {transform_indices = @transform_2, window_bounds = array<i64: 64, 128>}, {transform_indices = @transform_3, window_bounds = array<i64: 1, 2, 128>}]} {
    %c0 = arith.constant 0 : index
    %c0_0 = arith.constant 0 : index
    %0 = vector.load %arg1[%c0, %c0_0] : memref<64x288xbf16, #tpu.memory_space<vmem>>, vector<64x288xbf16>
    %c0_1 = arith.constant 0 : index
    %c0_2 = arith.constant 0 : index
    %1 = vector.load %arg2[%c0_1, %c0_2] : memref<288x128xbf16, #tpu.memory_space<vmem>>, vector<288x128xbf16>
    %cst = arith.constant dense<0.000000e+00> : vector<64x128xf32>
    %2 = tpu.matmul %0, %1, %cst {dimension_numbers = #tpu.dot_dimension_numbers<[1], [0], [0], [1], [0, 0, 1, 1], [], []>} : vector<64x288xbf16>, vector<288x128xbf16>, vector<64x128xf32> -> vector<64x128xf32>
    %3 = arith.truncf %2 : vector<64x128xf32> to vector<64x128xbf16>
    %c0_3 = arith.constant 0 : index
    %c0_4 = arith.constant 0 : index
    %4 = vector.load %arg3[%c0_3, %c0_4] : memref<64x128xbf16, #tpu.memory_space<vmem>>, vector<64x128xbf16>
    tpu.vector_store %arg3[%c0_3, %c0_4], %3 {strides = array<i32>} : memref<64x128xbf16, #tpu.memory_space<vmem>>, vector<64x128xbf16>,
    %cst_5 = arith.constant dense<0.000000e+00> : vector<128xf32>
    %5 = vector.multi_reduction <add>, %2, %cst_5 [0] : vector<64x128xf32> to vector<128xf32>
    %6 = vector.shape_cast %5 : vector<128xf32> to vector<1x128xf32>
    %7 = arith.mulf %2, %2 : vector<64x128xf32>
    %cst_6 = arith.constant dense<0.000000e+00> : vector<128xf32>
    %8 = vector.multi_reduction <add>, %7, %cst_6 [0] : vector<64x128xf32> to vector<128xf32>
    %9 = vector.shape_cast %8 : vector<128xf32> to vector<1x128xf32>
    %10 = tpu.concatenate %6, %9 in 0 : vector<1x128xf32>, vector<1x128xf32> -> vector<2x128xf32>
    %11 = vector.shape_cast %10 : vector<2x128xf32> to vector<1x2x128xf32>
    %c0_7 = arith.constant 0 : index
    %c0_8 = arith.constant 0 : index
    %c0_9 = arith.constant 0 : index
    %12 = vector.load %arg4[%c0_7, %c0_8, %c0_9] : memref<1x2x128xf32, #tpu.memory_space<vmem>>, vector<1x2x128xf32>
    tpu.vector_store %arg4[%c0_7, %c0_8, %c0_9], %11 {strides = array<i32>} : memref<1x2x128xf32, #tpu.memory_space<vmem>>, vector<1x2x128xf32>,
    return
  }
  func.func @transform_0(%arg0: i32) -> (i32, i32) {
    %c0_i32 = arith.constant 0 : i32
    %c0_i32_0 = arith.constant 0 : i32
    return %arg0, %c0_i32 : i32, i32
  }
  func.func @transform_1(%arg0: i32) -> (i32, i32) {
    %c0_i32 = arith.constant 0 : i32
    %c0_i32_0 = arith.constant 0 : i32
    %c0_i32_1 = arith.constant 0 : i32
    return %c0_i32, %c0_i32_0 : i32, i32
  }
  func.func @transform_2(%arg0: i32) -> (i32, i32) {
    %c0_i32 = arith.constant 0 : i32
    %c0_i32_0 = arith.constant 0 : i32
    return %arg0, %c0_i32 : i32, i32
  }
  func.func @transform_3(%arg0: i32) -> (i32, i32, i32) {
    %c0_i32 = arith.constant 0 : i32
    %c0_i32_0 = arith.constant 0 : i32
    %c0_i32_1 = arith.constant 0 : i32
    return %arg0, %c0_i32, %c0_i32_0 : i32, i32, i32
  }
}

module attributes {stable_mosaic.version = 11 : i64} {
  func.func @kernel(%arg0: i32, %arg1: i32, %arg2: memref<1x16x128xbf16, #tpu.memory_space<vmem>>, %arg3: memref<1x128xf32, #tpu.memory_space<vmem>>, %arg4: memref<1x128xf32, #tpu.memory_space<vmem>>, %arg5: memref<1x16x128xbf16, #tpu.memory_space<vmem>>, %arg6: memref<16x128xf32, #tpu.memory_space<vmem>>) attributes {dimension_semantics = [#tpu.dimension_semantics<parallel>, #tpu.dimension_semantics<arbitrary>], iteration_bounds = array<i64: 2, 4>, scalar_prefetch = 0 : i64, scratch_operands = 1 : i64, tpu.core_type = #tpu.core_type<tc>, window_params = [{transform_indices = @transform_0, window_bounds = array<i64: 1, 16, 128>}, {pipeline_mode = #tpu.pipeline_mode<synchronous>, transform_indices = @transform_1, window_bounds = array<i64: 1, 128>}, {pipeline_mode = #tpu.pipeline_mode<synchronous>, transform_indices = @transform_2, window_bounds = array<i64: 1, 128>}, {transform_indices = @transform_3, window_bounds = array<i64: 1, 16, 128>}]} {
    %c0_i32 = arith.constant 0 : i32
    %0 = arith.cmpi eq, %arg1, %c0_i32 : i32
    %1 = arith.extui %0 : i1 to i32
    %c0_i32_0 = arith.constant 0 : i32
    %2 = arith.cmpi ne, %1, %c0_i32_0 : i32
    scf.if %2 {
      %cst_17 = arith.constant 0.000000e+00 : f32
      %32 = vector.broadcast %cst_17 : f32 to vector<16x128xf32>
      %c0_18 = arith.constant 0 : index
      %c0_19 = arith.constant 0 : index
      %33 = vector.load %arg6[%c0_18, %c0_19] : memref<16x128xf32, #tpu.memory_space<vmem>>, vector<16x128xf32>
      tpu.vector_store %arg6[%c0_18, %c0_19], %32 {strides = array<i32>} : memref<16x128xf32, #tpu.memory_space<vmem>>, vector<16x128xf32>,
    } else {
    }
    %c0 = arith.constant 0 : index
    %c0_1 = arith.constant 0 : index
    %c0_2 = arith.constant 0 : index
    %3 = vector.load %arg2[%c0, %c0_1, %c0_2] : memref<1x16x128xbf16, #tpu.memory_space<vmem>>, vector<1x16x128xbf16>
    %4 = vector.shape_cast %3 : vector<1x16x128xbf16> to vector<16x128xbf16>
    %5 = arith.extf %4 : vector<16x128xbf16> to vector<16x128xf32>
    %c0_3 = arith.constant 0 : index
    %c0_4 = arith.constant 0 : index
    %6 = vector.load %arg3[%c0_3, %c0_4] : memref<1x128xf32, #tpu.memory_space<vmem>>, vector<1x128xf32>
    %7 = vector.broadcast %6 : vector<1x128xf32> to vector<16x128xf32>
    %8 = arith.mulf %5, %7 : vector<16x128xf32>
    %c0_5 = arith.constant 0 : index
    %c0_6 = arith.constant 0 : index
    %9 = vector.load %arg4[%c0_5, %c0_6] : memref<1x128xf32, #tpu.memory_space<vmem>>, vector<1x128xf32>
    %10 = vector.broadcast %9 : vector<1x128xf32> to vector<16x128xf32>
    %11 = arith.addf %8, %10 : vector<16x128xf32>
    %c0_7 = arith.constant 0 : index
    %c0_8 = arith.constant 0 : index
    %12 = vector.load %arg6[%c0_7, %c0_8] : memref<16x128xf32, #tpu.memory_space<vmem>>, vector<16x128xf32>
    %cst = arith.constant 1.000000e+00 : f32
    %13 = vector.broadcast %cst : f32 to vector<16x128xf32>
    %14 = arith.cmpf ogt, %12, %13 : vector<16x128xf32>
    %15 = arith.extui %14 : vector<16x128xi1> to vector<16x128xi32>
    %16 = arith.sitofp %15 : vector<16x128xi32> to vector<16x128xf32>
    %cst_9 = arith.constant 0.899999976 : f32
    %17 = vector.broadcast %cst_9 : f32 to vector<16x128xf32>
    %18 = arith.mulf %17, %12 : vector<16x128xf32>
    %19 = arith.addf %18, %11 : vector<16x128xf32>
    %cst_10 = arith.constant 1.000000e+00 : f32
    %20 = vector.broadcast %cst_10 : f32 to vector<16x128xf32>
    %21 = arith.mulf %20, %16 : vector<16x128xf32>
    %22 = arith.subf %19, %21 : vector<16x128xf32>
    %c0_11 = arith.constant 0 : index
    %c0_12 = arith.constant 0 : index
    %23 = vector.load %arg6[%c0_11, %c0_12] : memref<16x128xf32, #tpu.memory_space<vmem>>, vector<16x128xf32>
    tpu.vector_store %arg6[%c0_11, %c0_12], %22 {strides = array<i32>} : memref<16x128xf32, #tpu.memory_space<vmem>>, vector<16x128xf32>,
    %cst_13 = arith.constant 1.000000e+00 : f32
    %24 = vector.broadcast %cst_13 : f32 to vector<16x128xf32>
    %25 = arith.cmpf ogt, %22, %24 : vector<16x128xf32>
    %26 = arith.extui %25 : vector<16x128xi1> to vector<16x128xi32>
    %27 = arith.sitofp %26 : vector<16x128xi32> to vector<16x128xf32>
    %28 = arith.truncf %27 : vector<16x128xf32> to vector<16x128xbf16>
    %c0_14 = arith.constant 0 : index
    %c0_15 = arith.constant 0 : index
    %c0_16 = arith.constant 0 : index
    %29 = vector.load %arg5[%c0_14, %c0_15, %c0_16] : memref<1x16x128xbf16, #tpu.memory_space<vmem>>, vector<1x16x128xbf16>
    %30 = vector.shape_cast %29 : vector<1x16x128xbf16> to vector<16x128xbf16>
    %31 = vector.shape_cast %28 : vector<16x128xbf16> to vector<1x16x128xbf16>
    tpu.vector_store %arg5[%c0_14, %c0_15, %c0_16], %31 {strides = array<i32>} : memref<1x16x128xbf16, #tpu.memory_space<vmem>>, vector<1x16x128xbf16>,
    return
  }
  func.func @transform_0(%arg0: i32, %arg1: i32) -> (i32, i32, i32) {
    %c0_i32 = arith.constant 0 : i32
    %c0_i32_0 = arith.constant 0 : i32
    return %arg1, %arg0, %c0_i32 : i32, i32, i32
  }
  func.func @transform_1(%arg0: i32, %arg1: i32) -> (i32, i32) {
    %c0_i32 = arith.constant 0 : i32
    %c0_i32_0 = arith.constant 0 : i32
    %c0_i32_1 = arith.constant 0 : i32
    return %c0_i32, %c0_i32_0 : i32, i32
  }
  func.func @transform_2(%arg0: i32, %arg1: i32) -> (i32, i32) {
    %c0_i32 = arith.constant 0 : i32
    %c0_i32_0 = arith.constant 0 : i32
    %c0_i32_1 = arith.constant 0 : i32
    return %c0_i32, %c0_i32_0 : i32, i32
  }
  func.func @transform_3(%arg0: i32, %arg1: i32) -> (i32, i32, i32) {
    %c0_i32 = arith.constant 0 : i32
    %c0_i32_0 = arith.constant 0 : i32
    return %arg1, %arg0, %c0_i32 : i32, i32, i32
  }
}

module attributes {stable_mosaic.version = 11 : i64} {
  func.func @_conv_gemm_kernel(%arg0: i32, %arg1: memref<64x1152xbf16, #tpu.memory_space<vmem>>, %arg2: memref<1152x128xbf16, #tpu.memory_space<vmem>>, %arg3: memref<64x128xbf16, #tpu.memory_space<vmem>>, %arg4: memref<1x2x128xf32, #tpu.memory_space<vmem>>) attributes {dimension_semantics = [#tpu.dimension_semantics<parallel>], iteration_bounds = array<i64: 2>, scalar_prefetch = 0 : i64, scratch_operands = 0 : i64, tpu.core_type = #tpu.core_type<tc>, window_params = [{transform_indices = @transform_0, window_bounds = array<i64: 64, 1152>}, {pipeline_mode = #tpu.pipeline_mode<synchronous>, transform_indices = @transform_1, window_bounds = array<i64: 1152, 128>}, {transform_indices = @transform_2, window_bounds = array<i64: 64, 128>}, {transform_indices = @transform_3, window_bounds = array<i64: 1, 2, 128>}]} {
    %c0 = arith.constant 0 : index
    %c0_0 = arith.constant 0 : index
    %0 = vector.load %arg1[%c0, %c0_0] : memref<64x1152xbf16, #tpu.memory_space<vmem>>, vector<64x1152xbf16>
    %c0_1 = arith.constant 0 : index
    %c0_2 = arith.constant 0 : index
    %1 = vector.load %arg2[%c0_1, %c0_2] : memref<1152x128xbf16, #tpu.memory_space<vmem>>, vector<1152x128xbf16>
    %cst = arith.constant dense<0.000000e+00> : vector<64x128xf32>
    %2 = tpu.matmul %0, %1, %cst {dimension_numbers = #tpu.dot_dimension_numbers<[1], [0], [0], [1], [0, 0, 1, 1], [], []>} : vector<64x1152xbf16>, vector<1152x128xbf16>, vector<64x128xf32> -> vector<64x128xf32>
    %3 = arith.truncf %2 : vector<64x128xf32> to vector<64x128xbf16>
    %c0_3 = arith.constant 0 : index
    %c0_4 = arith.constant 0 : index
    %4 = vector.load %arg3[%c0_3, %c0_4] : memref<64x128xbf16, #tpu.memory_space<vmem>>, vector<64x128xbf16>
    tpu.vector_store %arg3[%c0_3, %c0_4], %3 {strides = array<i32>} : memref<64x128xbf16, #tpu.memory_space<vmem>>, vector<64x128xbf16>,
    %cst_5 = arith.constant dense<0.000000e+00> : vector<128xf32>
    %5 = vector.multi_reduction <add>, %2, %cst_5 [0] : vector<64x128xf32> to vector<128xf32>
    %6 = vector.shape_cast %5 : vector<128xf32> to vector<1x128xf32>
    %7 = arith.mulf %2, %2 : vector<64x128xf32>
    %cst_6 = arith.constant dense<0.000000e+00> : vector<128xf32>
    %8 = vector.multi_reduction <add>, %7, %cst_6 [0] : vector<64x128xf32> to vector<128xf32>
    %9 = vector.shape_cast %8 : vector<128xf32> to vector<1x128xf32>
    %10 = tpu.concatenate %6, %9 in 0 : vector<1x128xf32>, vector<1x128xf32> -> vector<2x128xf32>
    %11 = vector.shape_cast %10 : vector<2x128xf32> to vector<1x2x128xf32>
    %c0_7 = arith.constant 0 : index
    %c0_8 = arith.constant 0 : index
    %c0_9 = arith.constant 0 : index
    %12 = vector.load %arg4[%c0_7, %c0_8, %c0_9] : memref<1x2x128xf32, #tpu.memory_space<vmem>>, vector<1x2x128xf32>
    tpu.vector_store %arg4[%c0_7, %c0_8, %c0_9], %11 {strides = array<i32>} : memref<1x2x128xf32, #tpu.memory_space<vmem>>, vector<1x2x128xf32>,
    return
  }
  func.func @transform_0(%arg0: i32) -> (i32, i32) {
    %c0_i32 = arith.constant 0 : i32
    %c0_i32_0 = arith.constant 0 : i32
    return %arg0, %c0_i32 : i32, i32
  }
  func.func @transform_1(%arg0: i32) -> (i32, i32) {
    %c0_i32 = arith.constant 0 : i32
    %c0_i32_0 = arith.constant 0 : i32
    %c0_i32_1 = arith.constant 0 : i32
    return %c0_i32, %c0_i32_0 : i32, i32
  }
  func.func @transform_2(%arg0: i32) -> (i32, i32) {
    %c0_i32 = arith.constant 0 : i32
    %c0_i32_0 = arith.constant 0 : i32
    return %arg0, %c0_i32 : i32, i32
  }
  func.func @transform_3(%arg0: i32) -> (i32, i32, i32) {
    %c0_i32 = arith.constant 0 : i32
    %c0_i32_0 = arith.constant 0 : i32
    %c0_i32_1 = arith.constant 0 : i32
    return %arg0, %c0_i32, %c0_i32_0 : i32, i32, i32
  }
}

module attributes {stable_mosaic.version = 11 : i64} {
  func.func @kernel(%arg0: i32, %arg1: i32, %arg2: memref<1x16x128xbf16, #tpu.memory_space<vmem>>, %arg3: memref<1x16x128xbf16, #tpu.memory_space<vmem>>, %arg4: memref<1x16x128xbf16, #tpu.memory_space<vmem>>, %arg5: memref<16x128xf32, #tpu.memory_space<vmem>>) attributes {dimension_semantics = [#tpu.dimension_semantics<parallel>, #tpu.dimension_semantics<arbitrary>], iteration_bounds = array<i64: 2, 4>, scalar_prefetch = 0 : i64, scratch_operands = 1 : i64, tpu.core_type = #tpu.core_type<tc>, window_params = [{transform_indices = @transform_0, window_bounds = array<i64: 1, 16, 128>}, {transform_indices = @transform_1, window_bounds = array<i64: 1, 16, 128>}, {transform_indices = @transform_2, window_bounds = array<i64: 1, 16, 128>}]} {
    %c0_i32 = arith.constant 0 : i32
    %0 = arith.cmpi eq, %arg1, %c0_i32 : i32
    %1 = arith.extui %0 : i1 to i32
    %c0_i32_0 = arith.constant 0 : i32
    %2 = arith.cmpi ne, %1, %c0_i32_0 : i32
    scf.if %2 {
      %cst_16 = arith.constant 0.000000e+00 : f32
      %30 = vector.broadcast %cst_16 : f32 to vector<16x128xf32>
      %c0_17 = arith.constant 0 : index
      %c0_18 = arith.constant 0 : index
      %31 = vector.load %arg5[%c0_17, %c0_18] : memref<16x128xf32, #tpu.memory_space<vmem>>, vector<16x128xf32>
      tpu.vector_store %arg5[%c0_17, %c0_18], %30 {strides = array<i32>} : memref<16x128xf32, #tpu.memory_space<vmem>>, vector<16x128xf32>,
    } else {
    }
    %c0 = arith.constant 0 : index
    %c0_1 = arith.constant 0 : index
    %c0_2 = arith.constant 0 : index
    %3 = vector.load %arg2[%c0, %c0_1, %c0_2] : memref<1x16x128xbf16, #tpu.memory_space<vmem>>, vector<1x16x128xbf16>
    %4 = vector.shape_cast %3 : vector<1x16x128xbf16> to vector<16x128xbf16>
    %5 = arith.extf %4 : vector<16x128xbf16> to vector<16x128xf32>
    %c0_3 = arith.constant 0 : index
    %c0_4 = arith.constant 0 : index
    %c0_5 = arith.constant 0 : index
    %6 = vector.load %arg3[%c0_3, %c0_4, %c0_5] : memref<1x16x128xbf16, #tpu.memory_space<vmem>>, vector<1x16x128xbf16>
    %7 = vector.shape_cast %6 : vector<1x16x128xbf16> to vector<16x128xbf16>
    %8 = arith.extf %7 : vector<16x128xbf16> to vector<16x128xf32>
    %9 = arith.addf %5, %8 : vector<16x128xf32>
    %c0_6 = arith.constant 0 : index
    %c0_7 = arith.constant 0 : index
    %10 = vector.load %arg5[%c0_6, %c0_7] : memref<16x128xf32, #tpu.memory_space<vmem>>, vector<16x128xf32>
    %cst = arith.constant 1.000000e+00 : f32
    %11 = vector.broadcast %cst : f32 to vector<16x128xf32>
    %12 = arith.cmpf ogt, %10, %11 : vector<16x128xf32>
    %13 = arith.extui %12 : vector<16x128xi1> to vector<16x128xi32>
    %14 = arith.sitofp %13 : vector<16x128xi32> to vector<16x128xf32>
    %cst_8 = arith.constant 0.899999976 : f32
    %15 = vector.broadcast %cst_8 : f32 to vector<16x128xf32>
    %16 = arith.mulf %15, %10 : vector<16x128xf32>
    %17 = arith.addf %16, %9 : vector<16x128xf32>
    %cst_9 = arith.constant 1.000000e+00 : f32
    %18 = vector.broadcast %cst_9 : f32 to vector<16x128xf32>
    %19 = arith.mulf %18, %14 : vector<16x128xf32>
    %20 = arith.subf %17, %19 : vector<16x128xf32>
    %c0_10 = arith.constant 0 : index
    %c0_11 = arith.constant 0 : index
    %21 = vector.load %arg5[%c0_10, %c0_11] : memref<16x128xf32, #tpu.memory_space<vmem>>, vector<16x128xf32>
    tpu.vector_store %arg5[%c0_10, %c0_11], %20 {strides = array<i32>} : memref<16x128xf32, #tpu.memory_space<vmem>>, vector<16x128xf32>,
    %cst_12 = arith.constant 1.000000e+00 : f32
    %22 = vector.broadcast %cst_12 : f32 to vector<16x128xf32>
    %23 = arith.cmpf ogt, %20, %22 : vector<16x128xf32>
    %24 = arith.extui %23 : vector<16x128xi1> to vector<16x128xi32>
    %25 = arith.sitofp %24 : vector<16x128xi32> to vector<16x128xf32>
    %26 = arith.truncf %25 : vector<16x128xf32> to vector<16x128xbf16>
    %c0_13 = arith.constant 0 : index
    %c0_14 = arith.constant 0 : index
    %c0_15 = arith.constant 0 : index
    %27 = vector.load %arg4[%c0_13, %c0_14, %c0_15] : memref<1x16x128xbf16, #tpu.memory_space<vmem>>, vector<1x16x128xbf16>
    %28 = vector.shape_cast %27 : vector<1x16x128xbf16> to vector<16x128xbf16>
    %29 = vector.shape_cast %26 : vector<16x128xbf16> to vector<1x16x128xbf16>
    tpu.vector_store %arg4[%c0_13, %c0_14, %c0_15], %29 {strides = array<i32>} : memref<1x16x128xbf16, #tpu.memory_space<vmem>>, vector<1x16x128xbf16>,
    return
  }
  func.func @transform_0(%arg0: i32, %arg1: i32) -> (i32, i32, i32) {
    %c0_i32 = arith.constant 0 : i32
    %c0_i32_0 = arith.constant 0 : i32
    return %arg1, %arg0, %c0_i32 : i32, i32, i32
  }
  func.func @transform_1(%arg0: i32, %arg1: i32) -> (i32, i32, i32) {
    %c0_i32 = arith.constant 0 : i32
    %c0_i32_0 = arith.constant 0 : i32
    return %arg1, %arg0, %c0_i32 : i32, i32, i32
  }
  func.func @transform_2(%arg0: i32, %arg1: i32) -> (i32, i32, i32) {
    %c0_i32 = arith.constant 0 : i32
    %c0_i32_0 = arith.constant 0 : i32
    return %arg1, %arg0, %c0_i32 : i32, i32, i32
  }
}

module attributes {stable_mosaic.version = 11 : i64} {
  func.func @_conv_gemm_kernel(%arg0: i32, %arg1: memref<32x576xbf16, #tpu.memory_space<vmem>>, %arg2: memref<576x128xbf16, #tpu.memory_space<vmem>>, %arg3: memref<32x128xbf16, #tpu.memory_space<vmem>>, %arg4: memref<1x2x128xf32, #tpu.memory_space<vmem>>) attributes {dimension_semantics = [#tpu.dimension_semantics<parallel>], iteration_bounds = array<i64: 2>, scalar_prefetch = 0 : i64, scratch_operands = 0 : i64, tpu.core_type = #tpu.core_type<tc>, window_params = [{transform_indices = @transform_0, window_bounds = array<i64: 32, 576>}, {pipeline_mode = #tpu.pipeline_mode<synchronous>, transform_indices = @transform_1, window_bounds = array<i64: 576, 128>}, {transform_indices = @transform_2, window_bounds = array<i64: 32, 128>}, {transform_indices = @transform_3, window_bounds = array<i64: 1, 2, 128>}]} {
    %c0 = arith.constant 0 : index
    %c0_0 = arith.constant 0 : index
    %0 = vector.load %arg1[%c0, %c0_0] : memref<32x576xbf16, #tpu.memory_space<vmem>>, vector<32x576xbf16>
    %c0_1 = arith.constant 0 : index
    %c0_2 = arith.constant 0 : index
    %1 = vector.load %arg2[%c0_1, %c0_2] : memref<576x128xbf16, #tpu.memory_space<vmem>>, vector<576x128xbf16>
    %cst = arith.constant dense<0.000000e+00> : vector<32x128xf32>
    %2 = tpu.matmul %0, %1, %cst {dimension_numbers = #tpu.dot_dimension_numbers<[1], [0], [0], [1], [0, 0, 1, 1], [], []>} : vector<32x576xbf16>, vector<576x128xbf16>, vector<32x128xf32> -> vector<32x128xf32>
    %3 = arith.truncf %2 : vector<32x128xf32> to vector<32x128xbf16>
    %c0_3 = arith.constant 0 : index
    %c0_4 = arith.constant 0 : index
    %4 = vector.load %arg3[%c0_3, %c0_4] : memref<32x128xbf16, #tpu.memory_space<vmem>>, vector<32x128xbf16>
    tpu.vector_store %arg3[%c0_3, %c0_4], %3 {strides = array<i32>} : memref<32x128xbf16, #tpu.memory_space<vmem>>, vector<32x128xbf16>,
    %cst_5 = arith.constant dense<0.000000e+00> : vector<128xf32>
    %5 = vector.multi_reduction <add>, %2, %cst_5 [0] : vector<32x128xf32> to vector<128xf32>
    %6 = vector.shape_cast %5 : vector<128xf32> to vector<1x128xf32>
    %7 = arith.mulf %2, %2 : vector<32x128xf32>
    %cst_6 = arith.constant dense<0.000000e+00> : vector<128xf32>
    %8 = vector.multi_reduction <add>, %7, %cst_6 [0] : vector<32x128xf32> to vector<128xf32>
    %9 = vector.shape_cast %8 : vector<128xf32> to vector<1x128xf32>
    %10 = tpu.concatenate %6, %9 in 0 : vector<1x128xf32>, vector<1x128xf32> -> vector<2x128xf32>
    %11 = vector.shape_cast %10 : vector<2x128xf32> to vector<1x2x128xf32>
    %c0_7 = arith.constant 0 : index
    %c0_8 = arith.constant 0 : index
    %c0_9 = arith.constant 0 : index
    %12 = vector.load %arg4[%c0_7, %c0_8, %c0_9] : memref<1x2x128xf32, #tpu.memory_space<vmem>>, vector<1x2x128xf32>
    tpu.vector_store %arg4[%c0_7, %c0_8, %c0_9], %11 {strides = array<i32>} : memref<1x2x128xf32, #tpu.memory_space<vmem>>, vector<1x2x128xf32>,
    return
  }
  func.func @transform_0(%arg0: i32) -> (i32, i32) {
    %c0_i32 = arith.constant 0 : i32
    %c0_i32_0 = arith.constant 0 : i32
    return %arg0, %c0_i32 : i32, i32
  }
  func.func @transform_1(%arg0: i32) -> (i32, i32) {
    %c0_i32 = arith.constant 0 : i32
    %c0_i32_0 = arith.constant 0 : i32
    %c0_i32_1 = arith.constant 0 : i32
    return %c0_i32, %c0_i32_0 : i32, i32
  }
  func.func @transform_2(%arg0: i32) -> (i32, i32) {
    %c0_i32 = arith.constant 0 : i32
    %c0_i32_0 = arith.constant 0 : i32
    return %arg0, %c0_i32 : i32, i32
  }
  func.func @transform_3(%arg0: i32) -> (i32, i32, i32) {
    %c0_i32 = arith.constant 0 : i32
    %c0_i32_0 = arith.constant 0 : i32
    %c0_i32_1 = arith.constant 0 : i32
    return %arg0, %c0_i32, %c0_i32_0 : i32, i32, i32
  }
}

module attributes {stable_mosaic.version = 11 : i64} {
  func.func @kernel(%arg0: i32, %arg1: i32, %arg2: memref<1x8x128xbf16, #tpu.memory_space<vmem>>, %arg3: memref<1x128xf32, #tpu.memory_space<vmem>>, %arg4: memref<1x128xf32, #tpu.memory_space<vmem>>, %arg5: memref<1x8x128xbf16, #tpu.memory_space<vmem>>, %arg6: memref<8x128xf32, #tpu.memory_space<vmem>>) attributes {dimension_semantics = [#tpu.dimension_semantics<parallel>, #tpu.dimension_semantics<arbitrary>], iteration_bounds = array<i64: 2, 4>, scalar_prefetch = 0 : i64, scratch_operands = 1 : i64, tpu.core_type = #tpu.core_type<tc>, window_params = [{transform_indices = @transform_0, window_bounds = array<i64: 1, 8, 128>}, {pipeline_mode = #tpu.pipeline_mode<synchronous>, transform_indices = @transform_1, window_bounds = array<i64: 1, 128>}, {pipeline_mode = #tpu.pipeline_mode<synchronous>, transform_indices = @transform_2, window_bounds = array<i64: 1, 128>}, {transform_indices = @transform_3, window_bounds = array<i64: 1, 8, 128>}]} {
    %c0_i32 = arith.constant 0 : i32
    %0 = arith.cmpi eq, %arg1, %c0_i32 : i32
    %1 = arith.extui %0 : i1 to i32
    %c0_i32_0 = arith.constant 0 : i32
    %2 = arith.cmpi ne, %1, %c0_i32_0 : i32
    scf.if %2 {
      %cst_17 = arith.constant 0.000000e+00 : f32
      %32 = vector.broadcast %cst_17 : f32 to vector<8x128xf32>
      %c0_18 = arith.constant 0 : index
      %c0_19 = arith.constant 0 : index
      %33 = vector.load %arg6[%c0_18, %c0_19] : memref<8x128xf32, #tpu.memory_space<vmem>>, vector<8x128xf32>
      tpu.vector_store %arg6[%c0_18, %c0_19], %32 {strides = array<i32>} : memref<8x128xf32, #tpu.memory_space<vmem>>, vector<8x128xf32>,
    } else {
    }
    %c0 = arith.constant 0 : index
    %c0_1 = arith.constant 0 : index
    %c0_2 = arith.constant 0 : index
    %3 = vector.load %arg2[%c0, %c0_1, %c0_2] : memref<1x8x128xbf16, #tpu.memory_space<vmem>>, vector<1x8x128xbf16>
    %4 = vector.shape_cast %3 : vector<1x8x128xbf16> to vector<8x128xbf16>
    %5 = arith.extf %4 : vector<8x128xbf16> to vector<8x128xf32>
    %c0_3 = arith.constant 0 : index
    %c0_4 = arith.constant 0 : index
    %6 = vector.load %arg3[%c0_3, %c0_4] : memref<1x128xf32, #tpu.memory_space<vmem>>, vector<1x128xf32>
    %7 = vector.broadcast %6 : vector<1x128xf32> to vector<8x128xf32>
    %8 = arith.mulf %5, %7 : vector<8x128xf32>
    %c0_5 = arith.constant 0 : index
    %c0_6 = arith.constant 0 : index
    %9 = vector.load %arg4[%c0_5, %c0_6] : memref<1x128xf32, #tpu.memory_space<vmem>>, vector<1x128xf32>
    %10 = vector.broadcast %9 : vector<1x128xf32> to vector<8x128xf32>
    %11 = arith.addf %8, %10 : vector<8x128xf32>
    %c0_7 = arith.constant 0 : index
    %c0_8 = arith.constant 0 : index
    %12 = vector.load %arg6[%c0_7, %c0_8] : memref<8x128xf32, #tpu.memory_space<vmem>>, vector<8x128xf32>
    %cst = arith.constant 1.000000e+00 : f32
    %13 = vector.broadcast %cst : f32 to vector<8x128xf32>
    %14 = arith.cmpf ogt, %12, %13 : vector<8x128xf32>
    %15 = arith.extui %14 : vector<8x128xi1> to vector<8x128xi32>
    %16 = arith.sitofp %15 : vector<8x128xi32> to vector<8x128xf32>
    %cst_9 = arith.constant 0.899999976 : f32
    %17 = vector.broadcast %cst_9 : f32 to vector<8x128xf32>
    %18 = arith.mulf %17, %12 : vector<8x128xf32>
    %19 = arith.addf %18, %11 : vector<8x128xf32>
    %cst_10 = arith.constant 1.000000e+00 : f32
    %20 = vector.broadcast %cst_10 : f32 to vector<8x128xf32>
    %21 = arith.mulf %20, %16 : vector<8x128xf32>
    %22 = arith.subf %19, %21 : vector<8x128xf32>
    %c0_11 = arith.constant 0 : index
    %c0_12 = arith.constant 0 : index
    %23 = vector.load %arg6[%c0_11, %c0_12] : memref<8x128xf32, #tpu.memory_space<vmem>>, vector<8x128xf32>
    tpu.vector_store %arg6[%c0_11, %c0_12], %22 {strides = array<i32>} : memref<8x128xf32, #tpu.memory_space<vmem>>, vector<8x128xf32>,
    %cst_13 = arith.constant 1.000000e+00 : f32
    %24 = vector.broadcast %cst_13 : f32 to vector<8x128xf32>
    %25 = arith.cmpf ogt, %22, %24 : vector<8x128xf32>
    %26 = arith.extui %25 : vector<8x128xi1> to vector<8x128xi32>
    %27 = arith.sitofp %26 : vector<8x128xi32> to vector<8x128xf32>
    %28 = arith.truncf %27 : vector<8x128xf32> to vector<8x128xbf16>
    %c0_14 = arith.constant 0 : index
    %c0_15 = arith.constant 0 : index
    %c0_16 = arith.constant 0 : index
    %29 = vector.load %arg5[%c0_14, %c0_15, %c0_16] : memref<1x8x128xbf16, #tpu.memory_space<vmem>>, vector<1x8x128xbf16>
    %30 = vector.shape_cast %29 : vector<1x8x128xbf16> to vector<8x128xbf16>
    %31 = vector.shape_cast %28 : vector<8x128xbf16> to vector<1x8x128xbf16>
    tpu.vector_store %arg5[%c0_14, %c0_15, %c0_16], %31 {strides = array<i32>} : memref<1x8x128xbf16, #tpu.memory_space<vmem>>, vector<1x8x128xbf16>,
    return
  }
  func.func @transform_0(%arg0: i32, %arg1: i32) -> (i32, i32, i32) {
    %c0_i32 = arith.constant 0 : i32
    %c0_i32_0 = arith.constant 0 : i32
    return %arg1, %arg0, %c0_i32 : i32, i32, i32
  }
  func.func @transform_1(%arg0: i32, %arg1: i32) -> (i32, i32) {
    %c0_i32 = arith.constant 0 : i32
    %c0_i32_0 = arith.constant 0 : i32
    %c0_i32_1 = arith.constant 0 : i32
    return %c0_i32, %c0_i32_0 : i32, i32
  }
  func.func @transform_2(%arg0: i32, %arg1: i32) -> (i32, i32) {
    %c0_i32 = arith.constant 0 : i32
    %c0_i32_0 = arith.constant 0 : i32
    %c0_i32_1 = arith.constant 0 : i32
    return %c0_i32, %c0_i32_0 : i32, i32
  }
  func.func @transform_3(%arg0: i32, %arg1: i32) -> (i32, i32, i32) {
    %c0_i32 = arith.constant 0 : i32
    %c0_i32_0 = arith.constant 0 : i32
    return %arg1, %arg0, %c0_i32 : i32, i32, i32
  }
}

module attributes {stable_mosaic.version = 11 : i64} {
  func.func @_conv_gemm_kernel(%arg0: i32, %arg1: memref<32x1152xbf16, #tpu.memory_space<vmem>>, %arg2: memref<1152x128xbf16, #tpu.memory_space<vmem>>, %arg3: memref<32x128xbf16, #tpu.memory_space<vmem>>, %arg4: memref<1x2x128xf32, #tpu.memory_space<vmem>>) attributes {dimension_semantics = [#tpu.dimension_semantics<parallel>], iteration_bounds = array<i64: 2>, scalar_prefetch = 0 : i64, scratch_operands = 0 : i64, tpu.core_type = #tpu.core_type<tc>, window_params = [{transform_indices = @transform_0, window_bounds = array<i64: 32, 1152>}, {pipeline_mode = #tpu.pipeline_mode<synchronous>, transform_indices = @transform_1, window_bounds = array<i64: 1152, 128>}, {transform_indices = @transform_2, window_bounds = array<i64: 32, 128>}, {transform_indices = @transform_3, window_bounds = array<i64: 1, 2, 128>}]} {
    %c0 = arith.constant 0 : index
    %c0_0 = arith.constant 0 : index
    %0 = vector.load %arg1[%c0, %c0_0] : memref<32x1152xbf16, #tpu.memory_space<vmem>>, vector<32x1152xbf16>
    %c0_1 = arith.constant 0 : index
    %c0_2 = arith.constant 0 : index
    %1 = vector.load %arg2[%c0_1, %c0_2] : memref<1152x128xbf16, #tpu.memory_space<vmem>>, vector<1152x128xbf16>
    %cst = arith.constant dense<0.000000e+00> : vector<32x128xf32>
    %2 = tpu.matmul %0, %1, %cst {dimension_numbers = #tpu.dot_dimension_numbers<[1], [0], [0], [1], [0, 0, 1, 1], [], []>} : vector<32x1152xbf16>, vector<1152x128xbf16>, vector<32x128xf32> -> vector<32x128xf32>
    %3 = arith.truncf %2 : vector<32x128xf32> to vector<32x128xbf16>
    %c0_3 = arith.constant 0 : index
    %c0_4 = arith.constant 0 : index
    %4 = vector.load %arg3[%c0_3, %c0_4] : memref<32x128xbf16, #tpu.memory_space<vmem>>, vector<32x128xbf16>
    tpu.vector_store %arg3[%c0_3, %c0_4], %3 {strides = array<i32>} : memref<32x128xbf16, #tpu.memory_space<vmem>>, vector<32x128xbf16>,
    %cst_5 = arith.constant dense<0.000000e+00> : vector<128xf32>
    %5 = vector.multi_reduction <add>, %2, %cst_5 [0] : vector<32x128xf32> to vector<128xf32>
    %6 = vector.shape_cast %5 : vector<128xf32> to vector<1x128xf32>
    %7 = arith.mulf %2, %2 : vector<32x128xf32>
    %cst_6 = arith.constant dense<0.000000e+00> : vector<128xf32>
    %8 = vector.multi_reduction <add>, %7, %cst_6 [0] : vector<32x128xf32> to vector<128xf32>
    %9 = vector.shape_cast %8 : vector<128xf32> to vector<1x128xf32>
    %10 = tpu.concatenate %6, %9 in 0 : vector<1x128xf32>, vector<1x128xf32> -> vector<2x128xf32>
    %11 = vector.shape_cast %10 : vector<2x128xf32> to vector<1x2x128xf32>
    %c0_7 = arith.constant 0 : index
    %c0_8 = arith.constant 0 : index
    %c0_9 = arith.constant 0 : index
    %12 = vector.load %arg4[%c0_7, %c0_8, %c0_9] : memref<1x2x128xf32, #tpu.memory_space<vmem>>, vector<1x2x128xf32>
    tpu.vector_store %arg4[%c0_7, %c0_8, %c0_9], %11 {strides = array<i32>} : memref<1x2x128xf32, #tpu.memory_space<vmem>>, vector<1x2x128xf32>,
    return
  }
  func.func @transform_0(%arg0: i32) -> (i32, i32) {
    %c0_i32 = arith.constant 0 : i32
    %c0_i32_0 = arith.constant 0 : i32
    return %arg0, %c0_i32 : i32, i32
  }
  func.func @transform_1(%arg0: i32) -> (i32, i32) {
    %c0_i32 = arith.constant 0 : i32
    %c0_i32_0 = arith.constant 0 : i32
    %c0_i32_1 = arith.constant 0 : i32
    return %c0_i32, %c0_i32_0 : i32, i32
  }
  func.func @transform_2(%arg0: i32) -> (i32, i32) {
    %c0_i32 = arith.constant 0 : i32
    %c0_i32_0 = arith.constant 0 : i32
    return %arg0, %c0_i32 : i32, i32
  }
  func.func @transform_3(%arg0: i32) -> (i32, i32, i32) {
    %c0_i32 = arith.constant 0 : i32
    %c0_i32_0 = arith.constant 0 : i32
    %c0_i32_1 = arith.constant 0 : i32
    return %arg0, %c0_i32, %c0_i32_0 : i32, i32, i32
  }
}

module attributes {stable_mosaic.version = 11 : i64} {
  func.func @_conv_gemm_kernel(%arg0: i32, %arg1: memref<32x64xbf16, #tpu.memory_space<vmem>>, %arg2: memref<64x128xbf16, #tpu.memory_space<vmem>>, %arg3: memref<32x128xbf16, #tpu.memory_space<vmem>>, %arg4: memref<1x2x128xf32, #tpu.memory_space<vmem>>) attributes {dimension_semantics = [#tpu.dimension_semantics<parallel>], iteration_bounds = array<i64: 2>, scalar_prefetch = 0 : i64, scratch_operands = 0 : i64, tpu.core_type = #tpu.core_type<tc>, window_params = [{transform_indices = @transform_0, window_bounds = array<i64: 32, 64>}, {pipeline_mode = #tpu.pipeline_mode<synchronous>, transform_indices = @transform_1, window_bounds = array<i64: 64, 128>}, {transform_indices = @transform_2, window_bounds = array<i64: 32, 128>}, {transform_indices = @transform_3, window_bounds = array<i64: 1, 2, 128>}]} {
    %c0 = arith.constant 0 : index
    %c0_0 = arith.constant 0 : index
    %0 = vector.load %arg1[%c0, %c0_0] : memref<32x64xbf16, #tpu.memory_space<vmem>>, vector<32x64xbf16>
    %c0_1 = arith.constant 0 : index
    %c0_2 = arith.constant 0 : index
    %1 = vector.load %arg2[%c0_1, %c0_2] : memref<64x128xbf16, #tpu.memory_space<vmem>>, vector<64x128xbf16>
    %cst = arith.constant dense<0.000000e+00> : vector<32x128xf32>
    %2 = tpu.matmul %0, %1, %cst {dimension_numbers = #tpu.dot_dimension_numbers<[1], [0], [0], [1], [0, 0, 1, 1], [], []>} : vector<32x64xbf16>, vector<64x128xbf16>, vector<32x128xf32> -> vector<32x128xf32>
    %3 = arith.truncf %2 : vector<32x128xf32> to vector<32x128xbf16>
    %c0_3 = arith.constant 0 : index
    %c0_4 = arith.constant 0 : index
    %4 = vector.load %arg3[%c0_3, %c0_4] : memref<32x128xbf16, #tpu.memory_space<vmem>>, vector<32x128xbf16>
    tpu.vector_store %arg3[%c0_3, %c0_4], %3 {strides = array<i32>} : memref<32x128xbf16, #tpu.memory_space<vmem>>, vector<32x128xbf16>,
    %cst_5 = arith.constant dense<0.000000e+00> : vector<128xf32>
    %5 = vector.multi_reduction <add>, %2, %cst_5 [0] : vector<32x128xf32> to vector<128xf32>
    %6 = vector.shape_cast %5 : vector<128xf32> to vector<1x128xf32>
    %7 = arith.mulf %2, %2 : vector<32x128xf32>
    %cst_6 = arith.constant dense<0.000000e+00> : vector<128xf32>
    %8 = vector.multi_reduction <add>, %7, %cst_6 [0] : vector<32x128xf32> to vector<128xf32>
    %9 = vector.shape_cast %8 : vector<128xf32> to vector<1x128xf32>
    %10 = tpu.concatenate %6, %9 in 0 : vector<1x128xf32>, vector<1x128xf32> -> vector<2x128xf32>
    %11 = vector.shape_cast %10 : vector<2x128xf32> to vector<1x2x128xf32>
    %c0_7 = arith.constant 0 : index
    %c0_8 = arith.constant 0 : index
    %c0_9 = arith.constant 0 : index
    %12 = vector.load %arg4[%c0_7, %c0_8, %c0_9] : memref<1x2x128xf32, #tpu.memory_space<vmem>>, vector<1x2x128xf32>
    tpu.vector_store %arg4[%c0_7, %c0_8, %c0_9], %11 {strides = array<i32>} : memref<1x2x128xf32, #tpu.memory_space<vmem>>, vector<1x2x128xf32>,
    return
  }
  func.func @transform_0(%arg0: i32) -> (i32, i32) {
    %c0_i32 = arith.constant 0 : i32
    %c0_i32_0 = arith.constant 0 : i32
    return %arg0, %c0_i32 : i32, i32
  }
  func.func @transform_1(%arg0: i32) -> (i32, i32) {
    %c0_i32 = arith.constant 0 : i32
    %c0_i32_0 = arith.constant 0 : i32
    %c0_i32_1 = arith.constant 0 : i32
    return %c0_i32, %c0_i32_0 : i32, i32
  }
  func.func @transform_2(%arg0: i32) -> (i32, i32) {
    %c0_i32 = arith.constant 0 : i32
    %c0_i32_0 = arith.constant 0 : i32
    return %arg0, %c0_i32 : i32, i32
  }
  func.func @transform_3(%arg0: i32) -> (i32, i32, i32) {
    %c0_i32 = arith.constant 0 : i32
    %c0_i32_0 = arith.constant 0 : i32
    %c0_i32_1 = arith.constant 0 : i32
    return %arg0, %c0_i32, %c0_i32_0 : i32, i32, i32
  }
}

module attributes {stable_mosaic.version = 11 : i64} {
  func.func @kernel(%arg0: i32, %arg1: i32, %arg2: memref<1x8x128xbf16, #tpu.memory_space<vmem>>, %arg3: memref<1x128xf32, #tpu.memory_space<vmem>>, %arg4: memref<1x128xf32, #tpu.memory_space<vmem>>, %arg5: memref<1x8x128xbf16, #tpu.memory_space<vmem>>, %arg6: memref<1x8x128xbf16, #tpu.memory_space<vmem>>, %arg7: memref<8x128xf32, #tpu.memory_space<vmem>>) attributes {dimension_semantics = [#tpu.dimension_semantics<parallel>, #tpu.dimension_semantics<arbitrary>], iteration_bounds = array<i64: 2, 4>, scalar_prefetch = 0 : i64, scratch_operands = 1 : i64, tpu.core_type = #tpu.core_type<tc>, window_params = [{transform_indices = @transform_0, window_bounds = array<i64: 1, 8, 128>}, {pipeline_mode = #tpu.pipeline_mode<synchronous>, transform_indices = @transform_1, window_bounds = array<i64: 1, 128>}, {pipeline_mode = #tpu.pipeline_mode<synchronous>, transform_indices = @transform_2, window_bounds = array<i64: 1, 128>}, {transform_indices = @transform_3, window_bounds = array<i64: 1, 8, 128>}, {transform_indices = @transform_4, window_bounds = array<i64: 1, 8, 128>}]} {
    %c0_i32 = arith.constant 0 : i32
    %0 = arith.cmpi eq, %arg1, %c0_i32 : i32
    %1 = arith.extui %0 : i1 to i32
    %c0_i32_0 = arith.constant 0 : i32
    %2 = arith.cmpi ne, %1, %c0_i32_0 : i32
    scf.if %2 {
      %cst_20 = arith.constant 0.000000e+00 : f32
      %36 = vector.broadcast %cst_20 : f32 to vector<8x128xf32>
      %c0_21 = arith.constant 0 : index
      %c0_22 = arith.constant 0 : index
      %37 = vector.load %arg7[%c0_21, %c0_22] : memref<8x128xf32, #tpu.memory_space<vmem>>, vector<8x128xf32>
      tpu.vector_store %arg7[%c0_21, %c0_22], %36 {strides = array<i32>} : memref<8x128xf32, #tpu.memory_space<vmem>>, vector<8x128xf32>,
    } else {
    }
    %c0 = arith.constant 0 : index
    %c0_1 = arith.constant 0 : index
    %c0_2 = arith.constant 0 : index
    %3 = vector.load %arg2[%c0, %c0_1, %c0_2] : memref<1x8x128xbf16, #tpu.memory_space<vmem>>, vector<1x8x128xbf16>
    %4 = vector.shape_cast %3 : vector<1x8x128xbf16> to vector<8x128xbf16>
    %5 = arith.extf %4 : vector<8x128xbf16> to vector<8x128xf32>
    %c0_3 = arith.constant 0 : index
    %c0_4 = arith.constant 0 : index
    %6 = vector.load %arg3[%c0_3, %c0_4] : memref<1x128xf32, #tpu.memory_space<vmem>>, vector<1x128xf32>
    %7 = vector.broadcast %6 : vector<1x128xf32> to vector<8x128xf32>
    %8 = arith.mulf %5, %7 : vector<8x128xf32>
    %c0_5 = arith.constant 0 : index
    %c0_6 = arith.constant 0 : index
    %9 = vector.load %arg4[%c0_5, %c0_6] : memref<1x128xf32, #tpu.memory_space<vmem>>, vector<1x128xf32>
    %10 = vector.broadcast %9 : vector<1x128xf32> to vector<8x128xf32>
    %11 = arith.addf %8, %10 : vector<8x128xf32>
    %c0_7 = arith.constant 0 : index
    %c0_8 = arith.constant 0 : index
    %c0_9 = arith.constant 0 : index
    %12 = vector.load %arg5[%c0_7, %c0_8, %c0_9] : memref<1x8x128xbf16, #tpu.memory_space<vmem>>, vector<1x8x128xbf16>
    %13 = vector.shape_cast %12 : vector<1x8x128xbf16> to vector<8x128xbf16>
    %14 = arith.extf %13 : vector<8x128xbf16> to vector<8x128xf32>
    %15 = arith.addf %11, %14 : vector<8x128xf32>
    %c0_10 = arith.constant 0 : index
    %c0_11 = arith.constant 0 : index
    %16 = vector.load %arg7[%c0_10, %c0_11] : memref<8x128xf32, #tpu.memory_space<vmem>>, vector<8x128xf32>
    %cst = arith.constant 1.000000e+00 : f32
    %17 = vector.broadcast %cst : f32 to vector<8x128xf32>
    %18 = arith.cmpf ogt, %16, %17 : vector<8x128xf32>
    %19 = arith.extui %18 : vector<8x128xi1> to vector<8x128xi32>
    %20 = arith.sitofp %19 : vector<8x128xi32> to vector<8x128xf32>
    %cst_12 = arith.constant 0.899999976 : f32
    %21 = vector.broadcast %cst_12 : f32 to vector<8x128xf32>
    %22 = arith.mulf %21, %16 : vector<8x128xf32>
    %23 = arith.addf %22, %15 : vector<8x128xf32>
    %cst_13 = arith.constant 1.000000e+00 : f32
    %24 = vector.broadcast %cst_13 : f32 to vector<8x128xf32>
    %25 = arith.mulf %24, %20 : vector<8x128xf32>
    %26 = arith.subf %23, %25 : vector<8x128xf32>
    %c0_14 = arith.constant 0 : index
    %c0_15 = arith.constant 0 : index
    %27 = vector.load %arg7[%c0_14, %c0_15] : memref<8x128xf32, #tpu.memory_space<vmem>>, vector<8x128xf32>
    tpu.vector_store %arg7[%c0_14, %c0_15], %26 {strides = array<i32>} : memref<8x128xf32, #tpu.memory_space<vmem>>, vector<8x128xf32>,
    %cst_16 = arith.constant 1.000000e+00 : f32
    %28 = vector.broadcast %cst_16 : f32 to vector<8x128xf32>
    %29 = arith.cmpf ogt, %26, %28 : vector<8x128xf32>
    %30 = arith.extui %29 : vector<8x128xi1> to vector<8x128xi32>
    %31 = arith.sitofp %30 : vector<8x128xi32> to vector<8x128xf32>
    %32 = arith.truncf %31 : vector<8x128xf32> to vector<8x128xbf16>
    %c0_17 = arith.constant 0 : index
    %c0_18 = arith.constant 0 : index
    %c0_19 = arith.constant 0 : index
    %33 = vector.load %arg6[%c0_17, %c0_18, %c0_19] : memref<1x8x128xbf16, #tpu.memory_space<vmem>>, vector<1x8x128xbf16>
    %34 = vector.shape_cast %33 : vector<1x8x128xbf16> to vector<8x128xbf16>
    %35 = vector.shape_cast %32 : vector<8x128xbf16> to vector<1x8x128xbf16>
    tpu.vector_store %arg6[%c0_17, %c0_18, %c0_19], %35 {strides = array<i32>} : memref<1x8x128xbf16, #tpu.memory_space<vmem>>, vector<1x8x128xbf16>,
    return
  }
  func.func @transform_0(%arg0: i32, %arg1: i32) -> (i32, i32, i32) {
    %c0_i32 = arith.constant 0 : i32
    %c0_i32_0 = arith.constant 0 : i32
    return %arg1, %arg0, %c0_i32 : i32, i32, i32
  }
  func.func @transform_1(%arg0: i32, %arg1: i32) -> (i32, i32) {
    %c0_i32 = arith.constant 0 : i32
    %c0_i32_0 = arith.constant 0 : i32
    %c0_i32_1 = arith.constant 0 : i32
    return %c0_i32, %c0_i32_0 : i32, i32
  }
  func.func @transform_2(%arg0: i32, %arg1: i32) -> (i32, i32) {
    %c0_i32 = arith.constant 0 : i32
    %c0_i32_0 = arith.constant 0 : i32
    %c0_i32_1 = arith.constant 0 : i32
    return %c0_i32, %c0_i32_0 : i32, i32
  }
  func.func @transform_3(%arg0: i32, %arg1: i32) -> (i32, i32, i32) {
    %c0_i32 = arith.constant 0 : i32
    %c0_i32_0 = arith.constant 0 : i32
    return %arg1, %arg0, %c0_i32 : i32, i32, i32
  }
  func.func @transform_4(%arg0: i32, %arg1: i32) -> (i32, i32, i32) {
    %c0_i32 = arith.constant 0 : i32
    %c0_i32_0 = arith.constant 0 : i32
    return %arg1, %arg0, %c0_i32 : i32, i32, i32
  }
}

</mosaic_0001>

<llo_original>
// kernel: _lambda_.13
$region0: #{_lambda_.13}
  #allocation0 [shape = 'u32[]', space=smem, size = 0x4, offset = 0x4, fixed_abs, tag = 'smem constant byte address 0x4 - core index']
  #allocation1 [shape = 'u32[144,128]{1,0:T(1,128)}', space=vmem, size = 0x12000, scoped, tag = 'internal scratch']
  %s0 = inlined_call_operand.vmem [shape: bf16[128,288], index: 0, kind: input, shape index: {}]
  %s1 = inlined_call_operand.vmem [shape: bf16[288,128], index: 1, kind: input, shape index: {}]
  %s2 = inlined_call_operand.vmem [shape: bf16[128,128], index: 2, kind: output, shape index: {0}]
  %s3 = inlined_call_operand.vmem [shape: f32[2,2,128], index: 3, kind: output, shape index: {1}]
  %4 = xla_tuple %s2, %s3
  %s5 = sld [smem:[#allocation0]]
  $region49: #{_lambda_.13} parent=0
    _
  %s7 = ssub.s32 1, %s5
  %s8 = scalar_select 0, %s7, %s5
  loop: start=0, step=1, limit=4
  $region2: #{_lambda_.13} parent=0 // loop_pre_header
    _
  $region3: #{_lambda_.13} parent=0 // loop_header
    %s10 = sphi 0, %s14
    %p11 = scmp.ge.s32.totalorder %s10, 4
    %s20 = sphi 0, %s22
    %s23 = sphi 0, %s20
    %s24 = sphi 0, %s23
    %s40 = sphi 0, %s24
    %s44 = sphi 0, %s44
    %s46 = sphi 0, %s44
    %s47 = sphi 0, %s46
    %s61 = sphi 0, %s47
    %s67 = sphi 0, %s69
    %s70 = sphi 0, %s67
    %s71 = sphi 0, %s70
    %s87 = sphi 0, %s71
    %s93 = sphi 0, %s95
    %s96 = sphi 0, %s93
    %s97 = sphi 0, %s96
    %s113 = sphi 0, %s97
  $region4: #{_lambda_.13} parent=0 // loop_header_branch
    %13 = sbr.rel (%p11) target = $region8
  $region5: #{_lambda_.13} parent=0 // loop_body
    %s15 = ssub.s32 %s10, 1
    %s16 = ssub.s32 %s10, 2
    %s17 = sadd.s32 %s10, 1
    %s18 = ssub.s32 %s10, %s17
    %p19 = scmp.eq.s32.totalorder %s18, 0
    %s21 = sadd.s32 %s20, 1
    %s22 = scalar_select %p19, %s20, %s21
    %p25 = pneg %p19
    %p26 = scmp.eq.s32.totalorder %s10, 1
    %p27 = por %p25, %p26
    %p28 = scmp.ne.s32.totalorder %s20, %s23
    %p29 = scmp.eq.s32.totalorder %s10, 0
    %p30 = por %p28, %p29
    %p31 = scmp.ne.s32.totalorder %s20, %s23
    %p32 = scmp.eq.s32.totalorder %s15, 1
    %p33 = por %p31, %p32
    %p34 = scmp.ne.s32.totalorder %s23, %s24
    %p35 = scmp.eq.s32.totalorder %s15, 0
    %p36 = por %p34, %p35
    %p37 = scmp.ne.s32.totalorder %s23, %s24
    %p38 = scmp.eq.s32.totalorder %s16, 1
    %p39 = por %p37, %p38
    %p41 = scmp.ne.s32.totalorder %s24, %s40
    %p42 = scmp.eq.s32.totalorder %s16, 0
    %p43 = por %p41, %p42
    %s45 = sadd.s32 %s44, 1
    %p48 = scmp.eq.s32.totalorder %s10, 1
    %p49 = scmp.ne.s32.totalorder %s44, %s46
    %p50 = scmp.eq.s32.totalorder %s10, 0
    %p51 = por %p49, %p50
    %p52 = scmp.ne.s32.totalorder %s44, %s46
    %p53 = scmp.eq.s32.totalorder %s15, 1
    %p54 = por %p52, %p53
    %p55 = scmp.ne.s32.totalorder %s46, %s47
    %p56 = scmp.eq.s32.totalorder %s15, 0
    %p57 = por %p55, %p56
    %p58 = scmp.ne.s32.totalorder %s46, %s47
    %p59 = scmp.eq.s32.totalorder %s16, 1
    %p60 = por %p58, %p59
    %p62 = scmp.ne.s32.totalorder %s47, %s61
    %p63 = scmp.eq.s32.totalorder %s16, 0
    %p64 = por %p62, %p63
    %s65 = ssub.s32 %s10, %s17
    %p66 = scmp.eq.s32.totalorder %s65, 0
    %s68 = sadd.s32 %s67, 1
    %s69 = scalar_select %p66, %s67, %s68
    %p72 = pneg %p66
    %p73 = scmp.eq.s32.totalorder %s10, 1
    %p74 = por %p72, %p73
    %p75 = scmp.ne.s32.totalorder %s67, %s70
    %p76 = scmp.eq.s32.totalorder %s10, 0
    %p77 = por %p75, %p76
    %p78 = scmp.ne.s32.totalorder %s67, %s70
    %p79 = scmp.eq.s32.totalorder %s15, 1
    %p80 = por %p78, %p79
    %p81 = scmp.ne.s32.totalorder %s70, %s71
    %p82 = scmp.eq.s32.totalorder %s15, 0
    %p83 = por %p81, %p82
    %p84 = scmp.ne.s32.totalorder %s70, %s71
    %p85 = scmp.eq.s32.totalorder %s16, 1
    %p86 = por %p84, %p85
    %p88 = scmp.ne.s32.totalorder %s71, %s87
    %p89 = scmp.eq.s32.totalorder %s16, 0
    %p90 = por %p88, %p89
    %s91 = ssub.s32 %s10, %s17
    %p92 = scmp.eq.s32.totalorder %s91, 0
    %s94 = sadd.s32 %s93, 1
    %s95 = scalar_select %p92, %s93, %s94
    %p98 = pneg %p92
    %p99 = scmp.eq.s32.totalorder %s10, 1
    %p100 = por %p98, %p99
    %p101 = scmp.ne.s32.totalorder %s93, %s96
    %p102 = scmp.eq.s32.totalorder %s10, 0
    %p103 = por %p101, %p102
    %p104 = scmp.ne.s32.totalorder %s93, %s96
    %p105 = scmp.eq.s32.totalorder %s15, 1
    %p106 = por %p104, %p105
    %p107 = scmp.ne.s32.totalorder %s96, %s97
    %p108 = scmp.eq.s32.totalorder %s15, 0
    %p109 = por %p107, %p108
    %p110 = scmp.ne.s32.totalorder %s96, %s97
    %p111 = scmp.eq.s32.totalorder %s16, 1
    %p112 = por %p110, %p111
    %p114 = scmp.ne.s32.totalorder %s97, %s113
    %p115 = scmp.eq.s32.totalorder %s16, 0
    %p116 = por %p114, %p115
    %p117 = scmp.le.s32.totalorder 1, %s10
    %p118 = scmp.lt.s32.totalorder %s10, 3
    %p119 = pnand %p117, %p118
    %p120 = pneg %p119
    // Predicated region
    $region9: #{_lambda_.13} parent=5 // pred_check
      _
    $region10: #{_lambda_.13} parent=5 // pred_check_branch
      %122 = sbr.rel (%p119) target = $region12
    $region11: #{_lambda_.13} parent=5 // pred_region
      %s123 = ssub.s32 %s10, 1
      // Predicated region
      $region13: #{_lambda_.13} parent=11 // pred_check
        %p124 = pneg %p57
      $region14: #{_lambda_.13} parent=11 // pred_check_branch
        %126 = sbr.rel (%p124) target = $region16
      $region15: #{_lambda_.13} parent=11 // pred_region
        _
      $region16: #{_lambda_.13} parent=11 // pred_fallthru
        _
    $region12: #{_lambda_.13} parent=5 // pred_fallthru
      _
    %p127 = scmp.lt.s32.totalorder %s10, 2
    // Predicated region
    $region17: #{_lambda_.13} parent=5 // pred_check
      %p128 = pneg %p127
    $region18: #{_lambda_.13} parent=5 // pred_check_branch
      %130 = sbr.rel (%p128) target = $region20
    $region19: #{_lambda_.13} parent=5 // pred_region
      // Predicated region
      $region21: #{_lambda_.13} parent=19 // pred_check
        %p131 = pneg %p30
      $region22: #{_lambda_.13} parent=19 // pred_check_branch
        %133 = sbr.rel (%p131) target = $region24
      $region23: #{_lambda_.13} parent=19 // pred_region
        %s134 = smul.u32 8, %s10
        %p135 = scmp.lt.s32.totalorder %s134, 15
        %s136 = scalar_select %p135, %s134, 15
        %s137 = smul.addr %s136, 3
        %s138 = smul.addr %s137, 4
        %s139 = scalar_lea.vmem %s0, %s138
        %s140 = smul.u32 8, %s10
      $region24: #{_lambda_.13} parent=19 // pred_fallthru
        _
    $region20: #{_lambda_.13} parent=5 // pred_fallthru
      _
    %p141 = scmp.le.s32.totalorder 1, %s10
    %p142 = scmp.lt.s32.totalorder %s10, 3
    %p143 = pnand %p141, %p142
    %p144 = pneg %p143
    // Predicated region
    $region25: #{_lambda_.13} parent=5 // pred_check
      _
    $region26: #{_lambda_.13} parent=5 // pred_check_branch
      %146 = sbr.rel (%p143) target = $region28
    $region27: #{_lambda_.13} parent=5 // pred_region
      %s147 = ssub.s32 %s10, 1
      %s148 = smul.u32 8, %s15
      %p149 = scmp.lt.s32.totalorder %s148, 15
      %s150 = scalar_select %p149, %s148, 15
      %s151 = smul.addr %s150, 3
      %s152 = smul.addr %s151, 4
      %s153 = scalar_lea.vmem %s0, %s152
      %p154 = pneg %p36
      %p155 = pneg %p33
      %p156 = pneg %p57
      %p157 = pneg %p54
      %p158 = pneg %p83
      %p159 = pneg %p80
      %s160 = smul.u32 8, %s15
      %p161 = scmp.lt.s32.totalorder %s160, 15
      %s162 = scalar_select %p161, %s160, 15
      %s163 = smul.addr %s162, 4
      %s164 = scalar_lea.vmem %s2, %s163
      %p165 = pneg %p109
      %p166 = pneg %p106
      %p167 = scmp.lt.s32.totalorder %s15, 1
      %s168 = scalar_select %p167, %s15, 1
      %s169 = smul.addr %s168, 2
      %s170 = scalar_lea.vmem %s3, %s169
      %s171 = smul.u32 8, %s15
      %p172 = scmp.lt.s32.totalorder %s171, 15
      %s173 = scalar_select %p172, %s171, 15
      %s174 = smul.addr %s173, 3
      %s175 = smul.addr %s174, 4
      %s176 = scalar_lea.vmem %s0, %s175
      %s177 = smul.u32 8, %s15
      %s178 = smul.u32 8, %s15
      %p179 = scmp.lt.s32.totalorder %s178, 15
      %s180 = scalar_select %p179, %s178, 15
      %s181 = smul.addr %s180, 4
      %s182 = scalar_lea.vmem %s2, %s181
      %s183 = smul.u32 8, %s15
      %p184 = scmp.lt.s32.totalorder %s15, 1
      %s185 = scalar_select %p184, %s15, 1
      %s186 = smul.addr %s185, 2
      %s187 = scalar_lea.vmem %s3, %s186
      %v189 = vld [vmem:[%s176] sm:$0xff]
      %v190 = vld [vmem:[%s176 + $0x8] sm:$0xf]
      %v191 = vld [vmem:[%s176 + $0xc] sm:$0xff]
      %v192 = vld [vmem:[%s176 + $0x14] sm:$0xf]
      %v193 = vld [vmem:[%s176 + $0x18] sm:$0xff]
      %v194 = vld [vmem:[%s176 + $0x20] sm:$0xf]
      %v195 = vld [vmem:[%s176 + $0x24] sm:$0xff]
      %v196 = vld [vmem:[%s176 + $0x2c] sm:$0xf]
      %v197 = vld [vmem:[%s176 + $0x30] sm:$0xff]
      %v198 = vld [vmem:[%s176 + $0x38] sm:$0xf]
      %v199 = vld [vmem:[%s176 + $0x3c] sm:$0xff]
      %v200 = vld [vmem:[%s176 + $0x44] sm:$0xf]
      %v201 = vld [vmem:[%s176 + $0x48] sm:$0xff]
      %v202 = vld [vmem:[%s176 + $0x50] sm:$0xf]
      %v203 = vld [vmem:[%s176 + $0x54] sm:$0xff]
      %v204 = vld [vmem:[%s176 + $0x5c] sm:$0xf]
      %v205 = vld [vmem:[%s1] sm:$0xf]
      %v206 = vld [vmem:[%s1 + $0x4] sm:$0xf]
      %v207 = vld [vmem:[%s1 + $0x8] sm:$0xf]
      %v208 = vld [vmem:[%s1 + $0xc] sm:$0xf]
      %v209 = vld [vmem:[%s1 + $0x10] sm:$0xf]
      %v210 = vld [vmem:[%s1 + $0x14] sm:$0xf]
      %v211 = vld [vmem:[%s1 + $0x18] sm:$0xf]
      %v212 = vld [vmem:[%s1 + $0x1c] sm:$0xf]
      %v213 = vld [vmem:[%s1 + $0x20] sm:$0xf]
      %v214 = vld [vmem:[%s1 + $0x24] sm:$0xf]
      %v215 = vld [vmem:[%s1 + $0x28] sm:$0xf]
      %v216 = vld [vmem:[%s1 + $0x2c] sm:$0xf]
      %v217 = vld [vmem:[%s1 + $0x30] sm:$0xf]
      %v218 = vld [vmem:[%s1 + $0x34] sm:$0xf]
      %v219 = vld [vmem:[%s1 + $0x38] sm:$0xf]
      %v220 = vld [vmem:[%s1 + $0x3c] sm:$0xf]
      %v221 = vld [vmem:[%s1 + $0x40] sm:$0xf]
      %v222 = vld [vmem:[%s1 + $0x44] sm:$0xf]
      %v223 = vld [vmem:[%s1 + $0x48] sm:$0xf]
      %v224 = vld [vmem:[%s1 + $0x4c] sm:$0xf]
      %v225 = vld [vmem:[%s1 + $0x50] sm:$0xf]
      %v226 = vld [vmem:[%s1 + $0x54] sm:$0xf]
      %v227 = vld [vmem:[%s1 + $0x58] sm:$0xf]
      %v228 = vld [vmem:[%s1 + $0x5c] sm:$0xf]
      %v229 = vld [vmem:[%s1 + $0x60] sm:$0xf]
      %v230 = vld [vmem:[%s1 + $0x64] sm:$0xf]
      %v231 = vld [vmem:[%s1 + $0x68] sm:$0xf]
      %v232 = vld [vmem:[%s1 + $0x6c] sm:$0xf]
      %v233 = vld [vmem:[%s1 + $0x70] sm:$0xf]
      %v234 = vld [vmem:[%s1 + $0x74] sm:$0xf]
      %v235 = vld [vmem:[%s1 + $0x78] sm:$0xf]
      %v236 = vld [vmem:[%s1 + $0x7c] sm:$0xf]
      %v237 = vld [vmem:[%s1 + $0x80] sm:$0xf]
      %v238 = vld [vmem:[%s1 + $0x84] sm:$0xf]
      %v239 = vld [vmem:[%s1 + $0x88] sm:$0xf]
      %v240 = vld [vmem:[%s1 + $0x8c] sm:$0xf]
      %v257 = vunpack.c.l.b16 %v189
      %v258 = vunpack.c.h.b16 %v189
      %v259 = vunpack.c.l.b16 %v190
      %v260 = vunpack.c.l.b16 %v191
      %v261 = vunpack.c.h.b16 %v191
      %v262 = vunpack.c.l.b16 %v192
      %v263 = vunpack.c.l.b16 %v193
      %v264 = vunpack.c.h.b16 %v193
      %v265 = vunpack.c.l.b16 %v194
      %v266 = vunpack.c.l.b16 %v195
      %v267 = vunpack.c.h.b16 %v195
      %v268 = vunpack.c.l.b16 %v196
      %v269 = vunpack.c.l.b16 %v197
      %v270 = vunpack.c.h.b16 %v197
      %v271 = vunpack.c.l.b16 %v198
      %v272 = vunpack.c.l.b16 %v199
      %v273 = vunpack.c.h.b16 %v199
      %v274 = vunpack.c.l.b16 %v200
      %v275 = vunpack.c.l.b16 %v201
      %v276 = vunpack.c.h.b16 %v201
      %v277 = vunpack.c.l.b16 %v202
      %v278 = vunpack.c.l.b16 %v203
      %v279 = vunpack.c.h.b16 %v203
      %v280 = vunpack.c.l.b16 %v204
      %v281 = vpack.c.b16 %v260, %v257
      %v282 = vpack.c.b16 %v261, %v258
      %v283 = vpack.c.b16 %v262, %v259
      %v284 = vpack.c.b16 %v266, %v263
      %v285 = vpack.c.b16 %v267, %v264
      %v286 = vpack.c.b16 %v268, %v265
      %v287 = vpack.c.b16 %v272, %v269
      %v288 = vpack.c.b16 %v273, %v270
      %v289 = vpack.c.b16 %v274, %v271
      %v290 = vpack.c.b16 %v278, %v275
      %v291 = vpack.c.b16 %v279, %v276
      %v292 = vpack.c.b16 %v280, %v277
      %v337 = vunpack.c.l.b16 %v205
      %v338 = vunpack.c.l.b16 %v206
      %v339 = vunpack.c.l.b16 %v207
      %v340 = vunpack.c.l.b16 %v208
      %v341 = vunpack.c.l.b16 %v209
      %v342 = vunpack.c.l.b16 %v210
      %v343 = vunpack.c.l.b16 %v211
      %v344 = vunpack.c.l.b16 %v212
      %v345 = vunpack.c.l.b16 %v213
      %v346 = vunpack.c.l.b16 %v214
      %v347 = vunpack.c.l.b16 %v215
      %v348 = vunpack.c.l.b16 %v216
      %v349 = vunpack.c.l.b16 %v217
      %v350 = vunpack.c.l.b16 %v218
      %v351 = vunpack.c.l.b16 %v219
      %v352 = vunpack.c.l.b16 %v220
      %v353 = vunpack.c.l.b16 %v221
      %v354 = vunpack.c.l.b16 %v222
      %v355 = vunpack.c.l.b16 %v223
      %v356 = vunpack.c.l.b16 %v224
      %v357 = vunpack.c.l.b16 %v225
      %v358 = vunpack.c.l.b16 %v226
      %v359 = vunpack.c.l.b16 %v227
      %v360 = vunpack.c.l.b16 %v228
      %v361 = vunpack.c.l.b16 %v229
      %v362 = vunpack.c.l.b16 %v230
      %v363 = vunpack.c.l.b16 %v231
      %v364 = vunpack.c.l.b16 %v232
      %v365 = vunpack.c.l.b16 %v233
      %v366 = vunpack.c.l.b16 %v234
      %v367 = vunpack.c.l.b16 %v235
      %v368 = vunpack.c.l.b16 %v236
      %v369 = vunpack.c.l.b16 %v237
      %v370 = vunpack.c.l.b16 %v238
      %v371 = vunpack.c.l.b16 %v239
      %v372 = vunpack.c.l.b16 %v240
      %v373 = vpack.c.b16 %v338, %v337
      %v374 = vpack.c.b16 %v340, %v339
      %v375 = vpack.c.b16 %v342, %v341
      %v376 = vpack.c.b16 %v344, %v343
      %v377 = vpack.c.b16 %v346, %v345
      %v378 = vpack.c.b16 %v348, %v347
      %v379 = vpack.c.b16 %v350, %v349
      %v380 = vpack.c.b16 %v352, %v351
      %v381 = vpack.c.b16 %v354, %v353
      %v382 = vpack.c.b16 %v356, %v355
      %v383 = vpack.c.b16 %v358, %v357
      %v384 = vpack.c.b16 %v360, %v359
      %v385 = vpack.c.b16 %v362, %v361
      %v386 = vpack.c.b16 %v364, %v363
      %v387 = vpack.c.b16 %v366, %v365
      %v388 = vpack.c.b16 %v368, %v367
      %v389 = vpack.c.b16 %v370, %v369
      %v390 = vpack.c.b16 %v372, %v371
      %vm409 = vcmask 261120
      %v411 = vsel %vm409, %v283, 0
      %v414 = vsel %vm409, %v286, 0
      %v417 = vsel %vm409, %v289, 0
      %v420 = vsel %vm409, %v292, 0
      %422 = vmatprep.subr.bf16.mxu0 0
      %423 = vmatpush1.bf16.msra.mxu0 %v373
      %424 = vmatprep.subr.bf16.mxu0 0
      %425 = vmatpush1.bf16.msra.mxu0 %v374
      %426 = vmatprep.subr.bf16.mxu0 0
      %427 = vmatpush1.bf16.msra.mxu0 %v375
      %428 = vmatprep.subr.bf16.mxu0 0
      %429 = vmatpush1.bf16.msra.mxu0 %v376
      %430 = vmatprep.subr.bf16.mxu0 0
      %431 = vmatpush1.bf16.msra.mxu0 %v377
      %432 = vmatprep.subr.bf16.mxu0 0
      %433 = vmatpush1.bf16.msra.mxu0 %v378
      %434 = vmatprep.subr.bf16.mxu0 0
      %435 = vmatpush1.bf16.msra.mxu0 %v379
      %436 = vmatprep.subr.bf16.mxu0 0
      %437 = vmatpush1.bf16.msra.mxu0 %v380
      %438 = vmatprep.subr.bf16.mxu0 0
      %439 = vmatpush1.bf16.msra.mxu0 %v381
      %440 = vmatprep.subr.bf16.mxu0 0
      %441 = vmatpush1.bf16.msra.mxu0 %v382
      %442 = vmatprep.subr.bf16.mxu0 0
      %443 = vmatpush1.bf16.msra.mxu0 %v383
      %444 = vmatprep.subr.bf16.mxu0 0
      %445 = vmatpush1.bf16.msra.mxu0 %v384
      %446 = vmatprep.subr.bf16.mxu0 0
      %447 = vmatpush1.bf16.msra.mxu0 %v385
      %448 = vmatprep.subr.bf16.mxu0 0
      %449 = vmatpush1.bf16.msra.mxu0 %v386
      %450 = vmatprep.subr.bf16.mxu0 0
      %451 = vmatpush1.bf16.msra.mxu0 %v387
      %452 = vmatprep.subr.bf16.mxu0 0
      %453 = vmatpush1.bf16.msra.mxu0 %v388
      %454 = vmatprep.mubr.bf16.mxu0 %v282
      %455 = vmatmul.mubr.bf16.gmra.mrb[0].mxu0 %v281
      %v456 = vpop.f32.mrb[0].mxu0
      %v457 = vadd.f32 0.0, %v456
      %v458 = vpop.f32.mrb[0].mxu0
      %v459 = vpop.f32.mrb[0].mxu0
      %v460 = vadd.f32 0.0, %v459
      %v461 = vpop.f32.mrb[0].mxu0
      %462 = vmatprep.mubr.bf16.mxu0 %v285
      %463 = vmatmul.mubr.bf16.gmra.mrb[0].mxu0 %v284
      %v464 = vpop.f32.mrb[0].mxu0
      %v465 = vadd.f32 0.0, %v464
      %v466 = vpop.f32.mrb[0].mxu0
      %v467 = vpop.f32.mrb[0].mxu0
      %v468 = vadd.f32 0.0, %v467
      %v469 = vpop.f32.mrb[0].mxu0
      %470 = vmatprep.mubr.bf16.mxu0 %v288
      %471 = vmatmul.mubr.bf16.gmra.mrb[0].mxu0 %v287
      %v472 = vpop.f32.mrb[0].mxu0
      %v473 = vadd.f32 0.0, %v472
      %v474 = vpop.f32.mrb[0].mxu0
      %v475 = vpop.f32.mrb[0].mxu0
      %v476 = vadd.f32 0.0, %v475
      %v477 = vpop.f32.mrb[0].mxu0
      %478 = vmatprep.mubr.bf16.mxu0 %v291
      %479 = vmatmul.mubr.bf16.gmra.mrb[0].mxu0 %v290
      %v480 = vpop.f32.mrb[0].mxu0
      %v481 = vadd.f32 0.0, %v480
      %v482 = vpop.f32.mrb[0].mxu0
      %v483 = vpop.f32.mrb[0].mxu0
      %v484 = vadd.f32 0.0, %v483
      %v485 = vpop.f32.mrb[0].mxu0
      %486 = vdwg.mxu0
      %487 = vmatprep.subr.bf16.mxu0 0
      %488 = vmatpush1.bf16.msra.mxu0 %v389
      %489 = vmatprep.subr.bf16.mxu0 0
      %490 = vmatpush1.bf16.msra.mxu0 %v390
      %491 = vmatprep.subr.bf16.mxu0 0
      %492 = vmatpush1.bf16.msra.mxu0 0
      %493 = vmatprep.subr.bf16.mxu0 0
      %494 = vmatpush1.bf16.msra.mxu0 0
      %495 = vmatprep.subr.bf16.mxu0 0
      %496 = vmatpush1.bf16.msra.mxu0 0
      %497 = vmatprep.subr.bf16.mxu0 0
      %498 = vmatpush1.bf16.msra.mxu0 0
      %499 = vmatprep.subr.bf16.mxu0 0
      %500 = vmatpush1.bf16.msra.mxu0 0
      %501 = vmatprep.subr.bf16.mxu0 0
      %502 = vmatpush1.bf16.msra.mxu0 0
      %503 = vmatprep.subr.bf16.mxu0 0
      %504 = vmatpush1.bf16.msra.mxu0 0
      %505 = vmatprep.subr.bf16.mxu0 0
      %506 = vmatpush1.bf16.msra.mxu0 0
      %507 = vmatprep.subr.bf16.mxu0 0
      %508 = vmatpush1.bf16.msra.mxu0 0
      %509 = vmatprep.subr.bf16.mxu0 0
      %510 = vmatpush1.bf16.msra.mxu0 0
      %511 = vmatprep.subr.bf16.mxu0 0
      %512 = vmatpush1.bf16.msra.mxu0 0
      %513 = vmatprep.subr.bf16.mxu0 0
      %514 = vmatpush1.bf16.msra.mxu0 0
      %515 = vmatprep.subr.bf16.mxu0 0
      %516 = vmatpush1.bf16.msra.mxu0 0
      %517 = vmatprep.subr.bf16.mxu0 0
      %518 = vmatpush1.bf16.msra.mxu0 0
      %519 = vmatprep.mubr.bf16.mxu0 0
      %520 = vmatmul.mubr.bf16.gmra.mrb[0].mxu0 %v411
      %v521 = vpop.f32.mrb[0].mxu0
      %v522 = vadd.f32 %v457, %v521
      %v523 = vpop.f32.mrb[0].mxu0
      %v524 = vpop.f32.mrb[0].mxu0
      %v525 = vadd.f32 %v460, %v524
      %v526 = vpop.f32.mrb[0].mxu0
      %527 = vmatprep.mubr.bf16.mxu0 0
      %528 = vmatmul.mubr.bf16.gmra.mrb[0].mxu0 %v414
      %v529 = vpop.f32.mrb[0].mxu0
      %v530 = vadd.f32 %v465, %v529
      %v531 = vpop.f32.mrb[0].mxu0
      %v532 = vpop.f32.mrb[0].mxu0
      %v533 = vadd.f32 %v468, %v532
      %v534 = vpop.f32.mrb[0].mxu0
      %535 = vmatprep.mubr.bf16.mxu0 0
      %536 = vmatmul.mubr.bf16.gmra.mrb[0].mxu0 %v417
      %v537 = vpop.f32.mrb[0].mxu0
      %v538 = vadd.f32 %v473, %v537
      %v539 = vpop.f32.mrb[0].mxu0
      %v540 = vpop.f32.mrb[0].mxu0
      %v541 = vadd.f32 %v476, %v540
      %v542 = vpop.f32.mrb[0].mxu0
      %543 = vmatprep.mubr.bf16.mxu0 0
      %544 = vmatmul.mubr.bf16.gmra.mrb[0].mxu0 %v420
      %v545 = vpop.f32.mrb[0].mxu0
      %v546 = vadd.f32 %v481, %v545
      %v547 = vpop.f32.mrb[0].mxu0
      %v548 = vpop.f32.mrb[0].mxu0
      %v549 = vadd.f32 %v484, %v548
      %v550 = vpop.f32.mrb[0].mxu0
      %551 = vdwg.mxu0
      %v552 = vpack.c.bf16 %v525, %v522
      %v553 = vpack.c.bf16 %v533, %v530
      %v554 = vpack.c.bf16 %v541, %v538
      %v555 = vpack.c.bf16 %v549, %v546
      %v560 = vunpack.c.l.b16 %v552
      %v561 = vunpack.c.h.b16 %v552
      %v562 = vunpack.c.l.b16 %v553
      %v563 = vunpack.c.h.b16 %v553
      %v564 = vunpack.c.l.b16 %v554
      %v565 = vunpack.c.h.b16 %v554
      %v566 = vunpack.c.l.b16 %v555
      %v567 = vunpack.c.h.b16 %v555
      %v568 = vpack.c.b16 %v560, %v560
      %v569 = vpack.c.b16 %v561, %v561
      %v570 = vpack.c.b16 %v562, %v562
      %v571 = vpack.c.b16 %v563, %v563
      %v572 = vpack.c.b16 %v564, %v564
      %v573 = vpack.c.b16 %v565, %v565
      %v574 = vpack.c.b16 %v566, %v566
      %v575 = vpack.c.b16 %v567, %v567
      %584 = vst [vmem:[%s182] sm:$0xf] %v568
      %585 = vst [vmem:[%s182 + $0x4] sm:$0xf] %v569
      %586 = vst [vmem:[%s182 + $0x8] sm:$0xf] %v570
      %587 = vst [vmem:[%s182 + $0xc] sm:$0xf] %v571
      %588 = vst [vmem:[%s182 + $0x10] sm:$0xf] %v572
      %589 = vst [vmem:[%s182 + $0x14] sm:$0xf] %v573
      %590 = vst [vmem:[%s182 + $0x18] sm:$0xf] %v574
      %591 = vst [vmem:[%s182 + $0x1c] sm:$0xf] %v575
      %v592 = vadd.f32 %v522, %v525
      %v593 = vadd.f32 %v592, %v530
      %v594 = vadd.f32 %v593, %v533
      %v595 = vadd.f32 %v594, %v538
      %v596 = vadd.f32 %v595, %v541
      %v597 = vadd.f32 %v596, %v546
      %v598 = vadd.f32 %v597, %v549
      %v599 = vrot.slane %v598, 4
      %v600 = vadd.f32 %v598, %v599
      %v601 = vrot.slane %v600, 2
      %v602 = vadd.f32 %v600, %v601
      %v603 = vrot.slane %v602, 1
      %v604 = vadd.f32 %v602, %v603
      %v605 = vmul.f32 %v522, %v522
      %v606 = vmul.f32 %v525, %v525
      %v607 = vmul.f32 %v530, %v530
      %v608 = vmul.f32 %v533, %v533
      %v609 = vmul.f32 %v538, %v538
      %v610 = vmul.f32 %v541, %v541
      %v611 = vmul.f32 %v546, %v546
      %v612 = vmul.f32 %v549, %v549
      %v613 = vadd.f32 %v605, %v606
      %v614 = vadd.f32 %v613, %v607
      %v615 = vadd.f32 %v614, %v608
      %v616 = vadd.f32 %v615, %v609
      %v617 = vadd.f32 %v616, %v610
      %v618 = vadd.f32 %v617, %v611
      %v619 = vadd.f32 %v618, %v612
      %v620 = vrot.slane %v619, 4
      %v621 = vadd.f32 %v619, %v620
      %v622 = vrot.slane %v621, 2
      %v623 = vadd.f32 %v621, %v622
      %v624 = vrot.slane %v623, 1
      %v625 = vadd.f32 %v623, %v624
      %vm626 = vcmask 1040384
      %v627 = vsel %vm626, %v604, %v625
      %628 = vst [vmem:[%s187] sm:$0x3] %v627
      %s629 = smul.u32 8, %s15
      %p630 = scmp.lt.s32.totalorder %s629, 15
      %s631 = scalar_select %p630, %s629, 15
      %s632 = smul.addr %s631, 4
      %s633 = scalar_lea.vmem %s2, %s632
      %p634 = scmp.lt.s32.totalorder %s15, 1
      %s635 = scalar_select %p634, %s15, 1
      %s636 = smul.addr %s635, 2
      %s637 = scalar_lea.vmem %s3, %s636
      // Predicated region
      $region29: #{_lambda_.13} parent=27 // pred_check
        %p638 = pneg %p80
      $region30: #{_lambda_.13} parent=27 // pred_check_branch
        %640 = sbr.rel (%p638) target = $region32
      $region31: #{_lambda_.13} parent=27 // pred_region
        %s641 = smul.u32 8, %s15
      $region32: #{_lambda_.13} parent=27 // pred_fallthru
        _
      // Predicated region
      $region33: #{_lambda_.13} parent=27 // pred_check
        %p642 = pneg %p106
      $region34: #{_lambda_.13} parent=27 // pred_check_branch
        %644 = sbr.rel (%p642) target = $region36
      $region35: #{_lambda_.13} parent=27 // pred_region
        _
      $region36: #{_lambda_.13} parent=27 // pred_fallthru
        _
    $region28: #{_lambda_.13} parent=5 // pred_fallthru
      _
    %p645 = scmp.le.s32.totalorder 2, %s10
    // Predicated region
    $region37: #{_lambda_.13} parent=5 // pred_check
      %p646 = pneg %p645
    $region38: #{_lambda_.13} parent=5 // pred_check_branch
      %648 = sbr.rel (%p646) target = $region40
    $region39: #{_lambda_.13} parent=5 // pred_region
      %s649 = ssub.s32 %s10, 2
      // Predicated region
      $region41: #{_lambda_.13} parent=39 // pred_check
        %p650 = pneg %p86
      $region42: #{_lambda_.13} parent=39 // pred_check_branch
        %652 = sbr.rel (%p650) target = $region44
      $region43: #{_lambda_.13} parent=39 // pred_region
        %s653 = smul.u32 8, %s16
        %p654 = scmp.lt.s32.totalorder %s653, 15
        %s655 = scalar_select %p654, %s653, 15
        %s656 = smul.addr %s655, 4
        %s657 = scalar_lea.vmem %s2, %s656
      $region44: #{_lambda_.13} parent=39 // pred_fallthru
        _
      // Predicated region
      $region45: #{_lambda_.13} parent=39 // pred_check
        %p658 = pneg %p112
      $region46: #{_lambda_.13} parent=39 // pred_check_branch
        %660 = sbr.rel (%p658) target = $region48
      $region47: #{_lambda_.13} parent=39 // pred_region
        %p661 = scmp.lt.s32.totalorder %s16, 1
        %s662 = scalar_select %p661, %s16, 1
        %s663 = smul.addr %s662, 2
        %s664 = scalar_lea.vmem %s3, %s663
      $region48: #{_lambda_.13} parent=39 // pred_fallthru
        _
    $region40: #{_lambda_.13} parent=5 // pred_fallthru
      _
  $region6: #{_lambda_.13} parent=0 // loop_footer
    %s14 = sadd.s32 1, %s10
  $region7: #{_lambda_.13} parent=0 // loop_footer_branch
    %9 = sbr.rel target = $region3
  $region8: #{_lambda_.13} parent=0 // loop_exit
    _

// kernel: tile.63
$region0: #{tile.63}
  #allocation0 [shape = 's32[1]{0}', space=sflag, size = 0x4, scoped, tag = 'scoped memory for tile.63']
  %s0 = inlined_call_operand.vmem [shape: f32[8], index: 0, kind: input, shape index: {}]
  %s1 = inlined_call_operand.vmem [shape: f32[16,8], index: 1, kind: output, shape index: {}]
  // Predicated region
  $region2: #{tile.63} parent=0 // pred_check
    _
  $region3: #{tile.63} parent=0 // pred_check_branch
    %3 = sbr.rel (0) target = $region5
  $region4: #{tile.63} parent=0 // pred_region
    _
  $region5: #{tile.63} parent=0 // pred_fallthru
    _
  %v4 = vld [vmem:[%s0] ss:$0 sm:$0xff]
  %5 = vst [vmem:[%s1] sm:$0xff] %v4
  %s6 = scalar_lea.vmem %s1, 8
  %7 = vst [vmem:[%s6] sm:$0xff] %v4

// kernel: tile.64
$region0: #{tile.64}
  %s0 = inlined_call_operand.vmem [shape: f32[16,8], index: 0, kind: input, shape index: {}]
  %s1 = inlined_call_operand.vmem [shape: f32[1,128], index: 1, kind: output, shape index: {}]
  $region1: #{tile.64} parent=0
    #allocation0 [shape = 'u8[4096]{0}', space=vmem, size = 0x1000, scoped, tag = 'scoped mem for output reshape']
    %v2 = vld [vmem:[%s0] sm:$0x1]
    %vm3 = vcmask 64512
    %4 = vst.msk [vmem:[#allocation0] sm:$0x1] %vm3, %v2
    %s5 = scalar_lea.vmem %s0, 15
    %v6 = vld [vmem:[%s5] sm:$0x1]
    %7 = vrot.lane.b32.xlu0 %v6, 120
    %v8 = vpop.permute.xlu0 %7
    %vm9 = vcmask 1048512
    %10 = vst.msk [vmem:[#allocation0] sm:$0x1] %vm9, %v8
    %s11 = scalar_lea.vmem %s0, 14
    %v12 = vld [vmem:[%s11] sm:$0x1]
    %13 = vrot.lane.b32.xlu0 %v12, 112
    %v14 = vpop.permute.xlu0 %13
    %vm15 = vcmask 982912
    %16 = vst.msk [vmem:[#allocation0] sm:$0x1] %vm15, %v14
    %s17 = scalar_lea.vmem %s0, 13
    %v18 = vld [vmem:[%s17] sm:$0x1]
    %19 = vrot.lane.b32.xlu0 %v18, 104
    %v20 = vpop.permute.xlu0 %19
    %vm21 = vcmask 917312
    %22 = vst.msk [vmem:[#allocation0] sm:$0x1] %vm21, %v20
    %s23 = scalar_lea.vmem %s0, 12
    %v24 = vld [vmem:[%s23] sm:$0x1]
    %25 = vrot.lane.b32.xlu0 %v24, 96
    %v26 = vpop.permute.xlu0 %25
    %vm27 = vcmask 851712
    %28 = vst.msk [vmem:[#allocation0] sm:$0x1] %vm27, %v26
    %s29 = scalar_lea.vmem %s0, 11
    %v30 = vld [vmem:[%s29] sm:$0x1]
    %31 = vrot.lane.b32.xlu0 %v30, 88
    %v32 = vpop.permute.xlu0 %31
    %vm33 = vcmask 786112
    %34 = vst.msk [vmem:[#allocation0] sm:$0x1] %vm33, %v32
    %s35 = scalar_lea.vmem %s0, 10
    %v36 = vld [vmem:[%s35] sm:$0x1]
    %37 = vrot.lane.b32.xlu0 %v36, 80
    %v38 = vpop.permute.xlu0 %37
    %vm39 = vcmask 720512
    %40 = vst.msk [vmem:[#allocation0] sm:$0x1] %vm39, %v38
    %s41 = scalar_lea.vmem %s0, 9
    %v42 = vld [vmem:[%s41] sm:$0x1]
    %43 = vrot.lane.b32.xlu0 %v42, 72
    %v44 = vpop.permute.xlu0 %43
    %vm45 = vcmask 654912
    %46 = vst.msk [vmem:[#allocation0] sm:$0x1] %vm45, %v44
    %s47 = scalar_lea.vmem %s0, 8
    %v48 = vld [vmem:[%s47] sm:$0x1]
    %49 = vrot.lane.b32.xlu0 %v48, 64
    %v50 = vpop.permute.xlu0 %49
    %vm51 = vcmask 589312
    %52 = vst.msk [vmem:[#allocation0] sm:$0x1] %vm51, %v50
    %s53 = scalar_lea.vmem %s0, 7
    %v54 = vld [vmem:[%s53] sm:$0x1]
    %55 = vrot.lane.b32.xlu0 %v54, 56
    %v56 = vpop.permute.xlu0 %55
    %vm57 = vcmask 523712
    %58 = vst.msk [vmem:[#allocation0] sm:$0x1] %vm57, %v56
    %s59 = scalar_lea.vmem %s0, 6
    %v60 = vld [vmem:[%s59] sm:$0x1]
    %61 = vrot.lane.b32.xlu0 %v60, 48
    %v62 = vpop.permute.xlu0 %61
    %vm63 = vcmask 458112
    %64 = vst.msk [vmem:[#allocation0] sm:$0x1] %vm63, %v62
    %s65 = scalar_lea.vmem %s0, 5
    %v66 = vld [vmem:[%s65] sm:$0x1]
    %67 = vrot.lane.b32.xlu0 %v66, 40
    %v68 = vpop.permute.xlu0 %67
    %vm69 = vcmask 392512
    %70 = vst.msk [vmem:[#allocation0] sm:$0x1] %vm69, %v68
    %s71 = scalar_lea.vmem %s0, 4
    %v72 = vld [vmem:[%s71] sm:$0x1]
    %73 = vrot.lane.b32.xlu0 %v72, 32
    %v74 = vpop.permute.xlu0 %73
    %vm75 = vcmask 326912
    %76 = vst.msk [vmem:[#allocation0] sm:$0x1] %vm75, %v74
    %s77 = scalar_lea.vmem %s0, 3
    %v78 = vld [vmem:[%s77] sm:$0x1]
    %79 = vrot.lane.b32.xlu0 %v78, 24
    %v80 = vpop.permute.xlu0 %79
    %vm81 = vcmask 261312
    %82 = vst.msk [vmem:[#allocation0] sm:$0x1] %vm81, %v80
    %s83 = scalar_lea.vmem %s0, 2
    %v84 = vld [vmem:[%s83] sm:$0x1]
    %85 = vrot.lane.b32.xlu0 %v84, 16
    %v86 = vpop.permute.xlu0 %85
    %vm87 = vcmask 195712
    %88 = vst.msk [vmem:[#allocation0] sm:$0x1] %vm87, %v86
    %s89 = scalar_lea.vmem %s0, 1
    %v90 = vld [vmem:[%s89] sm:$0x1]
    %91 = vrot.lane.b32.xlu0 %v90, 8
    %v92 = vpop.permute.xlu0 %91
    %vm93 = vcmask 130112
    %94 = vst.msk [vmem:[#allocation0] sm:$0x1] %vm93, %v92
    %s96 = sshllo.u32 0, 1
    %v98 = vld [vmem:[#allocation0] sm:%s96]
    %s99 = sshllo.u32 0, 1
    %100 = vst [vmem:[%s1] sm:%s99] %v98

// kernel: _lambda_.14
$region0: #{_lambda_.14}
  #allocation0 [shape = 'u32[]', space=smem, size = 0x4, offset = 0x4, fixed_abs, tag = 'smem constant byte address 0x4 - core index']
  #allocation1 [shape = 'u32[144,128]{1,0:T(1,128)}', space=vmem, size = 0x12000, scoped, tag = 'internal scratch']
  #allocation2 [shape = 'f32[16,128]{1,0:T(8,128)}', space=vmem, size = 0x2000, scoped, tag = 'scratch operand']
  %s0 = inlined_call_operand.vmem [shape: bf16[4,32,128], index: 0, kind: input, shape index: {}]
  %s1 = inlined_call_operand.vmem [shape: f32[1,128], index: 1, kind: input, shape index: {}]
  %s2 = inlined_call_operand.vmem [shape: f32[1,128], index: 2, kind: input, shape index: {}]
  %s3 = inlined_call_operand.vmem [shape: bf16[4,32,128], index: 3, kind: output, shape index: {}]
  %s4 = sld [smem:[#allocation0]]
  $region49: #{_lambda_.14} parent=0
    _
  %s6 = ssub.s32 1, %s4
  %s7 = scalar_select 0, %s6, %s4
  loop: start=0, step=1, limit=10
  $region2: #{_lambda_.14} parent=0 // loop_pre_header
    _
  $region3: #{_lambda_.14} parent=0 // loop_header
    %s9 = sphi 0, %s13
    %p10 = scmp.ge.s32.totalorder %s9, 10
    %s16 = sphi 0, %s28
    %s17 = sphi 0, %s24
    %s18 = sphi 0, %s16
    %s19 = sphi 0, %s17
    %s20 = sphi 0, %s18
    %s21 = sphi 0, %s19
    %s33 = sphi 0, %s35
    %s36 = sphi 0, %s33
    %s37 = sphi 0, %s36
    %s53 = sphi 0, %s37
    %s57 = sphi 0, %s57
    %s59 = sphi 0, %s57
    %s60 = sphi 0, %s59
    %s74 = sphi 0, %s60
    %s78 = sphi 0, %s78
    %s80 = sphi 0, %s78
    %s81 = sphi 0, %s80
    %s95 = sphi 0, %s81
    %s103 = sphi 0, %s105
    %s106 = sphi 0, %s103
    %s107 = sphi 0, %s106
    %s123 = sphi 0, %s107
  $region4: #{_lambda_.14} parent=0 // loop_header_branch
    %12 = sbr.rel (%p10) target = $region8
  $region5: #{_lambda_.14} parent=0 // loop_body
    %s14 = ssub.s32 %s9, 1
    %s15 = ssub.s32 %s9, 2
    %s22 = sadd.s32 1, %s17
    %p23 = scmp.ge.s32.totalorder %s22, 4
    %s24 = scalar_select %p23, 0, %s22
    %s25 = sadd.s32 1, %s16
    %s26 = scalar_select %p23, %s25, %s16
    %p27 = scmp.ge.s32.totalorder %s26, 2
    %s28 = scalar_select %p27, 0, %s26
    %s29 = ssub.s32 %s17, %s24
    %s30 = ssub.s32 %s16, %s28
    %s31 = sor.u32 %s29, %s30
    %p32 = scmp.eq.s32.totalorder %s31, 0
    %s34 = sadd.s32 %s33, 1
    %s35 = scalar_select %p32, %s33, %s34
    %p38 = pneg %p32
    %p39 = scmp.eq.s32.totalorder %s9, 7
    %p40 = por %p38, %p39
    %p41 = scmp.ne.s32.totalorder %s33, %s36
    %p42 = scmp.eq.s32.totalorder %s9, 0
    %p43 = por %p41, %p42
    %p44 = scmp.ne.s32.totalorder %s33, %s36
    %p45 = scmp.eq.s32.totalorder %s14, 7
    %p46 = por %p44, %p45
    %p47 = scmp.ne.s32.totalorder %s36, %s37
    %p48 = scmp.eq.s32.totalorder %s14, 0
    %p49 = por %p47, %p48
    %p50 = scmp.ne.s32.totalorder %s36, %s37
    %p51 = scmp.eq.s32.totalorder %s15, 7
    %p52 = por %p50, %p51
    %p54 = scmp.ne.s32.totalorder %s37, %s53
    %p55 = scmp.eq.s32.totalorder %s15, 0
    %p56 = por %p54, %p55
    %s58 = sadd.s32 %s57, 1
    %p61 = scmp.eq.s32.totalorder %s9, 7
    %p62 = scmp.ne.s32.totalorder %s57, %s59
    %p63 = scmp.eq.s32.totalorder %s9, 0
    %p64 = por %p62, %p63
    %p65 = scmp.ne.s32.totalorder %s57, %s59
    %p66 = scmp.eq.s32.totalorder %s14, 7
    %p67 = por %p65, %p66
    %p68 = scmp.ne.s32.totalorder %s59, %s60
    %p69 = scmp.eq.s32.totalorder %s14, 0
    %p70 = por %p68, %p69
    %p71 = scmp.ne.s32.totalorder %s59, %s60
    %p72 = scmp.eq.s32.totalorder %s15, 7
    %p73 = por %p71, %p72
    %p75 = scmp.ne.s32.totalorder %s60, %s74
    %p76 = scmp.eq.s32.totalorder %s15, 0
    %p77 = por %p75, %p76
    %s79 = sadd.s32 %s78, 1
    %p82 = scmp.eq.s32.totalorder %s9, 7
    %p83 = scmp.ne.s32.totalorder %s78, %s80
    %p84 = scmp.eq.s32.totalorder %s9, 0
    %p85 = por %p83, %p84
    %p86 = scmp.ne.s32.totalorder %s78, %s80
    %p87 = scmp.eq.s32.totalorder %s14, 7
    %p88 = por %p86, %p87
    %p89 = scmp.ne.s32.totalorder %s80, %s81
    %p90 = scmp.eq.s32.totalorder %s14, 0
    %p91 = por %p89, %p90
    %p92 = scmp.ne.s32.totalorder %s80, %s81
    %p93 = scmp.eq.s32.totalorder %s15, 7
    %p94 = por %p92, %p93
    %p96 = scmp.ne.s32.totalorder %s81, %s95
    %p97 = scmp.eq.s32.totalorder %s15, 0
    %p98 = por %p96, %p97
    %s99 = ssub.s32 %s17, %s24
    %s100 = ssub.s32 %s16, %s28
    %s101 = sor.u32 %s99, %s100
    %p102 = scmp.eq.s32.totalorder %s101, 0
    %s104 = sadd.s32 %s103, 1
    %s105 = scalar_select %p102, %s103, %s104
    %p108 = pneg %p102
    %p109 = scmp.eq.s32.totalorder %s9, 7
    %p110 = por %p108, %p109
    %p111 = scmp.ne.s32.totalorder %s103, %s106
    %p112 = scmp.eq.s32.totalorder %s9, 0
    %p113 = por %p111, %p112
    %p114 = scmp.ne.s32.totalorder %s103, %s106
    %p115 = scmp.eq.s32.totalorder %s14, 7
    %p116 = por %p114, %p115
    %p117 = scmp.ne.s32.totalorder %s106, %s107
    %p118 = scmp.eq.s32.totalorder %s14, 0
    %p119 = por %p117, %p118
    %p120 = scmp.ne.s32.totalorder %s106, %s107
    %p121 = scmp.eq.s32.totalorder %s15, 7
    %p122 = por %p120, %p121
    %p124 = scmp.ne.s32.totalorder %s107, %s123
    %p125 = scmp.eq.s32.totalorder %s15, 0
    %p126 = por %p124, %p125
    %p127 = scmp.le.s32.totalorder 1, %s9
    %p128 = scmp.lt.s32.totalorder %s9, 9
    %p129 = pnand %p127, %p128
    %p130 = pneg %p129
    // Predicated region
    $region9: #{_lambda_.14} parent=5 // pred_check
      _
    $region10: #{_lambda_.14} parent=5 // pred_check_branch
      %132 = sbr.rel (%p129) target = $region12
    $region11: #{_lambda_.14} parent=5 // pred_region
      %s133 = ssub.s32 %s9, 1
      // Predicated region
      $region13: #{_lambda_.14} parent=11 // pred_check
        %p134 = pneg %p70
      $region14: #{_lambda_.14} parent=11 // pred_check_branch
        %136 = sbr.rel (%p134) target = $region16
      $region15: #{_lambda_.14} parent=11 // pred_region
        _
      $region16: #{_lambda_.14} parent=11 // pred_fallthru
        _
      // Predicated region
      $region17: #{_lambda_.14} parent=11 // pred_check
        %p137 = pneg %p91
      $region18: #{_lambda_.14} parent=11 // pred_check_branch
        %139 = sbr.rel (%p137) target = $region20
      $region19: #{_lambda_.14} parent=11 // pred_region
        _
      $region20: #{_lambda_.14} parent=11 // pred_fallthru
        _
    $region12: #{_lambda_.14} parent=5 // pred_fallthru
      _
    %p140 = scmp.lt.s32.totalorder %s9, 8
    // Predicated region
    $region21: #{_lambda_.14} parent=5 // pred_check
      %p141 = pneg %p140
    $region22: #{_lambda_.14} parent=5 // pred_check_branch
      %143 = sbr.rel (%p141) target = $region24
    $region23: #{_lambda_.14} parent=5 // pred_region
      // Predicated region
      $region25: #{_lambda_.14} parent=23 // pred_check
        %p144 = pneg %p43
      $region26: #{_lambda_.14} parent=23 // pred_check_branch
        %146 = sbr.rel (%p144) target = $region28
      $region27: #{_lambda_.14} parent=23 // pred_region
        %s147 = smul.u32 2, %s16
        %p148 = scmp.lt.s32.totalorder %s17, 3
        %s149 = scalar_select %p148, %s17, 3
        %p150 = scmp.lt.s32.totalorder %s147, 3
        %s151 = scalar_select %p150, %s147, 3
        %s152 = smul.addr %s149, 4
        %s153 = sadd.s32 %s151, %s152
        %s154 = smul.addr %s153, 4
        %s155 = scalar_lea.vmem %s0, %s154
        %s156 = smul.u32 2, %s16
      $region28: #{_lambda_.14} parent=23 // pred_fallthru
        _
    $region24: #{_lambda_.14} parent=5 // pred_fallthru
      _
    %p157 = scmp.le.s32.totalorder 1, %s9
    %p158 = scmp.lt.s32.totalorder %s9, 9
    %p159 = pnand %p157, %p158
    %p160 = pneg %p159
    // Predicated region
    $region29: #{_lambda_.14} parent=5 // pred_check
      _
    $region30: #{_lambda_.14} parent=5 // pred_check_branch
      %162 = sbr.rel (%p159) target = $region32
    $region31: #{_lambda_.14} parent=5 // pred_region
      %s163 = ssub.s32 %s9, 1
      %s164 = smul.u32 2, %s18
      %p165 = scmp.lt.s32.totalorder %s19, 3
      %s166 = scalar_select %p165, %s19, 3
      %p167 = scmp.lt.s32.totalorder %s164, 3
      %s168 = scalar_select %p167, %s164, 3
      %s169 = smul.addr %s166, 4
      %s170 = sadd.s32 %s168, %s169
      %s171 = smul.addr %s170, 4
      %s172 = scalar_lea.vmem %s0, %s171
      %p173 = pneg %p49
      %p174 = pneg %p46
      %p175 = pneg %p70
      %p176 = pneg %p67
      %p177 = pneg %p91
      %p178 = pneg %p88
      %p179 = pneg %p119
      %p180 = pneg %p116
      %s181 = smul.u32 2, %s18
      %p182 = scmp.lt.s32.totalorder %s19, 3
      %s183 = scalar_select %p182, %s19, 3
      %p184 = scmp.lt.s32.totalorder %s181, 3
      %s185 = scalar_select %p184, %s181, 3
      %s186 = smul.addr %s183, 4
      %s187 = sadd.s32 %s185, %s186
      %s188 = smul.addr %s187, 4
      %s189 = scalar_lea.vmem %s3, %s188
      %s190 = smul.u32 2, %s18
      %p191 = scmp.lt.s32.totalorder %s19, 3
      %s192 = scalar_select %p191, %s19, 3
      %p193 = scmp.lt.s32.totalorder %s190, 3
      %s194 = scalar_select %p193, %s190, 3
      %s195 = smul.addr %s192, 4
      %s196 = sadd.s32 %s194, %s195
      %s197 = smul.addr %s196, 4
      %s198 = scalar_lea.vmem %s0, %s197
      %s199 = smul.u32 2, %s18
      %s200 = smul.u32 2, %s18
      %p201 = scmp.lt.s32.totalorder %s19, 3
      %s202 = scalar_select %p201, %s19, 3
      %p203 = scmp.lt.s32.totalorder %s200, 3
      %s204 = scalar_select %p203, %s200, 3
      %s205 = smul.addr %s202, 4
      %s206 = sadd.s32 %s204, %s205
      %s207 = smul.addr %s206, 4
      %s208 = scalar_lea.vmem %s3, %s207
      %s209 = smul.u32 2, %s18
      %p210 = scmp.eq.s32.totalorder %s19, 0
      // Predicated region
      $region33: #{_lambda_.14} parent=31 // pred_check
        %p211 = pneg %p210
      $region34: #{_lambda_.14} parent=31 // pred_check_branch
        %213 = sbr.rel (%p211) target = $region36
      $region35: #{_lambda_.14} parent=31 // pred_region
        %214 = vst [vmem:[#allocation2] sm:$0xff] 0.0
        %215 = vst [vmem:[#allocation2 + $0x8] sm:$0xff] 0.0
      $region36: #{_lambda_.14} parent=31 // pred_fallthru
        _
      %v216 = vld [vmem:[%s198] sm:$0xf]
      %v217 = vld [vmem:[%s198 + $0x4] sm:$0xf]
      %v218 = vunpack.c.l.bf16 %v216
      %v219 = vunpack.c.l.bf16 %v217
      %v220 = vld [vmem:[%s1] sm:$0x1]
      %v222 = vlaneseq
      %v223 = vshrl.u32 %v222, 7
      %v224 = vsub.s32 0, %v223
      %v225 = vrot.slane %v220, %v224
      %v227 = vmul.f32 %v218, %v225
      %v228 = vmul.f32 %v219, %v225
      %v229 = vld [vmem:[%s2] sm:$0x1]
      %v231 = vlaneseq
      %v232 = vshrl.u32 %v231, 7
      %v233 = vsub.s32 0, %v232
      %v234 = vrot.slane %v229, %v233
      %v236 = vadd.f32 %v227, %v234
      %v237 = vadd.f32 %v228, %v234
      %v238 = vld [vmem:[#allocation2] sm:$0xff]
      %v239 = vld [vmem:[#allocation2 + $0x8] sm:$0xff]
      %vm240 = vcmp.gt.f32.partialorder %v238, 1.0
      %vm241 = vcmp.gt.f32.partialorder %v239, 1.0
      %v242 = vsel %vm240, 1, 0
      %v243 = vsel %vm241, 1, 0
      %v244 = vcvt.s32.f32 %v242
      %v245 = vcvt.s32.f32 %v243
      %v246 = vmul.f32 %v238, 0.9
      %v247 = vmul.f32 %v239, 0.9
      %v248 = vadd.f32 %v246, %v236
      %v249 = vadd.f32 %v247, %v237
      %v250 = vsub.f32 %v248, %v244
      %v251 = vsub.f32 %v249, %v245
      %252 = vst [vmem:[#allocation2] sm:$0xff] %v250
      %253 = vst [vmem:[#allocation2 + $0x8] sm:$0xff] %v251
      %vm254 = vcmp.gt.f32.partialorder %v250, 1.0
      %vm255 = vcmp.gt.f32.partialorder %v251, 1.0
      %v256 = vsel %vm254, 1, 0
      %v257 = vsel %vm255, 1, 0
      %v258 = vcvt.s32.f32 %v256
      %v259 = vcvt.s32.f32 %v257
      %v260 = vpack.c.bf16 %v259, %v258
      %v262 = vunpack.c.l.b16 %v260
      %v263 = vunpack.c.h.b16 %v260
      %v264 = vpack.c.b16 %v262, %v262
      %v265 = vpack.c.b16 %v263, %v263
      %268 = vst [vmem:[%s208] sm:$0xf] %v264
      %269 = vst [vmem:[%s208 + $0x4] sm:$0xf] %v265
      %s270 = smul.u32 2, %s18
      %p271 = scmp.lt.s32.totalorder %s19, 3
      %s272 = scalar_select %p271, %s19, 3
      %p273 = scmp.lt.s32.totalorder %s270, 3
      %s274 = scalar_select %p273, %s270, 3
      %s275 = smul.addr %s272, 4
      %s276 = sadd.s32 %s274, %s275
      %s277 = smul.addr %s276, 4
      %s278 = scalar_lea.vmem %s3, %s277
      // Predicated region
      $region37: #{_lambda_.14} parent=31 // pred_check
        %p279 = pneg %p116
      $region38: #{_lambda_.14} parent=31 // pred_check_branch
        %281 = sbr.rel (%p279) target = $region40
      $region39: #{_lambda_.14} parent=31 // pred_region
        %s282 = smul.u32 2, %s18
      $region40: #{_lambda_.14} parent=31 // pred_fallthru
        _
    $region32: #{_lambda_.14} parent=5 // pred_fallthru
      _
    %p283 = scmp.le.s32.totalorder 2, %s9
    // Predicated region
    $region41: #{_lambda_.14} parent=5 // pred_check
      %p284 = pneg %p283
    $region42: #{_lambda_.14} parent=5 // pred_check_branch
      %286 = sbr.rel (%p284) target = $region44
    $region43: #{_lambda_.14} parent=5 // pred_region
      %s287 = ssub.s32 %s9, 2
      // Predicated region
      $region45: #{_lambda_.14} parent=43 // pred_check
        %p288 = pneg %p122
      $region46: #{_lambda_.14} parent=43 // pred_check_branch
        %290 = sbr.rel (%p288) target = $region48
      $region47: #{_lambda_.14} parent=43 // pred_region
        %s291 = smul.u32 2, %s20
        %p292 = scmp.lt.s32.totalorder %s21, 3
        %s293 = scalar_select %p292, %s21, 3
        %p294 = scmp.lt.s32.totalorder %s291, 3
        %s295 = scalar_select %p294, %s291, 3
        %s296 = smul.addr %s293, 4
        %s297 = sadd.s32 %s295, %s296
        %s298 = smul.addr %s297, 4
        %s299 = scalar_lea.vmem %s3, %s298
      $region48: #{_lambda_.14} parent=43 // pred_fallthru
        _
    $region44: #{_lambda_.14} parent=5 // pred_fallthru
      _
  $region6: #{_lambda_.14} parent=0 // loop_footer
    %s13 = sadd.s32 1, %s9
  $region7: #{_lambda_.14} parent=0 // loop_footer_branch
    %8 = sbr.rel target = $region3
  $region8: #{_lambda_.14} parent=0 // loop_exit
    _

// kernel: _lambda_.19
$region0: #{_lambda_.19}
  #allocation0 [shape = 'u32[]', space=smem, size = 0x4, offset = 0x4, fixed_abs, tag = 'smem constant byte address 0x4 - core index']
  #allocation1 [shape = 'u32[144,128]{1,0:T(1,128)}', space=vmem, size = 0x12000, scoped, tag = 'internal scratch']
  #allocation2 [shape = 'f32[16,128]{1,0:T(8,128)}', space=vmem, size = 0x2000, scoped, tag = 'scratch operand']
  %s0 = inlined_call_operand.vmem [shape: bf16[4,32,128], index: 0, kind: input, shape index: {}]
  %s1 = inlined_call_operand.vmem [shape: bf16[4,32,128], index: 1, kind: input, shape index: {}]
  %s2 = inlined_call_operand.vmem [shape: bf16[4,32,128], index: 2, kind: output, shape index: {}]
  %s3 = sld [smem:[#allocation0]]
  $region45: #{_lambda_.19} parent=0
    _
  %s5 = ssub.s32 1, %s3
  %s6 = scalar_select 0, %s5, %s3
  loop: start=0, step=1, limit=10
  $region2: #{_lambda_.19} parent=0 // loop_pre_header
    _
  $region3: #{_lambda_.19} parent=0 // loop_header
    %s8 = sphi 0, %s12
    %p9 = scmp.ge.s32.totalorder %s8, 10
    %s15 = sphi 0, %s27
    %s16 = sphi 0, %s23
    %s17 = sphi 0, %s15
    %s18 = sphi 0, %s16
    %s19 = sphi 0, %s17
    %s20 = sphi 0, %s18
    %s32 = sphi 0, %s34
    %s35 = sphi 0, %s32
    %s36 = sphi 0, %s35
    %s52 = sphi 0, %s36
    %s60 = sphi 0, %s62
    %s63 = sphi 0, %s60
    %s64 = sphi 0, %s63
    %s80 = sphi 0, %s64
    %s88 = sphi 0, %s90
    %s91 = sphi 0, %s88
    %s92 = sphi 0, %s91
    %s108 = sphi 0, %s92
  $region4: #{_lambda_.19} parent=0 // loop_header_branch
    %11 = sbr.rel (%p9) target = $region8
  $region5: #{_lambda_.19} parent=0 // loop_body
    %s13 = ssub.s32 %s8, 1
    %s14 = ssub.s32 %s8, 2
    %s21 = sadd.s32 1, %s16
    %p22 = scmp.ge.s32.totalorder %s21, 4
    %s23 = scalar_select %p22, 0, %s21
    %s24 = sadd.s32 1, %s15
    %s25 = scalar_select %p22, %s24, %s15
    %p26 = scmp.ge.s32.totalorder %s25, 2
    %s27 = scalar_select %p26, 0, %s25
    %s28 = ssub.s32 %s16, %s23
    %s29 = ssub.s32 %s15, %s27
    %s30 = sor.u32 %s28, %s29
    %p31 = scmp.eq.s32.totalorder %s30, 0
    %s33 = sadd.s32 %s32, 1
    %s34 = scalar_select %p31, %s32, %s33
    %p37 = pneg %p31
    %p38 = scmp.eq.s32.totalorder %s8, 7
    %p39 = por %p37, %p38
    %p40 = scmp.ne.s32.totalorder %s32, %s35
    %p41 = scmp.eq.s32.totalorder %s8, 0
    %p42 = por %p40, %p41
    %p43 = scmp.ne.s32.totalorder %s32, %s35
    %p44 = scmp.eq.s32.totalorder %s13, 7
    %p45 = por %p43, %p44
    %p46 = scmp.ne.s32.totalorder %s35, %s36
    %p47 = scmp.eq.s32.totalorder %s13, 0
    %p48 = por %p46, %p47
    %p49 = scmp.ne.s32.totalorder %s35, %s36
    %p50 = scmp.eq.s32.totalorder %s14, 7
    %p51 = por %p49, %p50
    %p53 = scmp.ne.s32.totalorder %s36, %s52
    %p54 = scmp.eq.s32.totalorder %s14, 0
    %p55 = por %p53, %p54
    %s56 = ssub.s32 %s16, %s23
    %s57 = ssub.s32 %s15, %s27
    %s58 = sor.u32 %s56, %s57
    %p59 = scmp.eq.s32.totalorder %s58, 0
    %s61 = sadd.s32 %s60, 1
    %s62 = scalar_select %p59, %s60, %s61
    %p65 = pneg %p59
    %p66 = scmp.eq.s32.totalorder %s8, 7
    %p67 = por %p65, %p66
    %p68 = scmp.ne.s32.totalorder %s60, %s63
    %p69 = scmp.eq.s32.totalorder %s8, 0
    %p70 = por %p68, %p69
    %p71 = scmp.ne.s32.totalorder %s60, %s63
    %p72 = scmp.eq.s32.totalorder %s13, 7
    %p73 = por %p71, %p72
    %p74 = scmp.ne.s32.totalorder %s63, %s64
    %p75 = scmp.eq.s32.totalorder %s13, 0
    %p76 = por %p74, %p75
    %p77 = scmp.ne.s32.totalorder %s63, %s64
    %p78 = scmp.eq.s32.totalorder %s14, 7
    %p79 = por %p77, %p78
    %p81 = scmp.ne.s32.totalorder %s64, %s80
    %p82 = scmp.eq.s32.totalorder %s14, 0
    %p83 = por %p81, %p82
    %s84 = ssub.s32 %s16, %s23
    %s85 = ssub.s32 %s15, %s27
    %s86 = sor.u32 %s84, %s85
    %p87 = scmp.eq.s32.totalorder %s86, 0
    %s89 = sadd.s32 %s88, 1
    %s90 = scalar_select %p87, %s88, %s89
    %p93 = pneg %p87
    %p94 = scmp.eq.s32.totalorder %s8, 7
    %p95 = por %p93, %p94
    %p96 = scmp.ne.s32.totalorder %s88, %s91
    %p97 = scmp.eq.s32.totalorder %s8, 0
    %p98 = por %p96, %p97
    %p99 = scmp.ne.s32.totalorder %s88, %s91
    %p100 = scmp.eq.s32.totalorder %s13, 7
    %p101 = por %p99, %p100
    %p102 = scmp.ne.s32.totalorder %s91, %s92
    %p103 = scmp.eq.s32.totalorder %s13, 0
    %p104 = por %p102, %p103
    %p105 = scmp.ne.s32.totalorder %s91, %s92
    %p106 = scmp.eq.s32.totalorder %s14, 7
    %p107 = por %p105, %p106
    %p109 = scmp.ne.s32.totalorder %s92, %s108
    %p110 = scmp.eq.s32.totalorder %s14, 0
    %p111 = por %p109, %p110
    %p112 = scmp.le.s32.totalorder 1, %s8
    %p113 = scmp.lt.s32.totalorder %s8, 9
    %p114 = pnand %p112, %p113
    %p115 = pneg %p114
    // Predicated region
    $region9: #{_lambda_.19} parent=5 // pred_check
      _
    $region10: #{_lambda_.19} parent=5 // pred_check_branch
      %117 = sbr.rel (%p114) target = $region12
    $region11: #{_lambda_.19} parent=5 // pred_region
      %s118 = ssub.s32 %s8, 1
    $region12: #{_lambda_.19} parent=5 // pred_fallthru
      _
    %p119 = scmp.lt.s32.totalorder %s8, 8
    // Predicated region
    $region13: #{_lambda_.19} parent=5 // pred_check
      %p120 = pneg %p119
    $region14: #{_lambda_.19} parent=5 // pred_check_branch
      %122 = sbr.rel (%p120) target = $region16
    $region15: #{_lambda_.19} parent=5 // pred_region
      // Predicated region
      $region17: #{_lambda_.19} parent=15 // pred_check
        %p123 = pneg %p42
      $region18: #{_lambda_.19} parent=15 // pred_check_branch
        %125 = sbr.rel (%p123) target = $region20
      $region19: #{_lambda_.19} parent=15 // pred_region
        %s126 = smul.u32 2, %s15
        %p127 = scmp.lt.s32.totalorder %s16, 3
        %s128 = scalar_select %p127, %s16, 3
        %p129 = scmp.lt.s32.totalorder %s126, 3
        %s130 = scalar_select %p129, %s126, 3
        %s131 = smul.addr %s128, 4
        %s132 = sadd.s32 %s130, %s131
        %s133 = smul.addr %s132, 4
        %s134 = scalar_lea.vmem %s0, %s133
        %s135 = smul.u32 2, %s15
      $region20: #{_lambda_.19} parent=15 // pred_fallthru
        _
      // Predicated region
      $region21: #{_lambda_.19} parent=15 // pred_check
        %p136 = pneg %p70
      $region22: #{_lambda_.19} parent=15 // pred_check_branch
        %138 = sbr.rel (%p136) target = $region24
      $region23: #{_lambda_.19} parent=15 // pred_region
        %s139 = smul.u32 2, %s15
        %p140 = scmp.lt.s32.totalorder %s16, 3
        %s141 = scalar_select %p140, %s16, 3
        %p142 = scmp.lt.s32.totalorder %s139, 3
        %s143 = scalar_select %p142, %s139, 3
        %s144 = smul.addr %s141, 4
        %s145 = sadd.s32 %s143, %s144
        %s146 = smul.addr %s145, 4
        %s147 = scalar_lea.vmem %s1, %s146
        %s148 = smul.u32 2, %s15
      $region24: #{_lambda_.19} parent=15 // pred_fallthru
        _
    $region16: #{_lambda_.19} parent=5 // pred_fallthru
      _
    %p149 = scmp.le.s32.totalorder 1, %s8
    %p150 = scmp.lt.s32.totalorder %s8, 9
    %p151 = pnand %p149, %p150
    %p152 = pneg %p151
    // Predicated region
    $region25: #{_lambda_.19} parent=5 // pred_check
      _
    $region26: #{_lambda_.19} parent=5 // pred_check_branch
      %154 = sbr.rel (%p151) target = $region28
    $region27: #{_lambda_.19} parent=5 // pred_region
      %s155 = ssub.s32 %s8, 1
      %s156 = smul.u32 2, %s17
      %p157 = scmp.lt.s32.totalorder %s18, 3
      %s158 = scalar_select %p157, %s18, 3
      %p159 = scmp.lt.s32.totalorder %s156, 3
      %s160 = scalar_select %p159, %s156, 3
      %s161 = smul.addr %s158, 4
      %s162 = sadd.s32 %s160, %s161
      %s163 = smul.addr %s162, 4
      %s164 = scalar_lea.vmem %s0, %s163
      %p165 = pneg %p48
      %p166 = pneg %p45
      %s167 = smul.u32 2, %s17
      %p168 = scmp.lt.s32.totalorder %s18, 3
      %s169 = scalar_select %p168, %s18, 3
      %p170 = scmp.lt.s32.totalorder %s167, 3
      %s171 = scalar_select %p170, %s167, 3
      %s172 = smul.addr %s169, 4
      %s173 = sadd.s32 %s171, %s172
      %s174 = smul.addr %s173, 4
      %s175 = scalar_lea.vmem %s1, %s174
      %p176 = pneg %p76
      %p177 = pneg %p73
      %p178 = pneg %p104
      %p179 = pneg %p101
      %s180 = smul.u32 2, %s17
      %p181 = scmp.lt.s32.totalorder %s18, 3
      %s182 = scalar_select %p181, %s18, 3
      %p183 = scmp.lt.s32.totalorder %s180, 3
      %s184 = scalar_select %p183, %s180, 3
      %s185 = smul.addr %s182, 4
      %s186 = sadd.s32 %s184, %s185
      %s187 = smul.addr %s186, 4
      %s188 = scalar_lea.vmem %s2, %s187
      %s189 = smul.u32 2, %s17
      %p190 = scmp.lt.s32.totalorder %s18, 3
      %s191 = scalar_select %p190, %s18, 3
      %p192 = scmp.lt.s32.totalorder %s189, 3
      %s193 = scalar_select %p192, %s189, 3
      %s194 = smul.addr %s191, 4
      %s195 = sadd.s32 %s193, %s194
      %s196 = smul.addr %s195, 4
      %s197 = scalar_lea.vmem %s0, %s196
      %s198 = smul.u32 2, %s17
      %s199 = smul.u32 2, %s17
      %p200 = scmp.lt.s32.totalorder %s18, 3
      %s201 = scalar_select %p200, %s18, 3
      %p202 = scmp.lt.s32.totalorder %s199, 3
      %s203 = scalar_select %p202, %s199, 3
      %s204 = smul.addr %s201, 4
      %s205 = sadd.s32 %s203, %s204
      %s206 = smul.addr %s205, 4
      %s207 = scalar_lea.vmem %s1, %s206
      %s208 = smul.u32 2, %s17
      %s209 = smul.u32 2, %s17
      %p210 = scmp.lt.s32.totalorder %s18, 3
      %s211 = scalar_select %p210, %s18, 3
      %p212 = scmp.lt.s32.totalorder %s209, 3
      %s213 = scalar_select %p212, %s209, 3
      %s214 = smul.addr %s211, 4
      %s215 = sadd.s32 %s213, %s214
      %s216 = smul.addr %s215, 4
      %s217 = scalar_lea.vmem %s2, %s216
      %s218 = smul.u32 2, %s17
      %p219 = scmp.eq.s32.totalorder %s18, 0
      // Predicated region
      $region29: #{_lambda_.19} parent=27 // pred_check
        %p220 = pneg %p219
      $region30: #{_lambda_.19} parent=27 // pred_check_branch
        %222 = sbr.rel (%p220) target = $region32
      $region31: #{_lambda_.19} parent=27 // pred_region
        %223 = vst [vmem:[#allocation2] sm:$0xff] 0.0
        %224 = vst [vmem:[#allocation2 + $0x8] sm:$0xff] 0.0
      $region32: #{_lambda_.19} parent=27 // pred_fallthru
        _
      %v225 = vld [vmem:[%s197] sm:$0xf]
      %v226 = vld [vmem:[%s197 + $0x4] sm:$0xf]
      %v227 = vunpack.c.l.bf16 %v225
      %v228 = vunpack.c.l.bf16 %v226
      %v229 = vld [vmem:[%s207] sm:$0xf]
      %v230 = vld [vmem:[%s207 + $0x4] sm:$0xf]
      %v231 = vunpack.c.l.bf16 %v229
      %v232 = vunpack.c.l.bf16 %v230
      %v233 = vadd.f32 %v227, %v231
      %v234 = vadd.f32 %v228, %v232
      %v235 = vld [vmem:[#allocation2] sm:$0xff]
      %v236 = vld [vmem:[#allocation2 + $0x8] sm:$0xff]
      %vm237 = vcmp.gt.f32.partialorder %v235, 1.0
      %vm238 = vcmp.gt.f32.partialorder %v236, 1.0
      %v239 = vsel %vm237, 1, 0
      %v240 = vsel %vm238, 1, 0
      %v241 = vcvt.s32.f32 %v239
      %v242 = vcvt.s32.f32 %v240
      %v243 = vmul.f32 %v235, 0.9
      %v244 = vmul.f32 %v236, 0.9
      %v245 = vadd.f32 %v243, %v233
      %v246 = vadd.f32 %v244, %v234
      %v247 = vsub.f32 %v245, %v241
      %v248 = vsub.f32 %v246, %v242
      %249 = vst [vmem:[#allocation2] sm:$0xff] %v247
      %250 = vst [vmem:[#allocation2 + $0x8] sm:$0xff] %v248
      %vm251 = vcmp.gt.f32.partialorder %v247, 1.0
      %vm252 = vcmp.gt.f32.partialorder %v248, 1.0
      %v253 = vsel %vm251, 1, 0
      %v254 = vsel %vm252, 1, 0
      %v255 = vcvt.s32.f32 %v253
      %v256 = vcvt.s32.f32 %v254
      %v257 = vpack.c.bf16 %v256, %v255
      %v259 = vunpack.c.l.b16 %v257
      %v260 = vunpack.c.h.b16 %v257
      %v261 = vpack.c.b16 %v259, %v259
      %v262 = vpack.c.b16 %v260, %v260
      %265 = vst [vmem:[%s217] sm:$0xf] %v261
      %266 = vst [vmem:[%s217 + $0x4] sm:$0xf] %v262
      %s267 = smul.u32 2, %s17
      %p268 = scmp.lt.s32.totalorder %s18, 3
      %s269 = scalar_select %p268, %s18, 3
      %p270 = scmp.lt.s32.totalorder %s267, 3
      %s271 = scalar_select %p270, %s267, 3
      %s272 = smul.addr %s269, 4
      %s273 = sadd.s32 %s271, %s272
      %s274 = smul.addr %s273, 4
      %s275 = scalar_lea.vmem %s2, %s274
      // Predicated region
      $region33: #{_lambda_.19} parent=27 // pred_check
        %p276 = pneg %p101
      $region34: #{_lambda_.19} parent=27 // pred_check_branch
        %278 = sbr.rel (%p276) target = $region36
      $region35: #{_lambda_.19} parent=27 // pred_region
        %s279 = smul.u32 2, %s17
      $region36: #{_lambda_.19} parent=27 // pred_fallthru
        _
    $region28: #{_lambda_.19} parent=5 // pred_fallthru
      _
    %p280 = scmp.le.s32.totalorder 2, %s8
    // Predicated region
    $region37: #{_lambda_.19} parent=5 // pred_check
      %p281 = pneg %p280
    $region38: #{_lambda_.19} parent=5 // pred_check_branch
      %283 = sbr.rel (%p281) target = $region40
    $region39: #{_lambda_.19} parent=5 // pred_region
      %s284 = ssub.s32 %s8, 2
      // Predicated region
      $region41: #{_lambda_.19} parent=39 // pred_check
        %p285 = pneg %p107
      $region42: #{_lambda_.19} parent=39 // pred_check_branch
        %287 = sbr.rel (%p285) target = $region44
      $region43: #{_lambda_.19} parent=39 // pred_region
        %s288 = smul.u32 2, %s19
        %p289 = scmp.lt.s32.totalorder %s20, 3
        %s290 = scalar_select %p289, %s20, 3
        %p291 = scmp.lt.s32.totalorder %s288, 3
        %s292 = scalar_select %p291, %s288, 3
        %s293 = smul.addr %s290, 4
        %s294 = sadd.s32 %s292, %s293
        %s295 = smul.addr %s294, 4
        %s296 = scalar_lea.vmem %s2, %s295
      $region44: #{_lambda_.19} parent=39 // pred_fallthru
        _
    $region40: #{_lambda_.19} parent=5 // pred_fallthru
      _
  $region6: #{_lambda_.19} parent=0 // loop_footer
    %s12 = sadd.s32 1, %s8
  $region7: #{_lambda_.19} parent=0 // loop_footer_branch
    %7 = sbr.rel target = $region3
  $region8: #{_lambda_.19} parent=0 // loop_exit
    _

// kernel: _lambda_.15
$region0: #{_lambda_.15}
  #allocation0 [shape = 'u32[]', space=smem, size = 0x4, offset = 0x4, fixed_abs, tag = 'smem constant byte address 0x4 - core index']
  #allocation1 [shape = 'u32[144,128]{1,0:T(1,128)}', space=vmem, size = 0x12000, scoped, tag = 'internal scratch']
  %s0 = inlined_call_operand.vmem [shape: bf16[128,1152], index: 0, kind: input, shape index: {}]
  %s1 = inlined_call_operand.vmem [shape: bf16[1152,128], index: 1, kind: input, shape index: {}]
  %s2 = inlined_call_operand.vmem [shape: bf16[128,128], index: 2, kind: output, shape index: {0}]
  %s3 = inlined_call_operand.vmem [shape: f32[2,2,128], index: 3, kind: output, shape index: {1}]
  %4 = xla_tuple %s2, %s3
  %s5 = sld [smem:[#allocation0]]
  $region49: #{_lambda_.15} parent=0
    _
  %s7 = ssub.s32 1, %s5
  %s8 = scalar_select 0, %s7, %s5
  loop: start=0, step=1, limit=4
  $region2: #{_lambda_.15} parent=0 // loop_pre_header
    _
  $region3: #{_lambda_.15} parent=0 // loop_header
    %s10 = sphi 0, %s14
    %p11 = scmp.ge.s32.totalorder %s10, 4
    %s20 = sphi 0, %s22
    %s23 = sphi 0, %s20
    %s24 = sphi 0, %s23
    %s40 = sphi 0, %s24
    %s44 = sphi 0, %s44
    %s46 = sphi 0, %s44
    %s47 = sphi 0, %s46
    %s61 = sphi 0, %s47
    %s67 = sphi 0, %s69
    %s70 = sphi 0, %s67
    %s71 = sphi 0, %s70
    %s87 = sphi 0, %s71
    %s93 = sphi 0, %s95
    %s96 = sphi 0, %s93
    %s97 = sphi 0, %s96
    %s113 = sphi 0, %s97
  $region4: #{_lambda_.15} parent=0 // loop_header_branch
    %13 = sbr.rel (%p11) target = $region8
  $region5: #{_lambda_.15} parent=0 // loop_body
    %s15 = ssub.s32 %s10, 1
    %s16 = ssub.s32 %s10, 2
    %s17 = sadd.s32 %s10, 1
    %s18 = ssub.s32 %s10, %s17
    %p19 = scmp.eq.s32.totalorder %s18, 0
    %s21 = sadd.s32 %s20, 1
    %s22 = scalar_select %p19, %s20, %s21
    %p25 = pneg %p19
    %p26 = scmp.eq.s32.totalorder %s10, 1
    %p27 = por %p25, %p26
    %p28 = scmp.ne.s32.totalorder %s20, %s23
    %p29 = scmp.eq.s32.totalorder %s10, 0
    %p30 = por %p28, %p29
    %p31 = scmp.ne.s32.totalorder %s20, %s23
    %p32 = scmp.eq.s32.totalorder %s15, 1
    %p33 = por %p31, %p32
    %p34 = scmp.ne.s32.totalorder %s23, %s24
    %p35 = scmp.eq.s32.totalorder %s15, 0
    %p36 = por %p34, %p35
    %p37 = scmp.ne.s32.totalorder %s23, %s24
    %p38 = scmp.eq.s32.totalorder %s16, 1
    %p39 = por %p37, %p38
    %p41 = scmp.ne.s32.totalorder %s24, %s40
    %p42 = scmp.eq.s32.totalorder %s16, 0
    %p43 = por %p41, %p42
    %s45 = sadd.s32 %s44, 1
    %p48 = scmp.eq.s32.totalorder %s10, 1
    %p49 = scmp.ne.s32.totalorder %s44, %s46
    %p50 = scmp.eq.s32.totalorder %s10, 0
    %p51 = por %p49, %p50
    %p52 = scmp.ne.s32.totalorder %s44, %s46
    %p53 = scmp.eq.s32.totalorder %s15, 1
    %p54 = por %p52, %p53
    %p55 = scmp.ne.s32.totalorder %s46, %s47
    %p56 = scmp.eq.s32.totalorder %s15, 0
    %p57 = por %p55, %p56
    %p58 = scmp.ne.s32.totalorder %s46, %s47
    %p59 = scmp.eq.s32.totalorder %s16, 1
    %p60 = por %p58, %p59
    %p62 = scmp.ne.s32.totalorder %s47, %s61
    %p63 = scmp.eq.s32.totalorder %s16, 0
    %p64 = por %p62, %p63
    %s65 = ssub.s32 %s10, %s17
    %p66 = scmp.eq.s32.totalorder %s65, 0
    %s68 = sadd.s32 %s67, 1
    %s69 = scalar_select %p66, %s67, %s68
    %p72 = pneg %p66
    %p73 = scmp.eq.s32.totalorder %s10, 1
    %p74 = por %p72, %p73
    %p75 = scmp.ne.s32.totalorder %s67, %s70
    %p76 = scmp.eq.s32.totalorder %s10, 0
    %p77 = por %p75, %p76
    %p78 = scmp.ne.s32.totalorder %s67, %s70
    %p79 = scmp.eq.s32.totalorder %s15, 1
    %p80 = por %p78, %p79
    %p81 = scmp.ne.s32.totalorder %s70, %s71
    %p82 = scmp.eq.s32.totalorder %s15, 0
    %p83 = por %p81, %p82
    %p84 = scmp.ne.s32.totalorder %s70, %s71
    %p85 = scmp.eq.s32.totalorder %s16, 1
    %p86 = por %p84, %p85
    %p88 = scmp.ne.s32.totalorder %s71, %s87
    %p89 = scmp.eq.s32.totalorder %s16, 0
    %p90 = por %p88, %p89
    %s91 = ssub.s32 %s10, %s17
    %p92 = scmp.eq.s32.totalorder %s91, 0
    %s94 = sadd.s32 %s93, 1
    %s95 = scalar_select %p92, %s93, %s94
    %p98 = pneg %p92
    %p99 = scmp.eq.s32.totalorder %s10, 1
    %p100 = por %p98, %p99
    %p101 = scmp.ne.s32.totalorder %s93, %s96
    %p102 = scmp.eq.s32.totalorder %s10, 0
    %p103 = por %p101, %p102
    %p104 = scmp.ne.s32.totalorder %s93, %s96
    %p105 = scmp.eq.s32.totalorder %s15, 1
    %p106 = por %p104, %p105
    %p107 = scmp.ne.s32.totalorder %s96, %s97
    %p108 = scmp.eq.s32.totalorder %s15, 0
    %p109 = por %p107, %p108
    %p110 = scmp.ne.s32.totalorder %s96, %s97
    %p111 = scmp.eq.s32.totalorder %s16, 1
    %p112 = por %p110, %p111
    %p114 = scmp.ne.s32.totalorder %s97, %s113
    %p115 = scmp.eq.s32.totalorder %s16, 0
    %p116 = por %p114, %p115
    %p117 = scmp.le.s32.totalorder 1, %s10
    %p118 = scmp.lt.s32.totalorder %s10, 3
    %p119 = pnand %p117, %p118
    %p120 = pneg %p119
    // Predicated region
    $region9: #{_lambda_.15} parent=5 // pred_check
      _
    $region10: #{_lambda_.15} parent=5 // pred_check_branch
      %122 = sbr.rel (%p119) target = $region12
    $region11: #{_lambda_.15} parent=5 // pred_region
      %s123 = ssub.s32 %s10, 1
      // Predicated region
      $region13: #{_lambda_.15} parent=11 // pred_check
        %p124 = pneg %p57
      $region14: #{_lambda_.15} parent=11 // pred_check_branch
        %126 = sbr.rel (%p124) target = $region16
      $region15: #{_lambda_.15} parent=11 // pred_region
        _
      $region16: #{_lambda_.15} parent=11 // pred_fallthru
        _
    $region12: #{_lambda_.15} parent=5 // pred_fallthru
      _
    %p127 = scmp.lt.s32.totalorder %s10, 2
    // Predicated region
    $region17: #{_lambda_.15} parent=5 // pred_check
      %p128 = pneg %p127
    $region18: #{_lambda_.15} parent=5 // pred_check_branch
      %130 = sbr.rel (%p128) target = $region20
    $region19: #{_lambda_.15} parent=5 // pred_region
      // Predicated region
      $region21: #{_lambda_.15} parent=19 // pred_check
        %p131 = pneg %p30
      $region22: #{_lambda_.15} parent=19 // pred_check_branch
        %133 = sbr.rel (%p131) target = $region24
      $region23: #{_lambda_.15} parent=19 // pred_region
        %s134 = smul.u32 8, %s10
        %p135 = scmp.lt.s32.totalorder %s134, 15
        %s136 = scalar_select %p135, %s134, 15
        %s137 = smul.addr %s136, 9
        %s138 = smul.addr %s137, 4
        %s139 = scalar_lea.vmem %s0, %s138
        %s140 = smul.u32 8, %s10
      $region24: #{_lambda_.15} parent=19 // pred_fallthru
        _
    $region20: #{_lambda_.15} parent=5 // pred_fallthru
      _
    %p141 = scmp.le.s32.totalorder 1, %s10
    %p142 = scmp.lt.s32.totalorder %s10, 3
    %p143 = pnand %p141, %p142
    %p144 = pneg %p143
    // Predicated region
    $region25: #{_lambda_.15} parent=5 // pred_check
      _
    $region26: #{_lambda_.15} parent=5 // pred_check_branch
      %146 = sbr.rel (%p143) target = $region28
    $region27: #{_lambda_.15} parent=5 // pred_region
      %s147 = ssub.s32 %s10, 1
      %s148 = smul.u32 8, %s15
      %p149 = scmp.lt.s32.totalorder %s148, 15
      %s150 = scalar_select %p149, %s148, 15
      %s151 = smul.addr %s150, 9
      %s152 = smul.addr %s151, 4
      %s153 = scalar_lea.vmem %s0, %s152
      %p154 = pneg %p36
      %p155 = pneg %p33
      %p156 = pneg %p57
      %p157 = pneg %p54
      %p158 = pneg %p83
      %p159 = pneg %p80
      %s160 = smul.u32 8, %s15
      %p161 = scmp.lt.s32.totalorder %s160, 15
      %s162 = scalar_select %p161, %s160, 15
      %s163 = smul.addr %s162, 4
      %s164 = scalar_lea.vmem %s2, %s163
      %p165 = pneg %p109
      %p166 = pneg %p106
      %p167 = scmp.lt.s32.totalorder %s15, 1
      %s168 = scalar_select %p167, %s15, 1
      %s169 = smul.addr %s168, 2
      %s170 = scalar_lea.vmem %s3, %s169
      %s171 = smul.u32 8, %s15
      %p172 = scmp.lt.s32.totalorder %s171, 15
      %s173 = scalar_select %p172, %s171, 15
      %s174 = smul.addr %s173, 9
      %s175 = smul.addr %s174, 4
      %s176 = scalar_lea.vmem %s0, %s175
      %s177 = smul.u32 8, %s15
      %s178 = smul.u32 8, %s15
      %p179 = scmp.lt.s32.totalorder %s178, 15
      %s180 = scalar_select %p179, %s178, 15
      %s181 = smul.addr %s180, 4
      %s182 = scalar_lea.vmem %s2, %s181
      %s183 = smul.u32 8, %s15
      %p184 = scmp.lt.s32.totalorder %s15, 1
      %s185 = scalar_select %p184, %s15, 1
      %s186 = smul.addr %s185, 2
      %s187 = scalar_lea.vmem %s3, %s186
      %v189 = vld [vmem:[%s176] sm:$0xff]
      %v190 = vld [vmem:[%s176 + $0x8] sm:$0xff]
      %v191 = vld [vmem:[%s176 + $0x10] sm:$0xff]
      %v192 = vld [vmem:[%s176 + $0x18] sm:$0xff]
      %v193 = vld [vmem:[%s176 + $0x20] sm:$0xf]
      %v194 = vld [vmem:[%s176 + $0x24] sm:$0xff]
      %v195 = vld [vmem:[%s176 + $0x2c] sm:$0xff]
      %v196 = vld [vmem:[%s176 + $0x34] sm:$0xff]
      %v197 = vld [vmem:[%s176 + $0x3c] sm:$0xff]
      %v198 = vld [vmem:[%s176 + $0x44] sm:$0xf]
      %v199 = vld [vmem:[%s176 + $0x48] sm:$0xff]
      %v200 = vld [vmem:[%s176 + $0x50] sm:$0xff]
      %v201 = vld [vmem:[%s176 + $0x58] sm:$0xff]
      %v202 = vld [vmem:[%s176 + $0x60] sm:$0xff]
      %v203 = vld [vmem:[%s176 + $0x68] sm:$0xf]
      %v204 = vld [vmem:[%s176 + $0x6c] sm:$0xff]
      %v205 = vld [vmem:[%s176 + $0x74] sm:$0xff]
      %v206 = vld [vmem:[%s176 + $0x7c] sm:$0xff]
      %v207 = vld [vmem:[%s176 + $0x84] sm:$0xff]
      %v208 = vld [vmem:[%s176 + $0x8c] sm:$0xf]
      %v209 = vld [vmem:[%s176 + $0x90] sm:$0xff]
      %v210 = vld [vmem:[%s176 + $0x98] sm:$0xff]
      %v211 = vld [vmem:[%s176 + $0xa0] sm:$0xff]
      %v212 = vld [vmem:[%s176 + $0xa8] sm:$0xff]
      %v213 = vld [vmem:[%s176 + $0xb0] sm:$0xf]
      %v214 = vld [vmem:[%s176 + $0xb4] sm:$0xff]
      %v215 = vld [vmem:[%s176 + $0xbc] sm:$0xff]
      %v216 = vld [vmem:[%s176 + $0xc4] sm:$0xff]
      %v217 = vld [vmem:[%s176 + $0xcc] sm:$0xff]
      %v218 = vld [vmem:[%s176 + $0xd4] sm:$0xf]
      %v219 = vld [vmem:[%s176 + $0xd8] sm:$0xff]
      %v220 = vld [vmem:[%s176 + $0xe0] sm:$0xff]
      %v221 = vld [vmem:[%s176 + $0xe8] sm:$0xff]
      %v222 = vld [vmem:[%s176 + $0xf0] sm:$0xff]
      %v223 = vld [vmem:[%s176 + $0xf8] sm:$0xf]
      %v224 = vld [vmem:[%s176 + $0xfc] sm:$0xff]
      %v225 = vld [vmem:[%s176 + $0x104] sm:$0xff]
      %v226 = vld [vmem:[%s176 + $0x10c] sm:$0xff]
      %v227 = vld [vmem:[%s176 + $0x114] sm:$0xff]
      %v228 = vld [vmem:[%s176 + $0x11c] sm:$0xf]
      %v229 = vld [vmem:[%s1] sm:$0xf]
      %v230 = vld [vmem:[%s1 + $0x4] sm:$0xf]
      %v231 = vld [vmem:[%s1 + $0x8] sm:$0xf]
      %v232 = vld [vmem:[%s1 + $0xc] sm:$0xf]
      %v233 = vld [vmem:[%s1 + $0x10] sm:$0xf]
      %v234 = vld [vmem:[%s1 + $0x14] sm:$0xf]
      %v235 = vld [vmem:[%s1 + $0x18] sm:$0xf]
      %v236 = vld [vmem:[%s1 + $0x1c] sm:$0xf]
      %v237 = vld [vmem:[%s1 + $0x20] sm:$0xf]
      %v238 = vld [vmem:[%s1 + $0x24] sm:$0xf]
      %v239 = vld [vmem:[%s1 + $0x28] sm:$0xf]
      %v240 = vld [vmem:[%s1 + $0x2c] sm:$0xf]
      %v241 = vld [vmem:[%s1 + $0x30] sm:$0xf]
      %v242 = vld [vmem:[%s1 + $0x34] sm:$0xf]
      %v243 = vld [vmem:[%s1 + $0x38] sm:$0xf]
      %v244 = vld [vmem:[%s1 + $0x3c] sm:$0xf]
      %v245 = vld [vmem:[%s1 + $0x40] sm:$0xf]
      %v246 = vld [vmem:[%s1 + $0x44] sm:$0xf]
      %v247 = vld [vmem:[%s1 + $0x48] sm:$0xf]
      %v248 = vld [vmem:[%s1 + $0x4c] sm:$0xf]
      %v249 = vld [vmem:[%s1 + $0x50] sm:$0xf]
      %v250 = vld [vmem:[%s1 + $0x54] sm:$0xf]
      %v251 = vld [vmem:[%s1 + $0x58] sm:$0xf]
      %v252 = vld [vmem:[%s1 + $0x5c] sm:$0xf]
      %v253 = vld [vmem:[%s1 + $0x60] sm:$0xf]
      %v254 = vld [vmem:[%s1 + $0x64] sm:$0xf]
      %v255 = vld [vmem:[%s1 + $0x68] sm:$0xf]
      %v256 = vld [vmem:[%s1 + $0x6c] sm:$0xf]
      %v257 = vld [vmem:[%s1 + $0x70] sm:$0xf]
      %v258 = vld [vmem:[%s1 + $0x74] sm:$0xf]
      %v259 = vld [vmem:[%s1 + $0x78] sm:$0xf]
      %v260 = vld [vmem:[%s1 + $0x7c] sm:$0xf]
      %v261 = vld [vmem:[%s1 + $0x80] sm:$0xf]
      %v262 = vld [vmem:[%s1 + $0x84] sm:$0xf]
      %v263 = vld [vmem:[%s1 + $0x88] sm:$0xf]
      %v264 = vld [vmem:[%s1 + $0x8c] sm:$0xf]
      %v265 = vld [vmem:[%s1 + $0x90] sm:$0xf]
      %v266 = vld [vmem:[%s1 + $0x94] sm:$0xf]
      %v267 = vld [vmem:[%s1 + $0x98] sm:$0xf]
      %v268 = vld [vmem:[%s1 + $0x9c] sm:$0xf]
      %v269 = vld [vmem:[%s1 + $0xa0] sm:$0xf]
      %v270 = vld [vmem:[%s1 + $0xa4] sm:$0xf]
      %v271 = vld [vmem:[%s1 + $0xa8] sm:$0xf]
      %v272 = vld [vmem:[%s1 + $0xac] sm:$0xf]
      %v273 = vld [vmem:[%s1 + $0xb0] sm:$0xf]
      %v274 = vld [vmem:[%s1 + $0xb4] sm:$0xf]
      %v275 = vld [vmem:[%s1 + $0xb8] sm:$0xf]
      %v276 = vld [vmem:[%s1 + $0xbc] sm:$0xf]
      %v277 = vld [vmem:[%s1 + $0xc0] sm:$0xf]
      %v278 = vld [vmem:[%s1 + $0xc4] sm:$0xf]
      %v279 = vld [vmem:[%s1 + $0xc8] sm:$0xf]
      %v280 = vld [vmem:[%s1 + $0xcc] sm:$0xf]
      %v281 = vld [vmem:[%s1 + $0xd0] sm:$0xf]
      %v282 = vld [vmem:[%s1 + $0xd4] sm:$0xf]
      %v283 = vld [vmem:[%s1 + $0xd8] sm:$0xf]
      %v284 = vld [vmem:[%s1 + $0xdc] sm:$0xf]
      %v285 = vld [vmem:[%s1 + $0xe0] sm:$0xf]
      %v286 = vld [vmem:[%s1 + $0xe4] sm:$0xf]
      %v287 = vld [vmem:[%s1 + $0xe8] sm:$0xf]
      %v288 = vld [vmem:[%s1 + $0xec] sm:$0xf]
      %v289 = vld [vmem:[%s1 + $0xf0] sm:$0xf]
      %v290 = vld [vmem:[%s1 + $0xf4] sm:$0xf]
      %v291 = vld [vmem:[%s1 + $0xf8] sm:$0xf]
      %v292 = vld [vmem:[%s1 + $0xfc] sm:$0xf]
      %v293 = vld [vmem:[%s1 + $0x100] sm:$0xf]
      %v294 = vld [vmem:[%s1 + $0x104] sm:$0xf]
      %v295 = vld [vmem:[%s1 + $0x108] sm:$0xf]
      %v296 = vld [vmem:[%s1 + $0x10c] sm:$0xf]
      %v297 = vld [vmem:[%s1 + $0x110] sm:$0xf]
      %v298 = vld [vmem:[%s1 + $0x114] sm:$0xf]
      %v299 = vld [vmem:[%s1 + $0x118] sm:$0xf]
      %v300 = vld [vmem:[%s1 + $0x11c] sm:$0xf]
      %v301 = vld [vmem:[%s1 + $0x120] sm:$0xf]
      %v302 = vld [vmem:[%s1 + $0x124] sm:$0xf]
      %v303 = vld [vmem:[%s1 + $0x128] sm:$0xf]
      %v304 = vld [vmem:[%s1 + $0x12c] sm:$0xf]
      %v305 = vld [vmem:[%s1 + $0x130] sm:$0xf]
      %v306 = vld [vmem:[%s1 + $0x134] sm:$0xf]
      %v307 = vld [vmem:[%s1 + $0x138] sm:$0xf]
      %v308 = vld [vmem:[%s1 + $0x13c] sm:$0xf]
      %v309 = vld [vmem:[%s1 + $0x140] sm:$0xf]
      %v310 = vld [vmem:[%s1 + $0x144] sm:$0xf]
      %v311 = vld [vmem:[%s1 + $0x148] sm:$0xf]
      %v312 = vld [vmem:[%s1 + $0x14c] sm:$0xf]
      %v313 = vld [vmem:[%s1 + $0x150] sm:$0xf]
      %v314 = vld [vmem:[%s1 + $0x154] sm:$0xf]
      %v315 = vld [vmem:[%s1 + $0x158] sm:$0xf]
      %v316 = vld [vmem:[%s1 + $0x15c] sm:$0xf]
      %v317 = vld [vmem:[%s1 + $0x160] sm:$0xf]
      %v318 = vld [vmem:[%s1 + $0x164] sm:$0xf]
      %v319 = vld [vmem:[%s1 + $0x168] sm:$0xf]
      %v320 = vld [vmem:[%s1 + $0x16c] sm:$0xf]
      %v321 = vld [vmem:[%s1 + $0x170] sm:$0xf]
      %v322 = vld [vmem:[%s1 + $0x174] sm:$0xf]
      %v323 = vld [vmem:[%s1 + $0x178] sm:$0xf]
      %v324 = vld [vmem:[%s1 + $0x17c] sm:$0xf]
      %v325 = vld [vmem:[%s1 + $0x180] sm:$0xf]
      %v326 = vld [vmem:[%s1 + $0x184] sm:$0xf]
      %v327 = vld [vmem:[%s1 + $0x188] sm:$0xf]
      %v328 = vld [vmem:[%s1 + $0x18c] sm:$0xf]
      %v329 = vld [vmem:[%s1 + $0x190] sm:$0xf]
      %v330 = vld [vmem:[%s1 + $0x194] sm:$0xf]
      %v331 = vld [vmem:[%s1 + $0x198] sm:$0xf]
      %v332 = vld [vmem:[%s1 + $0x19c] sm:$0xf]
      %v333 = vld [vmem:[%s1 + $0x1a0] sm:$0xf]
      %v334 = vld [vmem:[%s1 + $0x1a4] sm:$0xf]
      %v335 = vld [vmem:[%s1 + $0x1a8] sm:$0xf]
      %v336 = vld [vmem:[%s1 + $0x1ac] sm:$0xf]
      %v337 = vld [vmem:[%s1 + $0x1b0] sm:$0xf]
      %v338 = vld [vmem:[%s1 + $0x1b4] sm:$0xf]
      %v339 = vld [vmem:[%s1 + $0x1b8] sm:$0xf]
      %v340 = vld [vmem:[%s1 + $0x1bc] sm:$0xf]
      %v341 = vld [vmem:[%s1 + $0x1c0] sm:$0xf]
      %v342 = vld [vmem:[%s1 + $0x1c4] sm:$0xf]
      %v343 = vld [vmem:[%s1 + $0x1c8] sm:$0xf]
      %v344 = vld [vmem:[%s1 + $0x1cc] sm:$0xf]
      %v345 = vld [vmem:[%s1 + $0x1d0] sm:$0xf]
      %v346 = vld [vmem:[%s1 + $0x1d4] sm:$0xf]
      %v347 = vld [vmem:[%s1 + $0x1d8] sm:$0xf]
      %v348 = vld [vmem:[%s1 + $0x1dc] sm:$0xf]
      %v349 = vld [vmem:[%s1 + $0x1e0] sm:$0xf]
      %v350 = vld [vmem:[%s1 + $0x1e4] sm:$0xf]
      %v351 = vld [vmem:[%s1 + $0x1e8] sm:$0xf]
      %v352 = vld [vmem:[%s1 + $0x1ec] sm:$0xf]
      %v353 = vld [vmem:[%s1 + $0x1f0] sm:$0xf]
      %v354 = vld [vmem:[%s1 + $0x1f4] sm:$0xf]
      %v355 = vld [vmem:[%s1 + $0x1f8] sm:$0xf]
      %v356 = vld [vmem:[%s1 + $0x1fc] sm:$0xf]
      %v357 = vld [vmem:[%s1 + $0x200] sm:$0xf]
      %v358 = vld [vmem:[%s1 + $0x204] sm:$0xf]
      %v359 = vld [vmem:[%s1 + $0x208] sm:$0xf]
      %v360 = vld [vmem:[%s1 + $0x20c] sm:$0xf]
      %v361 = vld [vmem:[%s1 + $0x210] sm:$0xf]
      %v362 = vld [vmem:[%s1 + $0x214] sm:$0xf]
      %v363 = vld [vmem:[%s1 + $0x218] sm:$0xf]
      %v364 = vld [vmem:[%s1 + $0x21c] sm:$0xf]
      %v365 = vld [vmem:[%s1 + $0x220] sm:$0xf]
      %v366 = vld [vmem:[%s1 + $0x224] sm:$0xf]
      %v367 = vld [vmem:[%s1 + $0x228] sm:$0xf]
      %v368 = vld [vmem:[%s1 + $0x22c] sm:$0xf]
      %v369 = vld [vmem:[%s1 + $0x230] sm:$0xf]
      %v370 = vld [vmem:[%s1 + $0x234] sm:$0xf]
      %v371 = vld [vmem:[%s1 + $0x238] sm:$0xf]
      %v372 = vld [vmem:[%s1 + $0x23c] sm:$0xf]
      %v413 = vunpack.c.l.b16 %v189
      %v414 = vunpack.c.h.b16 %v189
      %v415 = vunpack.c.l.b16 %v190
      %v416 = vunpack.c.h.b16 %v190
      %v417 = vunpack.c.l.b16 %v191
      %v418 = vunpack.c.h.b16 %v191
      %v419 = vunpack.c.l.b16 %v192
      %v420 = vunpack.c.h.b16 %v192
      %v421 = vunpack.c.l.b16 %v193
      %v422 = vunpack.c.l.b16 %v194
      %v423 = vunpack.c.h.b16 %v194
      %v424 = vunpack.c.l.b16 %v195
      %v425 = vunpack.c.h.b16 %v195
      %v426 = vunpack.c.l.b16 %v196
      %v427 = vunpack.c.h.b16 %v196
      %v428 = vunpack.c.l.b16 %v197
      %v429 = vunpack.c.h.b16 %v197
      %v430 = vunpack.c.l.b16 %v198
      %v431 = vunpack.c.l.b16 %v199
      %v432 = vunpack.c.h.b16 %v199
      %v433 = vunpack.c.l.b16 %v200
      %v434 = vunpack.c.h.b16 %v200
      %v435 = vunpack.c.l.b16 %v201
      %v436 = vunpack.c.h.b16 %v201
      %v437 = vunpack.c.l.b16 %v202
      %v438 = vunpack.c.h.b16 %v202
      %v439 = vunpack.c.l.b16 %v203
      %v440 = vunpack.c.l.b16 %v204
      %v441 = vunpack.c.h.b16 %v204
      %v442 = vunpack.c.l.b16 %v205
      %v443 = vunpack.c.h.b16 %v205
      %v444 = vunpack.c.l.b16 %v206
      %v445 = vunpack.c.h.b16 %v206
      %v446 = vunpack.c.l.b16 %v207
      %v447 = vunpack.c.h.b16 %v207
      %v448 = vunpack.c.l.b16 %v208
      %v449 = vunpack.c.l.b16 %v209
      %v450 = vunpack.c.h.b16 %v209
      %v451 = vunpack.c.l.b16 %v210
      %v452 = vunpack.c.h.b16 %v210
      %v453 = vunpack.c.l.b16 %v211
      %v454 = vunpack.c.h.b16 %v211
      %v455 = vunpack.c.l.b16 %v212
      %v456 = vunpack.c.h.b16 %v212
      %v457 = vunpack.c.l.b16 %v213
      %v458 = vunpack.c.l.b16 %v214
      %v459 = vunpack.c.h.b16 %v214
      %v460 = vunpack.c.l.b16 %v215
      %v461 = vunpack.c.h.b16 %v215
      %v462 = vunpack.c.l.b16 %v216
      %v463 = vunpack.c.h.b16 %v216
      %v464 = vunpack.c.l.b16 %v217
      %v465 = vunpack.c.h.b16 %v217
      %v466 = vunpack.c.l.b16 %v218
      %v467 = vunpack.c.l.b16 %v219
      %v468 = vunpack.c.h.b16 %v219
      %v469 = vunpack.c.l.b16 %v220
      %v470 = vunpack.c.h.b16 %v220
      %v471 = vunpack.c.l.b16 %v221
      %v472 = vunpack.c.h.b16 %v221
      %v473 = vunpack.c.l.b16 %v222
      %v474 = vunpack.c.h.b16 %v222
      %v475 = vunpack.c.l.b16 %v223
      %v476 = vunpack.c.l.b16 %v224
      %v477 = vunpack.c.h.b16 %v224
      %v478 = vunpack.c.l.b16 %v225
      %v479 = vunpack.c.h.b16 %v225
      %v480 = vunpack.c.l.b16 %v226
      %v481 = vunpack.c.h.b16 %v226
      %v482 = vunpack.c.l.b16 %v227
      %v483 = vunpack.c.h.b16 %v227
      %v484 = vunpack.c.l.b16 %v228
      %v485 = vpack.c.b16 %v422, %v413
      %v486 = vpack.c.b16 %v423, %v414
      %v487 = vpack.c.b16 %v424, %v415
      %v488 = vpack.c.b16 %v425, %v416
      %v489 = vpack.c.b16 %v426, %v417
      %v490 = vpack.c.b16 %v427, %v418
      %v491 = vpack.c.b16 %v428, %v419
      %v492 = vpack.c.b16 %v429, %v420
      %v493 = vpack.c.b16 %v430, %v421
      %v494 = vpack.c.b16 %v440, %v431
      %v495 = vpack.c.b16 %v441, %v432
      %v496 = vpack.c.b16 %v442, %v433
      %v497 = vpack.c.b16 %v443, %v434
      %v498 = vpack.c.b16 %v444, %v435
      %v499 = vpack.c.b16 %v445, %v436
      %v500 = vpack.c.b16 %v446, %v437
      %v501 = vpack.c.b16 %v447, %v438
      %v502 = vpack.c.b16 %v448, %v439
      %v503 = vpack.c.b16 %v458, %v449
      %v504 = vpack.c.b16 %v459, %v450
      %v505 = vpack.c.b16 %v460, %v451
      %v506 = vpack.c.b16 %v461, %v452
      %v507 = vpack.c.b16 %v462, %v453
      %v508 = vpack.c.b16 %v463, %v454
      %v509 = vpack.c.b16 %v464, %v455
      %v510 = vpack.c.b16 %v465, %v456
      %v511 = vpack.c.b16 %v466, %v457
      %v512 = vpack.c.b16 %v476, %v467
      %v513 = vpack.c.b16 %v477, %v468
      %v514 = vpack.c.b16 %v478, %v469
      %v515 = vpack.c.b16 %v479, %v470
      %v516 = vpack.c.b16 %v480, %v471
      %v517 = vpack.c.b16 %v481, %v472
      %v518 = vpack.c.b16 %v482, %v473
      %v519 = vpack.c.b16 %v483, %v474
      %v520 = vpack.c.b16 %v484, %v475
      %v701 = vunpack.c.l.b16 %v229
      %v702 = vunpack.c.l.b16 %v230
      %v703 = vunpack.c.l.b16 %v231
      %v704 = vunpack.c.l.b16 %v232
      %v705 = vunpack.c.l.b16 %v233
      %v706 = vunpack.c.l.b16 %v234
      %v707 = vunpack.c.l.b16 %v235
      %v708 = vunpack.c.l.b16 %v236
      %v709 = vunpack.c.l.b16 %v237
      %v710 = vunpack.c.l.b16 %v238
      %v711 = vunpack.c.l.b16 %v239
      %v712 = vunpack.c.l.b16 %v240
      %v713 = vunpack.c.l.b16 %v241
      %v714 = vunpack.c.l.b16 %v242
      %v715 = vunpack.c.l.b16 %v243
      %v716 = vunpack.c.l.b16 %v244
      %v717 = vunpack.c.l.b16 %v245
      %v718 = vunpack.c.l.b16 %v246
      %v719 = vunpack.c.l.b16 %v247
      %v720 = vunpack.c.l.b16 %v248
      %v721 = vunpack.c.l.b16 %v249
      %v722 = vunpack.c.l.b16 %v250
      %v723 = vunpack.c.l.b16 %v251
      %v724 = vunpack.c.l.b16 %v252
      %v725 = vunpack.c.l.b16 %v253
      %v726 = vunpack.c.l.b16 %v254
      %v727 = vunpack.c.l.b16 %v255
      %v728 = vunpack.c.l.b16 %v256
      %v729 = vunpack.c.l.b16 %v257
      %v730 = vunpack.c.l.b16 %v258
      %v731 = vunpack.c.l.b16 %v259
      %v732 = vunpack.c.l.b16 %v260
      %v733 = vunpack.c.l.b16 %v261
      %v734 = vunpack.c.l.b16 %v262
      %v735 = vunpack.c.l.b16 %v263
      %v736 = vunpack.c.l.b16 %v264
      %v737 = vunpack.c.l.b16 %v265
      %v738 = vunpack.c.l.b16 %v266
      %v739 = vunpack.c.l.b16 %v267
      %v740 = vunpack.c.l.b16 %v268
      %v741 = vunpack.c.l.b16 %v269
      %v742 = vunpack.c.l.b16 %v270
      %v743 = vunpack.c.l.b16 %v271
      %v744 = vunpack.c.l.b16 %v272
      %v745 = vunpack.c.l.b16 %v273
      %v746 = vunpack.c.l.b16 %v274
      %v747 = vunpack.c.l.b16 %v275
      %v748 = vunpack.c.l.b16 %v276
      %v749 = vunpack.c.l.b16 %v277
      %v750 = vunpack.c.l.b16 %v278
      %v751 = vunpack.c.l.b16 %v279
      %v752 = vunpack.c.l.b16 %v280
      %v753 = vunpack.c.l.b16 %v281
      %v754 = vunpack.c.l.b16 %v282
      %v755 = vunpack.c.l.b16 %v283
      %v756 = vunpack.c.l.b16 %v284
      %v757 = vunpack.c.l.b16 %v285
      %v758 = vunpack.c.l.b16 %v286
      %v759 = vunpack.c.l.b16 %v287
      %v760 = vunpack.c.l.b16 %v288
      %v761 = vunpack.c.l.b16 %v289
      %v762 = vunpack.c.l.b16 %v290
      %v763 = vunpack.c.l.b16 %v291
      %v764 = vunpack.c.l.b16 %v292
      %v765 = vunpack.c.l.b16 %v293
      %v766 = vunpack.c.l.b16 %v294
      %v767 = vunpack.c.l.b16 %v295
      %v768 = vunpack.c.l.b16 %v296
      %v769 = vunpack.c.l.b16 %v297
      %v770 = vunpack.c.l.b16 %v298
      %v771 = vunpack.c.l.b16 %v299
      %v772 = vunpack.c.l.b16 %v300
      %v773 = vunpack.c.l.b16 %v301
      %v774 = vunpack.c.l.b16 %v302
      %v775 = vunpack.c.l.b16 %v303
      %v776 = vunpack.c.l.b16 %v304
      %v777 = vunpack.c.l.b16 %v305
      %v778 = vunpack.c.l.b16 %v306
      %v779 = vunpack.c.l.b16 %v307
      %v780 = vunpack.c.l.b16 %v308
      %v781 = vunpack.c.l.b16 %v309
      %v782 = vunpack.c.l.b16 %v310
      %v783 = vunpack.c.l.b16 %v311
      %v784 = vunpack.c.l.b16 %v312
      %v785 = vunpack.c.l.b16 %v313
      %v786 = vunpack.c.l.b16 %v314
      %v787 = vunpack.c.l.b16 %v315
      %v788 = vunpack.c.l.b16 %v316
      %v789 = vunpack.c.l.b16 %v317
      %v790 = vunpack.c.l.b16 %v318
      %v791 = vunpack.c.l.b16 %v319
      %v792 = vunpack.c.l.b16 %v320
      %v793 = vunpack.c.l.b16 %v321
      %v794 = vunpack.c.l.b16 %v322
      %v795 = vunpack.c.l.b16 %v323
      %v796 = vunpack.c.l.b16 %v324
      %v797 = vunpack.c.l.b16 %v325
      %v798 = vunpack.c.l.b16 %v326
      %v799 = vunpack.c.l.b16 %v327
      %v800 = vunpack.c.l.b16 %v328
      %v801 = vunpack.c.l.b16 %v329
      %v802 = vunpack.c.l.b16 %v330
      %v803 = vunpack.c.l.b16 %v331
      %v804 = vunpack.c.l.b16 %v332
      %v805 = vunpack.c.l.b16 %v333
      %v806 = vunpack.c.l.b16 %v334
      %v807 = vunpack.c.l.b16 %v335
      %v808 = vunpack.c.l.b16 %v336
      %v809 = vunpack.c.l.b16 %v337
      %v810 = vunpack.c.l.b16 %v338
      %v811 = vunpack.c.l.b16 %v339
      %v812 = vunpack.c.l.b16 %v340
      %v813 = vunpack.c.l.b16 %v341
      %v814 = vunpack.c.l.b16 %v342
      %v815 = vunpack.c.l.b16 %v343
      %v816 = vunpack.c.l.b16 %v344
      %v817 = vunpack.c.l.b16 %v345
      %v818 = vunpack.c.l.b16 %v346
      %v819 = vunpack.c.l.b16 %v347
      %v820 = vunpack.c.l.b16 %v348
      %v821 = vunpack.c.l.b16 %v349
      %v822 = vunpack.c.l.b16 %v350
      %v823 = vunpack.c.l.b16 %v351
      %v824 = vunpack.c.l.b16 %v352
      %v825 = vunpack.c.l.b16 %v353
      %v826 = vunpack.c.l.b16 %v354
      %v827 = vunpack.c.l.b16 %v355
      %v828 = vunpack.c.l.b16 %v356
      %v829 = vunpack.c.l.b16 %v357
      %v830 = vunpack.c.l.b16 %v358
      %v831 = vunpack.c.l.b16 %v359
      %v832 = vunpack.c.l.b16 %v360
      %v833 = vunpack.c.l.b16 %v361
      %v834 = vunpack.c.l.b16 %v362
      %v835 = vunpack.c.l.b16 %v363
      %v836 = vunpack.c.l.b16 %v364
      %v837 = vunpack.c.l.b16 %v365
      %v838 = vunpack.c.l.b16 %v366
      %v839 = vunpack.c.l.b16 %v367
      %v840 = vunpack.c.l.b16 %v368
      %v841 = vunpack.c.l.b16 %v369
      %v842 = vunpack.c.l.b16 %v370
      %v843 = vunpack.c.l.b16 %v371
      %v844 = vunpack.c.l.b16 %v372
      %v845 = vpack.c.b16 %v702, %v701
      %v846 = vpack.c.b16 %v704, %v703
      %v847 = vpack.c.b16 %v706, %v705
      %v848 = vpack.c.b16 %v708, %v707
      %v849 = vpack.c.b16 %v710, %v709
      %v850 = vpack.c.b16 %v712, %v711
      %v851 = vpack.c.b16 %v714, %v713
      %v852 = vpack.c.b16 %v716, %v715
      %v853 = vpack.c.b16 %v718, %v717
      %v854 = vpack.c.b16 %v720, %v719
      %v855 = vpack.c.b16 %v722, %v721
      %v856 = vpack.c.b16 %v724, %v723
      %v857 = vpack.c.b16 %v726, %v725
      %v858 = vpack.c.b16 %v728, %v727
      %v859 = vpack.c.b16 %v730, %v729
      %v860 = vpack.c.b16 %v732, %v731
      %v861 = vpack.c.b16 %v734, %v733
      %v862 = vpack.c.b16 %v736, %v735
      %v863 = vpack.c.b16 %v738, %v737
      %v864 = vpack.c.b16 %v740, %v739
      %v865 = vpack.c.b16 %v742, %v741
      %v866 = vpack.c.b16 %v744, %v743
      %v867 = vpack.c.b16 %v746, %v745
      %v868 = vpack.c.b16 %v748, %v747
      %v869 = vpack.c.b16 %v750, %v749
      %v870 = vpack.c.b16 %v752, %v751
      %v871 = vpack.c.b16 %v754, %v753
      %v872 = vpack.c.b16 %v756, %v755
      %v873 = vpack.c.b16 %v758, %v757
      %v874 = vpack.c.b16 %v760, %v759
      %v875 = vpack.c.b16 %v762, %v761
      %v876 = vpack.c.b16 %v764, %v763
      %v877 = vpack.c.b16 %v766, %v765
      %v878 = vpack.c.b16 %v768, %v767
      %v879 = vpack.c.b16 %v770, %v769
      %v880 = vpack.c.b16 %v772, %v771
      %v881 = vpack.c.b16 %v774, %v773
      %v882 = vpack.c.b16 %v776, %v775
      %v883 = vpack.c.b16 %v778, %v777
      %v884 = vpack.c.b16 %v780, %v779
      %v885 = vpack.c.b16 %v782, %v781
      %v886 = vpack.c.b16 %v784, %v783
      %v887 = vpack.c.b16 %v786, %v785
      %v888 = vpack.c.b16 %v788, %v787
      %v889 = vpack.c.b16 %v790, %v789
      %v890 = vpack.c.b16 %v792, %v791
      %v891 = vpack.c.b16 %v794, %v793
      %v892 = vpack.c.b16 %v796, %v795
      %v893 = vpack.c.b16 %v798, %v797
      %v894 = vpack.c.b16 %v800, %v799
      %v895 = vpack.c.b16 %v802, %v801
      %v896 = vpack.c.b16 %v804, %v803
      %v897 = vpack.c.b16 %v806, %v805
      %v898 = vpack.c.b16 %v808, %v807
      %v899 = vpack.c.b16 %v810, %v809
      %v900 = vpack.c.b16 %v812, %v811
      %v901 = vpack.c.b16 %v814, %v813
      %v902 = vpack.c.b16 %v816, %v815
      %v903 = vpack.c.b16 %v818, %v817
      %v904 = vpack.c.b16 %v820, %v819
      %v905 = vpack.c.b16 %v822, %v821
      %v906 = vpack.c.b16 %v824, %v823
      %v907 = vpack.c.b16 %v826, %v825
      %v908 = vpack.c.b16 %v828, %v827
      %v909 = vpack.c.b16 %v830, %v829
      %v910 = vpack.c.b16 %v832, %v831
      %v911 = vpack.c.b16 %v834, %v833
      %v912 = vpack.c.b16 %v836, %v835
      %v913 = vpack.c.b16 %v838, %v837
      %v914 = vpack.c.b16 %v840, %v839
      %v915 = vpack.c.b16 %v842, %v841
      %v916 = vpack.c.b16 %v844, %v843
      %989 = vmatprep.subr.bf16.mxu0 0
      %990 = vmatpush1.bf16.msra.mxu0 %v845
      %991 = vmatprep.subr.bf16.mxu0 0
      %992 = vmatpush1.bf16.msra.mxu0 %v846
      %993 = vmatprep.subr.bf16.mxu0 0
      %994 = vmatpush1.bf16.msra.mxu0 %v847
      %995 = vmatprep.subr.bf16.mxu0 0
      %996 = vmatpush1.bf16.msra.mxu0 %v848
      %997 = vmatprep.subr.bf16.mxu0 0
      %998 = vmatpush1.bf16.msra.mxu0 %v849
      %999 = vmatprep.subr.bf16.mxu0 0
      %1000 = vmatpush1.bf16.msra.mxu0 %v850
      %1001 = vmatprep.subr.bf16.mxu0 0
      %1002 = vmatpush1.bf16.msra.mxu0 %v851
      %1003 = vmatprep.subr.bf16.mxu0 0
      %1004 = vmatpush1.bf16.msra.mxu0 %v852
      %1005 = vmatprep.subr.bf16.mxu0 0
      %1006 = vmatpush1.bf16.msra.mxu0 %v853
      %1007 = vmatprep.subr.bf16.mxu0 0
      %1008 = vmatpush1.bf16.msra.mxu0 %v854
      %1009 = vmatprep.subr.bf16.mxu0 0
      %1010 = vmatpush1.bf16.msra.mxu0 %v855
      %1011 = vmatprep.subr.bf16.mxu0 0
      %1012 = vmatpush1.bf16.msra.mxu0 %v856
      %1013 = vmatprep.subr.bf16.mxu0 0
      %1014 = vmatpush1.bf16.msra.mxu0 %v857
      %1015 = vmatprep.subr.bf16.mxu0 0
      %1016 = vmatpush1.bf16.msra.mxu0 %v858
      %1017 = vmatprep.subr.bf16.mxu0 0
      %1018 = vmatpush1.bf16.msra.mxu0 %v859
      %1019 = vmatprep.subr.bf16.mxu0 0
      %1020 = vmatpush1.bf16.msra.mxu0 %v860
      %1021 = vmatprep.mubr.bf16.mxu0 %v486
      %1022 = vmatmul.mubr.bf16.gmra.mrb[0].mxu0 %v485
      %v1023 = vpop.f32.mrb[0].mxu0
      %v1024 = vadd.f32 0.0, %v1023
      %v1025 = vpop.f32.mrb[0].mxu0
      %v1026 = vpop.f32.mrb[0].mxu0
      %v1027 = vadd.f32 0.0, %v1026
      %v1028 = vpop.f32.mrb[0].mxu0
      %1029 = vmatprep.mubr.bf16.mxu0 %v495
      %1030 = vmatmul.mubr.bf16.gmra.mrb[0].mxu0 %v494
      %v1031 = vpop.f32.mrb[0].mxu0
      %v1032 = vadd.f32 0.0, %v1031
      %v1033 = vpop.f32.mrb[0].mxu0
      %v1034 = vpop.f32.mrb[0].mxu0
      %v1035 = vadd.f32 0.0, %v1034
      %v1036 = vpop.f32.mrb[0].mxu0
      %1037 = vmatprep.mubr.bf16.mxu0 %v504
      %1038 = vmatmul.mubr.bf16.gmra.mrb[0].mxu0 %v503
      %v1039 = vpop.f32.mrb[0].mxu0
      %v1040 = vadd.f32 0.0, %v1039
      %v1041 = vpop.f32.mrb[0].mxu0
      %v1042 = vpop.f32.mrb[0].mxu0
      %v1043 = vadd.f32 0.0, %v1042
      %v1044 = vpop.f32.mrb[0].mxu0
      %1045 = vmatprep.mubr.bf16.mxu0 %v513
      %1046 = vmatmul.mubr.bf16.gmra.mrb[0].mxu0 %v512
      %v1047 = vpop.f32.mrb[0].mxu0
      %v1048 = vadd.f32 0.0, %v1047
      %v1049 = vpop.f32.mrb[0].mxu0
      %v1050 = vpop.f32.mrb[0].mxu0
      %v1051 = vadd.f32 0.0, %v1050
      %v1052 = vpop.f32.mrb[0].mxu0
      %1053 = vdwg.mxu0
      %1054 = vmatprep.subr.bf16.mxu0 0
      %1055 = vmatpush1.bf16.msra.mxu0 %v861
      %1056 = vmatprep.subr.bf16.mxu0 0
      %1057 = vmatpush1.bf16.msra.mxu0 %v862
      %1058 = vmatprep.subr.bf16.mxu0 0
      %1059 = vmatpush1.bf16.msra.mxu0 %v863
      %1060 = vmatprep.subr.bf16.mxu0 0
      %1061 = vmatpush1.bf16.msra.mxu0 %v864
      %1062 = vmatprep.subr.bf16.mxu0 0
      %1063 = vmatpush1.bf16.msra.mxu0 %v865
      %1064 = vmatprep.subr.bf16.mxu0 0
      %1065 = vmatpush1.bf16.msra.mxu0 %v866
      %1066 = vmatprep.subr.bf16.mxu0 0
      %1067 = vmatpush1.bf16.msra.mxu0 %v867
      %1068 = vmatprep.subr.bf16.mxu0 0
      %1069 = vmatpush1.bf16.msra.mxu0 %v868
      %1070 = vmatprep.subr.bf16.mxu0 0
      %1071 = vmatpush1.bf16.msra.mxu0 %v869
      %1072 = vmatprep.subr.bf16.mxu0 0
      %1073 = vmatpush1.bf16.msra.mxu0 %v870
      %1074 = vmatprep.subr.bf16.mxu0 0
      %1075 = vmatpush1.bf16.msra.mxu0 %v871
      %1076 = vmatprep.subr.bf16.mxu0 0
      %1077 = vmatpush1.bf16.msra.mxu0 %v872
      %1078 = vmatprep.subr.bf16.mxu0 0
      %1079 = vmatpush1.bf16.msra.mxu0 %v873
      %1080 = vmatprep.subr.bf16.mxu0 0
      %1081 = vmatpush1.bf16.msra.mxu0 %v874
      %1082 = vmatprep.subr.bf16.mxu0 0
      %1083 = vmatpush1.bf16.msra.mxu0 %v875
      %1084 = vmatprep.subr.bf16.mxu0 0
      %1085 = vmatpush1.bf16.msra.mxu0 %v876
      %1086 = vmatprep.mubr.bf16.mxu0 %v488
      %1087 = vmatmul.mubr.bf16.gmra.mrb[0].mxu0 %v487
      %v1088 = vpop.f32.mrb[0].mxu0
      %v1089 = vadd.f32 %v1024, %v1088
      %v1090 = vpop.f32.mrb[0].mxu0
      %v1091 = vpop.f32.mrb[0].mxu0
      %v1092 = vadd.f32 %v1027, %v1091
      %v1093 = vpop.f32.mrb[0].mxu0
      %1094 = vmatprep.mubr.bf16.mxu0 %v497
      %1095 = vmatmul.mubr.bf16.gmra.mrb[0].mxu0 %v496
      %v1096 = vpop.f32.mrb[0].mxu0
      %v1097 = vadd.f32 %v1032, %v1096
      %v1098 = vpop.f32.mrb[0].mxu0
      %v1099 = vpop.f32.mrb[0].mxu0
      %v1100 = vadd.f32 %v1035, %v1099
      %v1101 = vpop.f32.mrb[0].mxu0
      %1102 = vmatprep.mubr.bf16.mxu0 %v506
      %1103 = vmatmul.mubr.bf16.gmra.mrb[0].mxu0 %v505
      %v1104 = vpop.f32.mrb[0].mxu0
      %v1105 = vadd.f32 %v1040, %v1104
      %v1106 = vpop.f32.mrb[0].mxu0
      %v1107 = vpop.f32.mrb[0].mxu0
      %v1108 = vadd.f32 %v1043, %v1107
      %v1109 = vpop.f32.mrb[0].mxu0
      %1110 = vmatprep.mubr.bf16.mxu0 %v515
      %1111 = vmatmul.mubr.bf16.gmra.mrb[0].mxu0 %v514
      %v1112 = vpop.f32.mrb[0].mxu0
      %v1113 = vadd.f32 %v1048, %v1112
      %v1114 = vpop.f32.mrb[0].mxu0
      %v1115 = vpop.f32.mrb[0].mxu0
      %v1116 = vadd.f32 %v1051, %v1115
      %v1117 = vpop.f32.mrb[0].mxu0
      %1118 = vdwg.mxu0
      %1119 = vmatprep.subr.bf16.mxu0 0
      %1120 = vmatpush1.bf16.msra.mxu0 %v877
      %1121 = vmatprep.subr.bf16.mxu0 0
      %1122 = vmatpush1.bf16.msra.mxu0 %v878
      %1123 = vmatprep.subr.bf16.mxu0 0
      %1124 = vmatpush1.bf16.msra.mxu0 %v879
      %1125 = vmatprep.subr.bf16.mxu0 0
      %1126 = vmatpush1.bf16.msra.mxu0 %v880
      %1127 = vmatprep.subr.bf16.mxu0 0
      %1128 = vmatpush1.bf16.msra.mxu0 %v881
      %1129 = vmatprep.subr.bf16.mxu0 0
      %1130 = vmatpush1.bf16.msra.mxu0 %v882
      %1131 = vmatprep.subr.bf16.mxu0 0
      %1132 = vmatpush1.bf16.msra.mxu0 %v883
      %1133 = vmatprep.subr.bf16.mxu0 0
      %1134 = vmatpush1.bf16.msra.mxu0 %v884
      %1135 = vmatprep.subr.bf16.mxu0 0
      %1136 = vmatpush1.bf16.msra.mxu0 %v885
      %1137 = vmatprep.subr.bf16.mxu0 0
      %1138 = vmatpush1.bf16.msra.mxu0 %v886
      %1139 = vmatprep.subr.bf16.mxu0 0
      %1140 = vmatpush1.bf16.msra.mxu0 %v887
      %1141 = vmatprep.subr.bf16.mxu0 0
      %1142 = vmatpush1.bf16.msra.mxu0 %v888
      %1143 = vmatprep.subr.bf16.mxu0 0
      %1144 = vmatpush1.bf16.msra.mxu0 %v889
      %1145 = vmatprep.subr.bf16.mxu0 0
      %1146 = vmatpush1.bf16.msra.mxu0 %v890
      %1147 = vmatprep.subr.bf16.mxu0 0
      %1148 = vmatpush1.bf16.msra.mxu0 %v891
      %1149 = vmatprep.subr.bf16.mxu0 0
      %1150 = vmatpush1.bf16.msra.mxu0 %v892
      %1151 = vmatprep.mubr.bf16.mxu0 %v490
      %1152 = vmatmul.mubr.bf16.gmra.mrb[0].mxu0 %v489
      %v1153 = vpop.f32.mrb[0].mxu0
      %v1154 = vadd.f32 %v1089, %v1153
      %v1155 = vpop.f32.mrb[0].mxu0
      %v1156 = vpop.f32.mrb[0].mxu0
      %v1157 = vadd.f32 %v1092, %v1156
      %v1158 = vpop.f32.mrb[0].mxu0
      %1159 = vmatprep.mubr.bf16.mxu0 %v499
      %1160 = vmatmul.mubr.bf16.gmra.mrb[0].mxu0 %v498
      %v1161 = vpop.f32.mrb[0].mxu0
      %v1162 = vadd.f32 %v1097, %v1161
      %v1163 = vpop.f32.mrb[0].mxu0
      %v1164 = vpop.f32.mrb[0].mxu0
      %v1165 = vadd.f32 %v1100, %v1164
      %v1166 = vpop.f32.mrb[0].mxu0
      %1167 = vmatprep.mubr.bf16.mxu0 %v508
      %1168 = vmatmul.mubr.bf16.gmra.mrb[0].mxu0 %v507
      %v1169 = vpop.f32.mrb[0].mxu0
      %v1170 = vadd.f32 %v1105, %v1169
      %v1171 = vpop.f32.mrb[0].mxu0
      %v1172 = vpop.f32.mrb[0].mxu0
      %v1173 = vadd.f32 %v1108, %v1172
      %v1174 = vpop.f32.mrb[0].mxu0
      %1175 = vmatprep.mubr.bf16.mxu0 %v517
      %1176 = vmatmul.mubr.bf16.gmra.mrb[0].mxu0 %v516
      %v1177 = vpop.f32.mrb[0].mxu0
      %v1178 = vadd.f32 %v1113, %v1177
      %v1179 = vpop.f32.mrb[0].mxu0
      %v1180 = vpop.f32.mrb[0].mxu0
      %v1181 = vadd.f32 %v1116, %v1180
      %v1182 = vpop.f32.mrb[0].mxu0
      %1183 = vdwg.mxu0
      %1184 = vmatprep.subr.bf16.mxu0 0
      %1185 = vmatpush1.bf16.msra.mxu0 %v893
      %1186 = vmatprep.subr.bf16.mxu0 0
      %1187 = vmatpush1.bf16.msra.mxu0 %v894
      %1188 = vmatprep.subr.bf16.mxu0 0
      %1189 = vmatpush1.bf16.msra.mxu0 %v895
      %1190 = vmatprep.subr.bf16.mxu0 0
      %1191 = vmatpush1.bf16.msra.mxu0 %v896
      %1192 = vmatprep.subr.bf16.mxu0 0
      %1193 = vmatpush1.bf16.msra.mxu0 %v897
      %1194 = vmatprep.subr.bf16.mxu0 0
      %1195 = vmatpush1.bf16.msra.mxu0 %v898
      %1196 = vmatprep.subr.bf16.mxu0 0
      %1197 = vmatpush1.bf16.msra.mxu0 %v899
      %1198 = vmatprep.subr.bf16.mxu0 0
      %1199 = vmatpush1.bf16.msra.mxu0 %v900
      %1200 = vmatprep.subr.bf16.mxu0 0
      %1201 = vmatpush1.bf16.msra.mxu0 %v901
      %1202 = vmatprep.subr.bf16.mxu0 0
      %1203 = vmatpush1.bf16.msra.mxu0 %v902
      %1204 = vmatprep.subr.bf16.mxu0 0
      %1205 = vmatpush1.bf16.msra.mxu0 %v903
      %1206 = vmatprep.subr.bf16.mxu0 0
      %1207 = vmatpush1.bf16.msra.mxu0 %v904
      %1208 = vmatprep.subr.bf16.mxu0 0
      %1209 = vmatpush1.bf16.msra.mxu0 %v905
      %1210 = vmatprep.subr.bf16.mxu0 0
      %1211 = vmatpush1.bf16.msra.mxu0 %v906
      %1212 = vmatprep.subr.bf16.mxu0 0
      %1213 = vmatpush1.bf16.msra.mxu0 %v907
      %1214 = vmatprep.subr.bf16.mxu0 0
      %1215 = vmatpush1.bf16.msra.mxu0 %v908
      %1216 = vmatprep.mubr.bf16.mxu0 %v492
      %1217 = vmatmul.mubr.bf16.gmra.mrb[0].mxu0 %v491
      %v1218 = vpop.f32.mrb[0].mxu0
      %v1219 = vadd.f32 %v1154, %v1218
      %v1220 = vpop.f32.mrb[0].mxu0
      %v1221 = vpop.f32.mrb[0].mxu0
      %v1222 = vadd.f32 %v1157, %v1221
      %v1223 = vpop.f32.mrb[0].mxu0
      %1224 = vmatprep.mubr.bf16.mxu0 %v501
      %1225 = vmatmul.mubr.bf16.gmra.mrb[0].mxu0 %v500
      %v1226 = vpop.f32.mrb[0].mxu0
      %v1227 = vadd.f32 %v1162, %v1226
      %v1228 = vpop.f32.mrb[0].mxu0
      %v1229 = vpop.f32.mrb[0].mxu0
      %v1230 = vadd.f32 %v1165, %v1229
      %v1231 = vpop.f32.mrb[0].mxu0
      %1232 = vmatprep.mubr.bf16.mxu0 %v510
      %1233 = vmatmul.mubr.bf16.gmra.mrb[0].mxu0 %v509
      %v1234 = vpop.f32.mrb[0].mxu0
      %v1235 = vadd.f32 %v1170, %v1234
      %v1236 = vpop.f32.mrb[0].mxu0
      %v1237 = vpop.f32.mrb[0].mxu0
      %v1238 = vadd.f32 %v1173, %v1237
      %v1239 = vpop.f32.mrb[0].mxu0
      %1240 = vmatprep.mubr.bf16.mxu0 %v519
      %1241 = vmatmul.mubr.bf16.gmra.mrb[0].mxu0 %v518
      %v1242 = vpop.f32.mrb[0].mxu0
      %v1243 = vadd.f32 %v1178, %v1242
      %v1244 = vpop.f32.mrb[0].mxu0
      %v1245 = vpop.f32.mrb[0].mxu0
      %v1246 = vadd.f32 %v1181, %v1245
      %v1247 = vpop.f32.mrb[0].mxu0
      %1248 = vdwg.mxu0
      %1249 = vmatprep.subr.bf16.mxu0 0
      %1250 = vmatpush1.bf16.msra.mxu0 %v909
      %1251 = vmatprep.subr.bf16.mxu0 0
      %1252 = vmatpush1.bf16.msra.mxu0 %v910
      %1253 = vmatprep.subr.bf16.mxu0 0
      %1254 = vmatpush1.bf16.msra.mxu0 %v911
      %1255 = vmatprep.subr.bf16.mxu0 0
      %1256 = vmatpush1.bf16.msra.mxu0 %v912
      %1257 = vmatprep.subr.bf16.mxu0 0
      %1258 = vmatpush1.bf16.msra.mxu0 %v913
      %1259 = vmatprep.subr.bf16.mxu0 0
      %1260 = vmatpush1.bf16.msra.mxu0 %v914
      %1261 = vmatprep.subr.bf16.mxu0 0
      %1262 = vmatpush1.bf16.msra.mxu0 %v915
      %1263 = vmatprep.subr.bf16.mxu0 0
      %1264 = vmatpush1.bf16.msra.mxu0 %v916
      %1265 = vmatprep.subr.bf16.mxu0 0
      %1266 = vmatpush1.bf16.msra.mxu0 0
      %1267 = vmatprep.subr.bf16.mxu0 0
      %1268 = vmatpush1.bf16.msra.mxu0 0
      %1269 = vmatprep.subr.bf16.mxu0 0
      %1270 = vmatpush1.bf16.msra.mxu0 0
      %1271 = vmatprep.subr.bf16.mxu0 0
      %1272 = vmatpush1.bf16.msra.mxu0 0
      %1273 = vmatprep.subr.bf16.mxu0 0
      %1274 = vmatpush1.bf16.msra.mxu0 0
      %1275 = vmatprep.subr.bf16.mxu0 0
      %1276 = vmatpush1.bf16.msra.mxu0 0
      %1277 = vmatprep.subr.bf16.mxu0 0
      %1278 = vmatpush1.bf16.msra.mxu0 0
      %1279 = vmatprep.subr.bf16.mxu0 0
      %1280 = vmatpush1.bf16.msra.mxu0 0
      %1281 = vmatprep.mubr.bf16.mxu0 0
      %1282 = vmatmul.mubr.bf16.gmra.mrb[0].mxu0 %v493
      %v1283 = vpop.f32.mrb[0].mxu0
      %v1284 = vadd.f32 %v1219, %v1283
      %v1285 = vpop.f32.mrb[0].mxu0
      %v1286 = vpop.f32.mrb[0].mxu0
      %v1287 = vadd.f32 %v1222, %v1286
      %v1288 = vpop.f32.mrb[0].mxu0
      %1289 = vmatprep.mubr.bf16.mxu0 0
      %1290 = vmatmul.mubr.bf16.gmra.mrb[0].mxu0 %v502
      %v1291 = vpop.f32.mrb[0].mxu0
      %v1292 = vadd.f32 %v1227, %v1291
      %v1293 = vpop.f32.mrb[0].mxu0
      %v1294 = vpop.f32.mrb[0].mxu0
      %v1295 = vadd.f32 %v1230, %v1294
      %v1296 = vpop.f32.mrb[0].mxu0
      %1297 = vmatprep.mubr.bf16.mxu0 0
      %1298 = vmatmul.mubr.bf16.gmra.mrb[0].mxu0 %v511
      %v1299 = vpop.f32.mrb[0].mxu0
      %v1300 = vadd.f32 %v1235, %v1299
      %v1301 = vpop.f32.mrb[0].mxu0
      %v1302 = vpop.f32.mrb[0].mxu0
      %v1303 = vadd.f32 %v1238, %v1302
      %v1304 = vpop.f32.mrb[0].mxu0
      %1305 = vmatprep.mubr.bf16.mxu0 0
      %1306 = vmatmul.mubr.bf16.gmra.mrb[0].mxu0 %v520
      %v1307 = vpop.f32.mrb[0].mxu0
      %v1308 = vadd.f32 %v1243, %v1307
      %v1309 = vpop.f32.mrb[0].mxu0
      %v1310 = vpop.f32.mrb[0].mxu0
      %v1311 = vadd.f32 %v1246, %v1310
      %v1312 = vpop.f32.mrb[0].mxu0
      %1313 = vdwg.mxu0
      %v1314 = vpack.c.bf16 %v1287, %v1284
      %v1315 = vpack.c.bf16 %v1295, %v1292
      %v1316 = vpack.c.bf16 %v1303, %v1300
      %v1317 = vpack.c.bf16 %v1311, %v1308
      %v1322 = vunpack.c.l.b16 %v1314
      %v1323 = vunpack.c.h.b16 %v1314
      %v1324 = vunpack.c.l.b16 %v1315
      %v1325 = vunpack.c.h.b16 %v1315
      %v1326 = vunpack.c.l.b16 %v1316
      %v1327 = vunpack.c.h.b16 %v1316
      %v1328 = vunpack.c.l.b16 %v1317
      %v1329 = vunpack.c.h.b16 %v1317
      %v1330 = vpack.c.b16 %v1322, %v1322
      %v1331 = vpack.c.b16 %v1323, %v1323
      %v1332 = vpack.c.b16 %v1324, %v1324
      %v1333 = vpack.c.b16 %v1325, %v1325
      %v1334 = vpack.c.b16 %v1326, %v1326
      %v1335 = vpack.c.b16 %v1327, %v1327
      %v1336 = vpack.c.b16 %v1328, %v1328
      %v1337 = vpack.c.b16 %v1329, %v1329
      %1346 = vst [vmem:[%s182] sm:$0xf] %v1330
      %1347 = vst [vmem:[%s182 + $0x4] sm:$0xf] %v1331
      %1348 = vst [vmem:[%s182 + $0x8] sm:$0xf] %v1332
      %1349 = vst [vmem:[%s182 + $0xc] sm:$0xf] %v1333
      %1350 = vst [vmem:[%s182 + $0x10] sm:$0xf] %v1334
      %1351 = vst [vmem:[%s182 + $0x14] sm:$0xf] %v1335
      %1352 = vst [vmem:[%s182 + $0x18] sm:$0xf] %v1336
      %1353 = vst [vmem:[%s182 + $0x1c] sm:$0xf] %v1337
      %v1354 = vadd.f32 %v1284, %v1287
      %v1355 = vadd.f32 %v1354, %v1292
      %v1356 = vadd.f32 %v1355, %v1295
      %v1357 = vadd.f32 %v1356, %v1300
      %v1358 = vadd.f32 %v1357, %v1303
      %v1359 = vadd.f32 %v1358, %v1308
      %v1360 = vadd.f32 %v1359, %v1311
      %v1361 = vrot.slane %v1360, 4
      %v1362 = vadd.f32 %v1360, %v1361
      %v1363 = vrot.slane %v1362, 2
      %v1364 = vadd.f32 %v1362, %v1363
      %v1365 = vrot.slane %v1364, 1
      %v1366 = vadd.f32 %v1364, %v1365
      %v1367 = vmul.f32 %v1284, %v1284
      %v1368 = vmul.f32 %v1287, %v1287
      %v1369 = vmul.f32 %v1292, %v1292
      %v1370 = vmul.f32 %v1295, %v1295
      %v1371 = vmul.f32 %v1300, %v1300
      %v1372 = vmul.f32 %v1303, %v1303
      %v1373 = vmul.f32 %v1308, %v1308
      %v1374 = vmul.f32 %v1311, %v1311
      %v1375 = vadd.f32 %v1367, %v1368
      %v1376 = vadd.f32 %v1375, %v1369
      %v1377 = vadd.f32 %v1376, %v1370
      %v1378 = vadd.f32 %v1377, %v1371
      %v1379 = vadd.f32 %v1378, %v1372
      %v1380 = vadd.f32 %v1379, %v1373
      %v1381 = vadd.f32 %v1380, %v1374
      %v1382 = vrot.slane %v1381, 4
      %v1383 = vadd.f32 %v1381, %v1382
      %v1384 = vrot.slane %v1383, 2
      %v1385 = vadd.f32 %v1383, %v1384
      %v1386 = vrot.slane %v1385, 1
      %v1387 = vadd.f32 %v1385, %v1386
      %vm1388 = vcmask 1040384
      %v1389 = vsel %vm1388, %v1366, %v1387
      %1390 = vst [vmem:[%s187] sm:$0x3] %v1389
      %s1391 = smul.u32 8, %s15
      %p1392 = scmp.lt.s32.totalorder %s1391, 15
      %s1393 = scalar_select %p1392, %s1391, 15
      %s1394 = smul.addr %s1393, 4
      %s1395 = scalar_lea.vmem %s2, %s1394
      %p1396 = scmp.lt.s32.totalorder %s15, 1
      %s1397 = scalar_select %p1396, %s15, 1
      %s1398 = smul.addr %s1397, 2
      %s1399 = scalar_lea.vmem %s3, %s1398
      // Predicated region
      $region29: #{_lambda_.15} parent=27 // pred_check
        %p1400 = pneg %p80
      $region30: #{_lambda_.15} parent=27 // pred_check_branch
        %1402 = sbr.rel (%p1400) target = $region32
      $region31: #{_lambda_.15} parent=27 // pred_region
        %s1403 = smul.u32 8, %s15
      $region32: #{_lambda_.15} parent=27 // pred_fallthru
        _
      // Predicated region
      $region33: #{_lambda_.15} parent=27 // pred_check
        %p1404 = pneg %p106
      $region34: #{_lambda_.15} parent=27 // pred_check_branch
        %1406 = sbr.rel (%p1404) target = $region36
      $region35: #{_lambda_.15} parent=27 // pred_region
        _
      $region36: #{_lambda_.15} parent=27 // pred_fallthru
        _
    $region28: #{_lambda_.15} parent=5 // pred_fallthru
      _
    %p1407 = scmp.le.s32.totalorder 2, %s10
    // Predicated region
    $region37: #{_lambda_.15} parent=5 // pred_check
      %p1408 = pneg %p1407
    $region38: #{_lambda_.15} parent=5 // pred_check_branch
      %1410 = sbr.rel (%p1408) target = $region40
    $region39: #{_lambda_.15} parent=5 // pred_region
      %s1411 = ssub.s32 %s10, 2
      // Predicated region
      $region41: #{_lambda_.15} parent=39 // pred_check
        %p1412 = pneg %p86
      $region42: #{_lambda_.15} parent=39 // pred_check_branch
        %1414 = sbr.rel (%p1412) target = $region44
      $region43: #{_lambda_.15} parent=39 // pred_region
        %s1415 = smul.u32 8, %s16
        %p1416 = scmp.lt.s32.totalorder %s1415, 15
        %s1417 = scalar_select %p1416, %s1415, 15
        %s1418 = smul.addr %s1417, 4
        %s1419 = scalar_lea.vmem %s2, %s1418
      $region44: #{_lambda_.15} parent=39 // pred_fallthru
        _
      // Predicated region
      $region45: #{_lambda_.15} parent=39 // pred_check
        %p1420 = pneg %p112
      $region46: #{_lambda_.15} parent=39 // pred_check_branch
        %1422 = sbr.rel (%p1420) target = $region48
      $region47: #{_lambda_.15} parent=39 // pred_region
        %p1423 = scmp.lt.s32.totalorder %s16, 1
        %s1424 = scalar_select %p1423, %s16, 1
        %s1425 = smul.addr %s1424, 2
        %s1426 = scalar_lea.vmem %s3, %s1425
      $region48: #{_lambda_.15} parent=39 // pred_fallthru
        _
    $region40: #{_lambda_.15} parent=5 // pred_fallthru
      _
  $region6: #{_lambda_.15} parent=0 // loop_footer
    %s14 = sadd.s32 1, %s10
  $region7: #{_lambda_.15} parent=0 // loop_footer_branch
    %9 = sbr.rel target = $region3
  $region8: #{_lambda_.15} parent=0 // loop_exit
    _

// kernel: tile.93
$region0: #{tile.93}
  #allocation0 [shape = 's32[1]{0}', space=sflag, size = 0x4, scoped, tag = 'scoped memory for tile.93']
  %s0 = inlined_call_operand.vmem [shape: f32[16], index: 0, kind: input, shape index: {}]
  %s1 = inlined_call_operand.vmem [shape: f32[8,16], index: 1, kind: output, shape index: {}]
  // Predicated region
  $region2: #{tile.93} parent=0 // pred_check
    _
  $region3: #{tile.93} parent=0 // pred_check_branch
    %3 = sbr.rel (0) target = $region5
  $region4: #{tile.93} parent=0 // pred_region
    _
  $region5: #{tile.93} parent=0 // pred_fallthru
    _
  %v4 = vld [vmem:[%s0] ss:$0 sm:$0xff]
  %5 = vst [vmem:[%s1] sm:$0xff] %v4

// kernel: tile.94
$region0: #{tile.94}
  %s0 = inlined_call_operand.vmem [shape: f32[8,16], index: 0, kind: input, shape index: {}]
  %s1 = inlined_call_operand.vmem [shape: f32[1,128], index: 1, kind: output, shape index: {}]
  $region1: #{tile.94} parent=0
    #allocation0 [shape = 'u8[4096]{0}', space=vmem, size = 0x1000, scoped, tag = 'scoped mem for output reshape']
    %v2 = vld [vmem:[%s0] sm:$0x1]
    %vm3 = vcmask 130048
    %4 = vst.msk [vmem:[#allocation0] sm:$0x1] %vm3, %v2
    %s5 = scalar_lea.vmem %s0, 7
    %v6 = vld [vmem:[%s5] sm:$0x1]
    %7 = vrot.lane.b32.xlu0 %v6, 112
    %v8 = vpop.permute.xlu0 %7
    %vm9 = vcmask 1048448
    %10 = vst.msk [vmem:[#allocation0] sm:$0x1] %vm9, %v8
    %s11 = scalar_lea.vmem %s0, 6
    %v12 = vld [vmem:[%s11] sm:$0x1]
    %13 = vrot.lane.b32.xlu0 %v12, 96
    %v14 = vpop.permute.xlu0 %13
    %vm15 = vcmask 917248
    %16 = vst.msk [vmem:[#allocation0] sm:$0x1] %vm15, %v14
    %s17 = scalar_lea.vmem %s0, 5
    %v18 = vld [vmem:[%s17] sm:$0x1]
    %19 = vrot.lane.b32.xlu0 %v18, 80
    %v20 = vpop.permute.xlu0 %19
    %vm21 = vcmask 786048
    %22 = vst.msk [vmem:[#allocation0] sm:$0x1] %vm21, %v20
    %s23 = scalar_lea.vmem %s0, 4
    %v24 = vld [vmem:[%s23] sm:$0x1]
    %25 = vrot.lane.b32.xlu0 %v24, 64
    %v26 = vpop.permute.xlu0 %25
    %vm27 = vcmask 654848
    %28 = vst.msk [vmem:[#allocation0] sm:$0x1] %vm27, %v26
    %s29 = scalar_lea.vmem %s0, 3
    %v30 = vld [vmem:[%s29] sm:$0x1]
    %31 = vrot.lane.b32.xlu0 %v30, 48
    %v32 = vpop.permute.xlu0 %31
    %vm33 = vcmask 523648
    %34 = vst.msk [vmem:[#allocation0] sm:$0x1] %vm33, %v32
    %s35 = scalar_lea.vmem %s0, 2
    %v36 = vld [vmem:[%s35] sm:$0x1]
    %37 = vrot.lane.b32.xlu0 %v36, 32
    %v38 = vpop.permute.xlu0 %37
    %vm39 = vcmask 392448
    %40 = vst.msk [vmem:[#allocation0] sm:$0x1] %vm39, %v38
    %s41 = scalar_lea.vmem %s0, 1
    %v42 = vld [vmem:[%s41] sm:$0x1]
    %43 = vrot.lane.b32.xlu0 %v42, 16
    %v44 = vpop.permute.xlu0 %43
    %vm45 = vcmask 261248
    %46 = vst.msk [vmem:[#allocation0] sm:$0x1] %vm45, %v44
    %s48 = sshllo.u32 0, 1
    %v50 = vld [vmem:[#allocation0] sm:%s48]
    %s51 = sshllo.u32 0, 1
    %52 = vst [vmem:[%s1] sm:%s51] %v50

// kernel: _lambda_.20
$region0: #{_lambda_.20}
  #allocation0 [shape = 'u32[]', space=smem, size = 0x4, offset = 0x4, fixed_abs, tag = 'smem constant byte address 0x4 - core index']
  #allocation1 [shape = 'u32[144,128]{1,0:T(1,128)}', space=vmem, size = 0x12000, scoped, tag = 'internal scratch']
  %s0 = inlined_call_operand.vmem [shape: bf16[64,576], index: 0, kind: input, shape index: {}]
  %s1 = inlined_call_operand.vmem [shape: bf16[576,128], index: 1, kind: input, shape index: {}]
  %s2 = inlined_call_operand.vmem [shape: bf16[64,128], index: 2, kind: output, shape index: {0}]
  %s3 = inlined_call_operand.vmem [shape: f32[2,2,128], index: 3, kind: output, shape index: {1}]
  %4 = xla_tuple %s2, %s3
  %s5 = sld [smem:[#allocation0]]
  $region49: #{_lambda_.20} parent=0
    _
  %s7 = ssub.s32 1, %s5
  %s8 = scalar_select 0, %s7, %s5
  loop: start=0, step=1, limit=4
  $region2: #{_lambda_.20} parent=0 // loop_pre_header
    _
  $region3: #{_lambda_.20} parent=0 // loop_header
    %s10 = sphi 0, %s14
    %p11 = scmp.ge.s32.totalorder %s10, 4
    %s20 = sphi 0, %s22
    %s23 = sphi 0, %s20
    %s24 = sphi 0, %s23
    %s40 = sphi 0, %s24
    %s44 = sphi 0, %s44
    %s46 = sphi 0, %s44
    %s47 = sphi 0, %s46
    %s61 = sphi 0, %s47
    %s67 = sphi 0, %s69
    %s70 = sphi 0, %s67
    %s71 = sphi 0, %s70
    %s87 = sphi 0, %s71
    %s93 = sphi 0, %s95
    %s96 = sphi 0, %s93
    %s97 = sphi 0, %s96
    %s113 = sphi 0, %s97
  $region4: #{_lambda_.20} parent=0 // loop_header_branch
    %13 = sbr.rel (%p11) target = $region8
  $region5: #{_lambda_.20} parent=0 // loop_body
    %s15 = ssub.s32 %s10, 1
    %s16 = ssub.s32 %s10, 2
    %s17 = sadd.s32 %s10, 1
    %s18 = ssub.s32 %s10, %s17
    %p19 = scmp.eq.s32.totalorder %s18, 0
    %s21 = sadd.s32 %s20, 1
    %s22 = scalar_select %p19, %s20, %s21
    %p25 = pneg %p19
    %p26 = scmp.eq.s32.totalorder %s10, 1
    %p27 = por %p25, %p26
    %p28 = scmp.ne.s32.totalorder %s20, %s23
    %p29 = scmp.eq.s32.totalorder %s10, 0
    %p30 = por %p28, %p29
    %p31 = scmp.ne.s32.totalorder %s20, %s23
    %p32 = scmp.eq.s32.totalorder %s15, 1
    %p33 = por %p31, %p32
    %p34 = scmp.ne.s32.totalorder %s23, %s24
    %p35 = scmp.eq.s32.totalorder %s15, 0
    %p36 = por %p34, %p35
    %p37 = scmp.ne.s32.totalorder %s23, %s24
    %p38 = scmp.eq.s32.totalorder %s16, 1
    %p39 = por %p37, %p38
    %p41 = scmp.ne.s32.totalorder %s24, %s40
    %p42 = scmp.eq.s32.totalorder %s16, 0
    %p43 = por %p41, %p42
    %s45 = sadd.s32 %s44, 1
    %p48 = scmp.eq.s32.totalorder %s10, 1
    %p49 = scmp.ne.s32.totalorder %s44, %s46
    %p50 = scmp.eq.s32.totalorder %s10, 0
    %p51 = por %p49, %p50
    %p52 = scmp.ne.s32.totalorder %s44, %s46
    %p53 = scmp.eq.s32.totalorder %s15, 1
    %p54 = por %p52, %p53
    %p55 = scmp.ne.s32.totalorder %s46, %s47
    %p56 = scmp.eq.s32.totalorder %s15, 0
    %p57 = por %p55, %p56
    %p58 = scmp.ne.s32.totalorder %s46, %s47
    %p59 = scmp.eq.s32.totalorder %s16, 1
    %p60 = por %p58, %p59
    %p62 = scmp.ne.s32.totalorder %s47, %s61
    %p63 = scmp.eq.s32.totalorder %s16, 0
    %p64 = por %p62, %p63
    %s65 = ssub.s32 %s10, %s17
    %p66 = scmp.eq.s32.totalorder %s65, 0
    %s68 = sadd.s32 %s67, 1
    %s69 = scalar_select %p66, %s67, %s68
    %p72 = pneg %p66
    %p73 = scmp.eq.s32.totalorder %s10, 1
    %p74 = por %p72, %p73
    %p75 = scmp.ne.s32.totalorder %s67, %s70
    %p76 = scmp.eq.s32.totalorder %s10, 0
    %p77 = por %p75, %p76
    %p78 = scmp.ne.s32.totalorder %s67, %s70
    %p79 = scmp.eq.s32.totalorder %s15, 1
    %p80 = por %p78, %p79
    %p81 = scmp.ne.s32.totalorder %s70, %s71
    %p82 = scmp.eq.s32.totalorder %s15, 0
    %p83 = por %p81, %p82
    %p84 = scmp.ne.s32.totalorder %s70, %s71
    %p85 = scmp.eq.s32.totalorder %s16, 1
    %p86 = por %p84, %p85
    %p88 = scmp.ne.s32.totalorder %s71, %s87
    %p89 = scmp.eq.s32.totalorder %s16, 0
    %p90 = por %p88, %p89
    %s91 = ssub.s32 %s10, %s17
    %p92 = scmp.eq.s32.totalorder %s91, 0
    %s94 = sadd.s32 %s93, 1
    %s95 = scalar_select %p92, %s93, %s94
    %p98 = pneg %p92
    %p99 = scmp.eq.s32.totalorder %s10, 1
    %p100 = por %p98, %p99
    %p101 = scmp.ne.s32.totalorder %s93, %s96
    %p102 = scmp.eq.s32.totalorder %s10, 0
    %p103 = por %p101, %p102
    %p104 = scmp.ne.s32.totalorder %s93, %s96
    %p105 = scmp.eq.s32.totalorder %s15, 1
    %p106 = por %p104, %p105
    %p107 = scmp.ne.s32.totalorder %s96, %s97
    %p108 = scmp.eq.s32.totalorder %s15, 0
    %p109 = por %p107, %p108
    %p110 = scmp.ne.s32.totalorder %s96, %s97
    %p111 = scmp.eq.s32.totalorder %s16, 1
    %p112 = por %p110, %p111
    %p114 = scmp.ne.s32.totalorder %s97, %s113
    %p115 = scmp.eq.s32.totalorder %s16, 0
    %p116 = por %p114, %p115
    %p117 = scmp.le.s32.totalorder 1, %s10
    %p118 = scmp.lt.s32.totalorder %s10, 3
    %p119 = pnand %p117, %p118
    %p120 = pneg %p119
    // Predicated region
    $region9: #{_lambda_.20} parent=5 // pred_check
      _
    $region10: #{_lambda_.20} parent=5 // pred_check_branch
      %122 = sbr.rel (%p119) target = $region12
    $region11: #{_lambda_.20} parent=5 // pred_region
      %s123 = ssub.s32 %s10, 1
      // Predicated region
      $region13: #{_lambda_.20} parent=11 // pred_check
        %p124 = pneg %p57
      $region14: #{_lambda_.20} parent=11 // pred_check_branch
        %126 = sbr.rel (%p124) target = $region16
      $region15: #{_lambda_.20} parent=11 // pred_region
        _
      $region16: #{_lambda_.20} parent=11 // pred_fallthru
        _
    $region12: #{_lambda_.20} parent=5 // pred_fallthru
      _
    %p127 = scmp.lt.s32.totalorder %s10, 2
    // Predicated region
    $region17: #{_lambda_.20} parent=5 // pred_check
      %p128 = pneg %p127
    $region18: #{_lambda_.20} parent=5 // pred_check_branch
      %130 = sbr.rel (%p128) target = $region20
    $region19: #{_lambda_.20} parent=5 // pred_region
      // Predicated region
      $region21: #{_lambda_.20} parent=19 // pred_check
        %p131 = pneg %p30
      $region22: #{_lambda_.20} parent=19 // pred_check_branch
        %133 = sbr.rel (%p131) target = $region24
      $region23: #{_lambda_.20} parent=19 // pred_region
        %s134 = smul.u32 4, %s10
        %p135 = scmp.lt.s32.totalorder %s134, 7
        %s136 = scalar_select %p135, %s134, 7
        %s137 = smul.addr %s136, 5
        %s138 = smul.addr %s137, 4
        %s139 = scalar_lea.vmem %s0, %s138
        %s140 = smul.u32 4, %s10
      $region24: #{_lambda_.20} parent=19 // pred_fallthru
        _
    $region20: #{_lambda_.20} parent=5 // pred_fallthru
      _
    %p141 = scmp.le.s32.totalorder 1, %s10
    %p142 = scmp.lt.s32.totalorder %s10, 3
    %p143 = pnand %p141, %p142
    %p144 = pneg %p143
    // Predicated region
    $region25: #{_lambda_.20} parent=5 // pred_check
      _
    $region26: #{_lambda_.20} parent=5 // pred_check_branch
      %146 = sbr.rel (%p143) target = $region28
    $region27: #{_lambda_.20} parent=5 // pred_region
      %s147 = ssub.s32 %s10, 1
      %s148 = smul.u32 4, %s15
      %p149 = scmp.lt.s32.totalorder %s148, 7
      %s150 = scalar_select %p149, %s148, 7
      %s151 = smul.addr %s150, 5
      %s152 = smul.addr %s151, 4
      %s153 = scalar_lea.vmem %s0, %s152
      %p154 = pneg %p36
      %p155 = pneg %p33
      %p156 = pneg %p57
      %p157 = pneg %p54
      %p158 = pneg %p83
      %p159 = pneg %p80
      %s160 = smul.u32 4, %s15
      %p161 = scmp.lt.s32.totalorder %s160, 7
      %s162 = scalar_select %p161, %s160, 7
      %s163 = smul.addr %s162, 4
      %s164 = scalar_lea.vmem %s2, %s163
      %p165 = pneg %p109
      %p166 = pneg %p106
      %p167 = scmp.lt.s32.totalorder %s15, 1
      %s168 = scalar_select %p167, %s15, 1
      %s169 = smul.addr %s168, 2
      %s170 = scalar_lea.vmem %s3, %s169
      %s171 = smul.u32 4, %s15
      %p172 = scmp.lt.s32.totalorder %s171, 7
      %s173 = scalar_select %p172, %s171, 7
      %s174 = smul.addr %s173, 5
      %s175 = smul.addr %s174, 4
      %s176 = scalar_lea.vmem %s0, %s175
      %s177 = smul.u32 4, %s15
      %s178 = smul.u32 4, %s15
      %p179 = scmp.lt.s32.totalorder %s178, 7
      %s180 = scalar_select %p179, %s178, 7
      %s181 = smul.addr %s180, 4
      %s182 = scalar_lea.vmem %s2, %s181
      %s183 = smul.u32 4, %s15
      %p184 = scmp.lt.s32.totalorder %s15, 1
      %s185 = scalar_select %p184, %s15, 1
      %s186 = smul.addr %s185, 2
      %s187 = scalar_lea.vmem %s3, %s186
      %v189 = vld [vmem:[%s176] sm:$0xff]
      %v190 = vld [vmem:[%s176 + $0x8] sm:$0xff]
      %v191 = vld [vmem:[%s176 + $0x10] sm:$0xf]
      %v192 = vld [vmem:[%s176 + $0x14] sm:$0xff]
      %v193 = vld [vmem:[%s176 + $0x1c] sm:$0xff]
      %v194 = vld [vmem:[%s176 + $0x24] sm:$0xf]
      %v195 = vld [vmem:[%s176 + $0x28] sm:$0xff]
      %v196 = vld [vmem:[%s176 + $0x30] sm:$0xff]
      %v197 = vld [vmem:[%s176 + $0x38] sm:$0xf]
      %v198 = vld [vmem:[%s176 + $0x3c] sm:$0xff]
      %v199 = vld [vmem:[%s176 + $0x44] sm:$0xff]
      %v200 = vld [vmem:[%s176 + $0x4c] sm:$0xf]
      %v201 = vld [vmem:[%s1] sm:$0xf]
      %v202 = vld [vmem:[%s1 + $0x4] sm:$0xf]
      %v203 = vld [vmem:[%s1 + $0x8] sm:$0xf]
      %v204 = vld [vmem:[%s1 + $0xc] sm:$0xf]
      %v205 = vld [vmem:[%s1 + $0x10] sm:$0xf]
      %v206 = vld [vmem:[%s1 + $0x14] sm:$0xf]
      %v207 = vld [vmem:[%s1 + $0x18] sm:$0xf]
      %v208 = vld [vmem:[%s1 + $0x1c] sm:$0xf]
      %v209 = vld [vmem:[%s1 + $0x20] sm:$0xf]
      %v210 = vld [vmem:[%s1 + $0x24] sm:$0xf]
      %v211 = vld [vmem:[%s1 + $0x28] sm:$0xf]
      %v212 = vld [vmem:[%s1 + $0x2c] sm:$0xf]
      %v213 = vld [vmem:[%s1 + $0x30] sm:$0xf]
      %v214 = vld [vmem:[%s1 + $0x34] sm:$0xf]
      %v215 = vld [vmem:[%s1 + $0x38] sm:$0xf]
      %v216 = vld [vmem:[%s1 + $0x3c] sm:$0xf]
      %v217 = vld [vmem:[%s1 + $0x40] sm:$0xf]
      %v218 = vld [vmem:[%s1 + $0x44] sm:$0xf]
      %v219 = vld [vmem:[%s1 + $0x48] sm:$0xf]
      %v220 = vld [vmem:[%s1 + $0x4c] sm:$0xf]
      %v221 = vld [vmem:[%s1 + $0x50] sm:$0xf]
      %v222 = vld [vmem:[%s1 + $0x54] sm:$0xf]
      %v223 = vld [vmem:[%s1 + $0x58] sm:$0xf]
      %v224 = vld [vmem:[%s1 + $0x5c] sm:$0xf]
      %v225 = vld [vmem:[%s1 + $0x60] sm:$0xf]
      %v226 = vld [vmem:[%s1 + $0x64] sm:$0xf]
      %v227 = vld [vmem:[%s1 + $0x68] sm:$0xf]
      %v228 = vld [vmem:[%s1 + $0x6c] sm:$0xf]
      %v229 = vld [vmem:[%s1 + $0x70] sm:$0xf]
      %v230 = vld [vmem:[%s1 + $0x74] sm:$0xf]
      %v231 = vld [vmem:[%s1 + $0x78] sm:$0xf]
      %v232 = vld [vmem:[%s1 + $0x7c] sm:$0xf]
      %v233 = vld [vmem:[%s1 + $0x80] sm:$0xf]
      %v234 = vld [vmem:[%s1 + $0x84] sm:$0xf]
      %v235 = vld [vmem:[%s1 + $0x88] sm:$0xf]
      %v236 = vld [vmem:[%s1 + $0x8c] sm:$0xf]
      %v237 = vld [vmem:[%s1 + $0x90] sm:$0xf]
      %v238 = vld [vmem:[%s1 + $0x94] sm:$0xf]
      %v239 = vld [vmem:[%s1 + $0x98] sm:$0xf]
      %v240 = vld [vmem:[%s1 + $0x9c] sm:$0xf]
      %v241 = vld [vmem:[%s1 + $0xa0] sm:$0xf]
      %v242 = vld [vmem:[%s1 + $0xa4] sm:$0xf]
      %v243 = vld [vmem:[%s1 + $0xa8] sm:$0xf]
      %v244 = vld [vmem:[%s1 + $0xac] sm:$0xf]
      %v245 = vld [vmem:[%s1 + $0xb0] sm:$0xf]
      %v246 = vld [vmem:[%s1 + $0xb4] sm:$0xf]
      %v247 = vld [vmem:[%s1 + $0xb8] sm:$0xf]
      %v248 = vld [vmem:[%s1 + $0xbc] sm:$0xf]
      %v249 = vld [vmem:[%s1 + $0xc0] sm:$0xf]
      %v250 = vld [vmem:[%s1 + $0xc4] sm:$0xf]
      %v251 = vld [vmem:[%s1 + $0xc8] sm:$0xf]
      %v252 = vld [vmem:[%s1 + $0xcc] sm:$0xf]
      %v253 = vld [vmem:[%s1 + $0xd0] sm:$0xf]
      %v254 = vld [vmem:[%s1 + $0xd4] sm:$0xf]
      %v255 = vld [vmem:[%s1 + $0xd8] sm:$0xf]
      %v256 = vld [vmem:[%s1 + $0xdc] sm:$0xf]
      %v257 = vld [vmem:[%s1 + $0xe0] sm:$0xf]
      %v258 = vld [vmem:[%s1 + $0xe4] sm:$0xf]
      %v259 = vld [vmem:[%s1 + $0xe8] sm:$0xf]
      %v260 = vld [vmem:[%s1 + $0xec] sm:$0xf]
      %v261 = vld [vmem:[%s1 + $0xf0] sm:$0xf]
      %v262 = vld [vmem:[%s1 + $0xf4] sm:$0xf]
      %v263 = vld [vmem:[%s1 + $0xf8] sm:$0xf]
      %v264 = vld [vmem:[%s1 + $0xfc] sm:$0xf]
      %v265 = vld [vmem:[%s1 + $0x100] sm:$0xf]
      %v266 = vld [vmem:[%s1 + $0x104] sm:$0xf]
      %v267 = vld [vmem:[%s1 + $0x108] sm:$0xf]
      %v268 = vld [vmem:[%s1 + $0x10c] sm:$0xf]
      %v269 = vld [vmem:[%s1 + $0x110] sm:$0xf]
      %v270 = vld [vmem:[%s1 + $0x114] sm:$0xf]
      %v271 = vld [vmem:[%s1 + $0x118] sm:$0xf]
      %v272 = vld [vmem:[%s1 + $0x11c] sm:$0xf]
      %v285 = vunpack.c.l.b16 %v189
      %v286 = vunpack.c.h.b16 %v189
      %v287 = vunpack.c.l.b16 %v190
      %v288 = vunpack.c.h.b16 %v190
      %v289 = vunpack.c.l.b16 %v191
      %v290 = vunpack.c.l.b16 %v192
      %v291 = vunpack.c.h.b16 %v192
      %v292 = vunpack.c.l.b16 %v193
      %v293 = vunpack.c.h.b16 %v193
      %v294 = vunpack.c.l.b16 %v194
      %v295 = vunpack.c.l.b16 %v195
      %v296 = vunpack.c.h.b16 %v195
      %v297 = vunpack.c.l.b16 %v196
      %v298 = vunpack.c.h.b16 %v196
      %v299 = vunpack.c.l.b16 %v197
      %v300 = vunpack.c.l.b16 %v198
      %v301 = vunpack.c.h.b16 %v198
      %v302 = vunpack.c.l.b16 %v199
      %v303 = vunpack.c.h.b16 %v199
      %v304 = vunpack.c.l.b16 %v200
      %v305 = vpack.c.b16 %v290, %v285
      %v306 = vpack.c.b16 %v291, %v286
      %v307 = vpack.c.b16 %v292, %v287
      %v308 = vpack.c.b16 %v293, %v288
      %v309 = vpack.c.b16 %v294, %v289
      %v310 = vpack.c.b16 %v300, %v295
      %v311 = vpack.c.b16 %v301, %v296
      %v312 = vpack.c.b16 %v302, %v297
      %v313 = vpack.c.b16 %v303, %v298
      %v314 = vpack.c.b16 %v304, %v299
      %v395 = vunpack.c.l.b16 %v201
      %v396 = vunpack.c.l.b16 %v202
      %v397 = vunpack.c.l.b16 %v203
      %v398 = vunpack.c.l.b16 %v204
      %v399 = vunpack.c.l.b16 %v205
      %v400 = vunpack.c.l.b16 %v206
      %v401 = vunpack.c.l.b16 %v207
      %v402 = vunpack.c.l.b16 %v208
      %v403 = vunpack.c.l.b16 %v209
      %v404 = vunpack.c.l.b16 %v210
      %v405 = vunpack.c.l.b16 %v211
      %v406 = vunpack.c.l.b16 %v212
      %v407 = vunpack.c.l.b16 %v213
      %v408 = vunpack.c.l.b16 %v214
      %v409 = vunpack.c.l.b16 %v215
      %v410 = vunpack.c.l.b16 %v216
      %v411 = vunpack.c.l.b16 %v217
      %v412 = vunpack.c.l.b16 %v218
      %v413 = vunpack.c.l.b16 %v219
      %v414 = vunpack.c.l.b16 %v220
      %v415 = vunpack.c.l.b16 %v221
      %v416 = vunpack.c.l.b16 %v222
      %v417 = vunpack.c.l.b16 %v223
      %v418 = vunpack.c.l.b16 %v224
      %v419 = vunpack.c.l.b16 %v225
      %v420 = vunpack.c.l.b16 %v226
      %v421 = vunpack.c.l.b16 %v227
      %v422 = vunpack.c.l.b16 %v228
      %v423 = vunpack.c.l.b16 %v229
      %v424 = vunpack.c.l.b16 %v230
      %v425 = vunpack.c.l.b16 %v231
      %v426 = vunpack.c.l.b16 %v232
      %v427 = vunpack.c.l.b16 %v233
      %v428 = vunpack.c.l.b16 %v234
      %v429 = vunpack.c.l.b16 %v235
      %v430 = vunpack.c.l.b16 %v236
      %v431 = vunpack.c.l.b16 %v237
      %v432 = vunpack.c.l.b16 %v238
      %v433 = vunpack.c.l.b16 %v239
      %v434 = vunpack.c.l.b16 %v240
      %v435 = vunpack.c.l.b16 %v241
      %v436 = vunpack.c.l.b16 %v242
      %v437 = vunpack.c.l.b16 %v243
      %v438 = vunpack.c.l.b16 %v244
      %v439 = vunpack.c.l.b16 %v245
      %v440 = vunpack.c.l.b16 %v246
      %v441 = vunpack.c.l.b16 %v247
      %v442 = vunpack.c.l.b16 %v248
      %v443 = vunpack.c.l.b16 %v249
      %v444 = vunpack.c.l.b16 %v250
      %v445 = vunpack.c.l.b16 %v251
      %v446 = vunpack.c.l.b16 %v252
      %v447 = vunpack.c.l.b16 %v253
      %v448 = vunpack.c.l.b16 %v254
      %v449 = vunpack.c.l.b16 %v255
      %v450 = vunpack.c.l.b16 %v256
      %v451 = vunpack.c.l.b16 %v257
      %v452 = vunpack.c.l.b16 %v258
      %v453 = vunpack.c.l.b16 %v259
      %v454 = vunpack.c.l.b16 %v260
      %v455 = vunpack.c.l.b16 %v261
      %v456 = vunpack.c.l.b16 %v262
      %v457 = vunpack.c.l.b16 %v263
      %v458 = vunpack.c.l.b16 %v264
      %v459 = vunpack.c.l.b16 %v265
      %v460 = vunpack.c.l.b16 %v266
      %v461 = vunpack.c.l.b16 %v267
      %v462 = vunpack.c.l.b16 %v268
      %v463 = vunpack.c.l.b16 %v269
      %v464 = vunpack.c.l.b16 %v270
      %v465 = vunpack.c.l.b16 %v271
      %v466 = vunpack.c.l.b16 %v272
      %v467 = vpack.c.b16 %v396, %v395
      %v468 = vpack.c.b16 %v398, %v397
      %v469 = vpack.c.b16 %v400, %v399
      %v470 = vpack.c.b16 %v402, %v401
      %v471 = vpack.c.b16 %v404, %v403
      %v472 = vpack.c.b16 %v406, %v405
      %v473 = vpack.c.b16 %v408, %v407
      %v474 = vpack.c.b16 %v410, %v409
      %v475 = vpack.c.b16 %v412, %v411
      %v476 = vpack.c.b16 %v414, %v413
      %v477 = vpack.c.b16 %v416, %v415
      %v478 = vpack.c.b16 %v418, %v417
      %v479 = vpack.c.b16 %v420, %v419
      %v480 = vpack.c.b16 %v422, %v421
      %v481 = vpack.c.b16 %v424, %v423
      %v482 = vpack.c.b16 %v426, %v425
      %v483 = vpack.c.b16 %v428, %v427
      %v484 = vpack.c.b16 %v430, %v429
      %v485 = vpack.c.b16 %v432, %v431
      %v486 = vpack.c.b16 %v434, %v433
      %v487 = vpack.c.b16 %v436, %v435
      %v488 = vpack.c.b16 %v438, %v437
      %v489 = vpack.c.b16 %v440, %v439
      %v490 = vpack.c.b16 %v442, %v441
      %v491 = vpack.c.b16 %v444, %v443
      %v492 = vpack.c.b16 %v446, %v445
      %v493 = vpack.c.b16 %v448, %v447
      %v494 = vpack.c.b16 %v450, %v449
      %v495 = vpack.c.b16 %v452, %v451
      %v496 = vpack.c.b16 %v454, %v453
      %v497 = vpack.c.b16 %v456, %v455
      %v498 = vpack.c.b16 %v458, %v457
      %v499 = vpack.c.b16 %v460, %v459
      %v500 = vpack.c.b16 %v462, %v461
      %v501 = vpack.c.b16 %v464, %v463
      %v502 = vpack.c.b16 %v466, %v465
      %vm539 = vcmask 523264
      %v541 = vsel %vm539, %v309, 0
      %v544 = vsel %vm539, %v314, 0
      %546 = vmatprep.subr.bf16.mxu0 0
      %547 = vmatpush1.bf16.msra.mxu0 %v467
      %548 = vmatprep.subr.bf16.mxu0 0
      %549 = vmatpush1.bf16.msra.mxu0 %v468
      %550 = vmatprep.subr.bf16.mxu0 0
      %551 = vmatpush1.bf16.msra.mxu0 %v469
      %552 = vmatprep.subr.bf16.mxu0 0
      %553 = vmatpush1.bf16.msra.mxu0 %v470
      %554 = vmatprep.subr.bf16.mxu0 0
      %555 = vmatpush1.bf16.msra.mxu0 %v471
      %556 = vmatprep.subr.bf16.mxu0 0
      %557 = vmatpush1.bf16.msra.mxu0 %v472
      %558 = vmatprep.subr.bf16.mxu0 0
      %559 = vmatpush1.bf16.msra.mxu0 %v473
      %560 = vmatprep.subr.bf16.mxu0 0
      %561 = vmatpush1.bf16.msra.mxu0 %v474
      %562 = vmatprep.subr.bf16.mxu0 0
      %563 = vmatpush1.bf16.msra.mxu0 %v475
      %564 = vmatprep.subr.bf16.mxu0 0
      %565 = vmatpush1.bf16.msra.mxu0 %v476
      %566 = vmatprep.subr.bf16.mxu0 0
      %567 = vmatpush1.bf16.msra.mxu0 %v477
      %568 = vmatprep.subr.bf16.mxu0 0
      %569 = vmatpush1.bf16.msra.mxu0 %v478
      %570 = vmatprep.subr.bf16.mxu0 0
      %571 = vmatpush1.bf16.msra.mxu0 %v479
      %572 = vmatprep.subr.bf16.mxu0 0
      %573 = vmatpush1.bf16.msra.mxu0 %v480
      %574 = vmatprep.subr.bf16.mxu0 0
      %575 = vmatpush1.bf16.msra.mxu0 %v481
      %576 = vmatprep.subr.bf16.mxu0 0
      %577 = vmatpush1.bf16.msra.mxu0 %v482
      %578 = vmatprep.mubr.bf16.mxu0 %v306
      %579 = vmatmul.mubr.bf16.gmra.mrb[0].mxu0 %v305
      %v580 = vpop.f32.mrb[0].mxu0
      %v581 = vadd.f32 0.0, %v580
      %v582 = vpop.f32.mrb[0].mxu0
      %v583 = vpop.f32.mrb[0].mxu0
      %v584 = vadd.f32 0.0, %v583
      %v585 = vpop.f32.mrb[0].mxu0
      %586 = vmatprep.mubr.bf16.mxu0 %v311
      %587 = vmatmul.mubr.bf16.gmra.mrb[0].mxu0 %v310
      %v588 = vpop.f32.mrb[0].mxu0
      %v589 = vadd.f32 0.0, %v588
      %v590 = vpop.f32.mrb[0].mxu0
      %v591 = vpop.f32.mrb[0].mxu0
      %v592 = vadd.f32 0.0, %v591
      %v593 = vpop.f32.mrb[0].mxu0
      %594 = vdwg.mxu0
      %595 = vmatprep.subr.bf16.mxu0 0
      %596 = vmatpush1.bf16.msra.mxu0 %v483
      %597 = vmatprep.subr.bf16.mxu0 0
      %598 = vmatpush1.bf16.msra.mxu0 %v484
      %599 = vmatprep.subr.bf16.mxu0 0
      %600 = vmatpush1.bf16.msra.mxu0 %v485
      %601 = vmatprep.subr.bf16.mxu0 0
      %602 = vmatpush1.bf16.msra.mxu0 %v486
      %603 = vmatprep.subr.bf16.mxu0 0
      %604 = vmatpush1.bf16.msra.mxu0 %v487
      %605 = vmatprep.subr.bf16.mxu0 0
      %606 = vmatpush1.bf16.msra.mxu0 %v488
      %607 = vmatprep.subr.bf16.mxu0 0
      %608 = vmatpush1.bf16.msra.mxu0 %v489
      %609 = vmatprep.subr.bf16.mxu0 0
      %610 = vmatpush1.bf16.msra.mxu0 %v490
      %611 = vmatprep.subr.bf16.mxu0 0
      %612 = vmatpush1.bf16.msra.mxu0 %v491
      %613 = vmatprep.subr.bf16.mxu0 0
      %614 = vmatpush1.bf16.msra.mxu0 %v492
      %615 = vmatprep.subr.bf16.mxu0 0
      %616 = vmatpush1.bf16.msra.mxu0 %v493
      %617 = vmatprep.subr.bf16.mxu0 0
      %618 = vmatpush1.bf16.msra.mxu0 %v494
      %619 = vmatprep.subr.bf16.mxu0 0
      %620 = vmatpush1.bf16.msra.mxu0 %v495
      %621 = vmatprep.subr.bf16.mxu0 0
      %622 = vmatpush1.bf16.msra.mxu0 %v496
      %623 = vmatprep.subr.bf16.mxu0 0
      %624 = vmatpush1.bf16.msra.mxu0 %v497
      %625 = vmatprep.subr.bf16.mxu0 0
      %626 = vmatpush1.bf16.msra.mxu0 %v498
      %627 = vmatprep.mubr.bf16.mxu0 %v308
      %628 = vmatmul.mubr.bf16.gmra.mrb[0].mxu0 %v307
      %v629 = vpop.f32.mrb[0].mxu0
      %v630 = vadd.f32 %v581, %v629
      %v631 = vpop.f32.mrb[0].mxu0
      %v632 = vpop.f32.mrb[0].mxu0
      %v633 = vadd.f32 %v584, %v632
      %v634 = vpop.f32.mrb[0].mxu0
      %635 = vmatprep.mubr.bf16.mxu0 %v313
      %636 = vmatmul.mubr.bf16.gmra.mrb[0].mxu0 %v312
      %v637 = vpop.f32.mrb[0].mxu0
      %v638 = vadd.f32 %v589, %v637
      %v639 = vpop.f32.mrb[0].mxu0
      %v640 = vpop.f32.mrb[0].mxu0
      %v641 = vadd.f32 %v592, %v640
      %v642 = vpop.f32.mrb[0].mxu0
      %643 = vdwg.mxu0
      %644 = vmatprep.subr.bf16.mxu0 0
      %645 = vmatpush1.bf16.msra.mxu0 %v499
      %646 = vmatprep.subr.bf16.mxu0 0
      %647 = vmatpush1.bf16.msra.mxu0 %v500
      %648 = vmatprep.subr.bf16.mxu0 0
      %649 = vmatpush1.bf16.msra.mxu0 %v501
      %650 = vmatprep.subr.bf16.mxu0 0
      %651 = vmatpush1.bf16.msra.mxu0 %v502
      %652 = vmatprep.subr.bf16.mxu0 0
      %653 = vmatpush1.bf16.msra.mxu0 0
      %654 = vmatprep.subr.bf16.mxu0 0
      %655 = vmatpush1.bf16.msra.mxu0 0
      %656 = vmatprep.subr.bf16.mxu0 0
      %657 = vmatpush1.bf16.msra.mxu0 0
      %658 = vmatprep.subr.bf16.mxu0 0
      %659 = vmatpush1.bf16.msra.mxu0 0
      %660 = vmatprep.subr.bf16.mxu0 0
      %661 = vmatpush1.bf16.msra.mxu0 0
      %662 = vmatprep.subr.bf16.mxu0 0
      %663 = vmatpush1.bf16.msra.mxu0 0
      %664 = vmatprep.subr.bf16.mxu0 0
      %665 = vmatpush1.bf16.msra.mxu0 0
      %666 = vmatprep.subr.bf16.mxu0 0
      %667 = vmatpush1.bf16.msra.mxu0 0
      %668 = vmatprep.subr.bf16.mxu0 0
      %669 = vmatpush1.bf16.msra.mxu0 0
      %670 = vmatprep.subr.bf16.mxu0 0
      %671 = vmatpush1.bf16.msra.mxu0 0
      %672 = vmatprep.subr.bf16.mxu0 0
      %673 = vmatpush1.bf16.msra.mxu0 0
      %674 = vmatprep.subr.bf16.mxu0 0
      %675 = vmatpush1.bf16.msra.mxu0 0
      %676 = vmatprep.mubr.bf16.mxu0 0
      %677 = vmatmul.mubr.bf16.gmra.mrb[0].mxu0 %v541
      %v678 = vpop.f32.mrb[0].mxu0
      %v679 = vadd.f32 %v630, %v678
      %v680 = vpop.f32.mrb[0].mxu0
      %v681 = vpop.f32.mrb[0].mxu0
      %v682 = vadd.f32 %v633, %v681
      %v683 = vpop.f32.mrb[0].mxu0
      %684 = vmatprep.mubr.bf16.mxu0 0
      %685 = vmatmul.mubr.bf16.gmra.mrb[0].mxu0 %v544
      %v686 = vpop.f32.mrb[0].mxu0
      %v687 = vadd.f32 %v638, %v686
      %v688 = vpop.f32.mrb[0].mxu0
      %v689 = vpop.f32.mrb[0].mxu0
      %v690 = vadd.f32 %v641, %v689
      %v691 = vpop.f32.mrb[0].mxu0
      %692 = vdwg.mxu0
      %v693 = vpack.c.bf16 %v682, %v679
      %v694 = vpack.c.bf16 %v690, %v687
      %v697 = vunpack.c.l.b16 %v693
      %v698 = vunpack.c.h.b16 %v693
      %v699 = vunpack.c.l.b16 %v694
      %v700 = vunpack.c.h.b16 %v694
      %v701 = vpack.c.b16 %v697, %v697
      %v702 = vpack.c.b16 %v698, %v698
      %v703 = vpack.c.b16 %v699, %v699
      %v704 = vpack.c.b16 %v700, %v700
      %709 = vst [vmem:[%s182] sm:$0xf] %v701
      %710 = vst [vmem:[%s182 + $0x4] sm:$0xf] %v702
      %711 = vst [vmem:[%s182 + $0x8] sm:$0xf] %v703
      %712 = vst [vmem:[%s182 + $0xc] sm:$0xf] %v704
      %v713 = vadd.f32 %v679, %v682
      %v714 = vadd.f32 %v713, %v687
      %v715 = vadd.f32 %v714, %v690
      %v716 = vrot.slane %v715, 4
      %v717 = vadd.f32 %v715, %v716
      %v718 = vrot.slane %v717, 2
      %v719 = vadd.f32 %v717, %v718
      %v720 = vrot.slane %v719, 1
      %v721 = vadd.f32 %v719, %v720
      %v722 = vmul.f32 %v679, %v679
      %v723 = vmul.f32 %v682, %v682
      %v724 = vmul.f32 %v687, %v687
      %v725 = vmul.f32 %v690, %v690
      %v726 = vadd.f32 %v722, %v723
      %v727 = vadd.f32 %v726, %v724
      %v728 = vadd.f32 %v727, %v725
      %v729 = vrot.slane %v728, 4
      %v730 = vadd.f32 %v728, %v729
      %v731 = vrot.slane %v730, 2
      %v732 = vadd.f32 %v730, %v731
      %v733 = vrot.slane %v732, 1
      %v734 = vadd.f32 %v732, %v733
      %vm735 = vcmask 1040384
      %v736 = vsel %vm735, %v721, %v734
      %737 = vst [vmem:[%s187] sm:$0x3] %v736
      %s738 = smul.u32 4, %s15
      %p739 = scmp.lt.s32.totalorder %s738, 7
      %s740 = scalar_select %p739, %s738, 7
      %s741 = smul.addr %s740, 4
      %s742 = scalar_lea.vmem %s2, %s741
      %p743 = scmp.lt.s32.totalorder %s15, 1
      %s744 = scalar_select %p743, %s15, 1
      %s745 = smul.addr %s744, 2
      %s746 = scalar_lea.vmem %s3, %s745
      // Predicated region
      $region29: #{_lambda_.20} parent=27 // pred_check
        %p747 = pneg %p80
      $region30: #{_lambda_.20} parent=27 // pred_check_branch
        %749 = sbr.rel (%p747) target = $region32
      $region31: #{_lambda_.20} parent=27 // pred_region
        %s750 = smul.u32 4, %s15
      $region32: #{_lambda_.20} parent=27 // pred_fallthru
        _
      // Predicated region
      $region33: #{_lambda_.20} parent=27 // pred_check
        %p751 = pneg %p106
      $region34: #{_lambda_.20} parent=27 // pred_check_branch
        %753 = sbr.rel (%p751) target = $region36
      $region35: #{_lambda_.20} parent=27 // pred_region
        _
      $region36: #{_lambda_.20} parent=27 // pred_fallthru
        _
    $region28: #{_lambda_.20} parent=5 // pred_fallthru
      _
    %p754 = scmp.le.s32.totalorder 2, %s10
    // Predicated region
    $region37: #{_lambda_.20} parent=5 // pred_check
      %p755 = pneg %p754
    $region38: #{_lambda_.20} parent=5 // pred_check_branch
      %757 = sbr.rel (%p755) target = $region40
    $region39: #{_lambda_.20} parent=5 // pred_region
      %s758 = ssub.s32 %s10, 2
      // Predicated region
      $region41: #{_lambda_.20} parent=39 // pred_check
        %p759 = pneg %p86
      $region42: #{_lambda_.20} parent=39 // pred_check_branch
        %761 = sbr.rel (%p759) target = $region44
      $region43: #{_lambda_.20} parent=39 // pred_region
        %s762 = smul.u32 4, %s16
        %p763 = scmp.lt.s32.totalorder %s762, 7
        %s764 = scalar_select %p763, %s762, 7
        %s765 = smul.addr %s764, 4
        %s766 = scalar_lea.vmem %s2, %s765
      $region44: #{_lambda_.20} parent=39 // pred_fallthru
        _
      // Predicated region
      $region45: #{_lambda_.20} parent=39 // pred_check
        %p767 = pneg %p112
      $region46: #{_lambda_.20} parent=39 // pred_check_branch
        %769 = sbr.rel (%p767) target = $region48
      $region47: #{_lambda_.20} parent=39 // pred_region
        %p770 = scmp.lt.s32.totalorder %s16, 1
        %s771 = scalar_select %p770, %s16, 1
        %s772 = smul.addr %s771, 2
        %s773 = scalar_lea.vmem %s3, %s772
      $region48: #{_lambda_.20} parent=39 // pred_fallthru
        _
    $region40: #{_lambda_.20} parent=5 // pred_fallthru
      _
  $region6: #{_lambda_.20} parent=0 // loop_footer
    %s14 = sadd.s32 1, %s10
  $region7: #{_lambda_.20} parent=0 // loop_footer_branch
    %9 = sbr.rel target = $region3
  $region8: #{_lambda_.20} parent=0 // loop_exit
    _

// kernel: _lambda_.21
$region0: #{_lambda_.21}
  #allocation0 [shape = 'u32[]', space=smem, size = 0x4, offset = 0x4, fixed_abs, tag = 'smem constant byte address 0x4 - core index']
  #allocation1 [shape = 'u32[144,128]{1,0:T(1,128)}', space=vmem, size = 0x12000, scoped, tag = 'internal scratch']
  #allocation2 [shape = 'f32[8,128]{1,0:T(8,128)}', space=vmem, size = 0x1000, scoped, tag = 'scratch operand']
  %s0 = inlined_call_operand.vmem [shape: bf16[4,16,128], index: 0, kind: input, shape index: {}]
  %s1 = inlined_call_operand.vmem [shape: f32[1,128], index: 1, kind: input, shape index: {}]
  %s2 = inlined_call_operand.vmem [shape: f32[1,128], index: 2, kind: input, shape index: {}]
  %s3 = inlined_call_operand.vmem [shape: bf16[4,16,128], index: 3, kind: output, shape index: {}]
  %s4 = sld [smem:[#allocation0]]
  $region49: #{_lambda_.21} parent=0
    _
  %s6 = ssub.s32 1, %s4
  %s7 = scalar_select 0, %s6, %s4
  loop: start=0, step=1, limit=10
  $region2: #{_lambda_.21} parent=0 // loop_pre_header
    _
  $region3: #{_lambda_.21} parent=0 // loop_header
    %s9 = sphi 0, %s13
    %p10 = scmp.ge.s32.totalorder %s9, 10
    %s16 = sphi 0, %s28
    %s17 = sphi 0, %s24
    %s18 = sphi 0, %s16
    %s19 = sphi 0, %s17
    %s20 = sphi 0, %s18
    %s21 = sphi 0, %s19
    %s33 = sphi 0, %s35
    %s36 = sphi 0, %s33
    %s37 = sphi 0, %s36
    %s53 = sphi 0, %s37
    %s57 = sphi 0, %s57
    %s59 = sphi 0, %s57
    %s60 = sphi 0, %s59
    %s74 = sphi 0, %s60
    %s78 = sphi 0, %s78
    %s80 = sphi 0, %s78
    %s81 = sphi 0, %s80
    %s95 = sphi 0, %s81
    %s103 = sphi 0, %s105
    %s106 = sphi 0, %s103
    %s107 = sphi 0, %s106
    %s123 = sphi 0, %s107
  $region4: #{_lambda_.21} parent=0 // loop_header_branch
    %12 = sbr.rel (%p10) target = $region8
  $region5: #{_lambda_.21} parent=0 // loop_body
    %s14 = ssub.s32 %s9, 1
    %s15 = ssub.s32 %s9, 2
    %s22 = sadd.s32 1, %s17
    %p23 = scmp.ge.s32.totalorder %s22, 4
    %s24 = scalar_select %p23, 0, %s22
    %s25 = sadd.s32 1, %s16
    %s26 = scalar_select %p23, %s25, %s16
    %p27 = scmp.ge.s32.totalorder %s26, 2
    %s28 = scalar_select %p27, 0, %s26
    %s29 = ssub.s32 %s17, %s24
    %s30 = ssub.s32 %s16, %s28
    %s31 = sor.u32 %s29, %s30
    %p32 = scmp.eq.s32.totalorder %s31, 0
    %s34 = sadd.s32 %s33, 1
    %s35 = scalar_select %p32, %s33, %s34
    %p38 = pneg %p32
    %p39 = scmp.eq.s32.totalorder %s9, 7
    %p40 = por %p38, %p39
    %p41 = scmp.ne.s32.totalorder %s33, %s36
    %p42 = scmp.eq.s32.totalorder %s9, 0
    %p43 = por %p41, %p42
    %p44 = scmp.ne.s32.totalorder %s33, %s36
    %p45 = scmp.eq.s32.totalorder %s14, 7
    %p46 = por %p44, %p45
    %p47 = scmp.ne.s32.totalorder %s36, %s37
    %p48 = scmp.eq.s32.totalorder %s14, 0
    %p49 = por %p47, %p48
    %p50 = scmp.ne.s32.totalorder %s36, %s37
    %p51 = scmp.eq.s32.totalorder %s15, 7
    %p52 = por %p50, %p51
    %p54 = scmp.ne.s32.totalorder %s37, %s53
    %p55 = scmp.eq.s32.totalorder %s15, 0
    %p56 = por %p54, %p55
    %s58 = sadd.s32 %s57, 1
    %p61 = scmp.eq.s32.totalorder %s9, 7
    %p62 = scmp.ne.s32.totalorder %s57, %s59
    %p63 = scmp.eq.s32.totalorder %s9, 0
    %p64 = por %p62, %p63
    %p65 = scmp.ne.s32.totalorder %s57, %s59
    %p66 = scmp.eq.s32.totalorder %s14, 7
    %p67 = por %p65, %p66
    %p68 = scmp.ne.s32.totalorder %s59, %s60
    %p69 = scmp.eq.s32.totalorder %s14, 0
    %p70 = por %p68, %p69
    %p71 = scmp.ne.s32.totalorder %s59, %s60
    %p72 = scmp.eq.s32.totalorder %s15, 7
    %p73 = por %p71, %p72
    %p75 = scmp.ne.s32.totalorder %s60, %s74
    %p76 = scmp.eq.s32.totalorder %s15, 0
    %p77 = por %p75, %p76
    %s79 = sadd.s32 %s78, 1
    %p82 = scmp.eq.s32.totalorder %s9, 7
    %p83 = scmp.ne.s32.totalorder %s78, %s80
    %p84 = scmp.eq.s32.totalorder %s9, 0
    %p85 = por %p83, %p84
    %p86 = scmp.ne.s32.totalorder %s78, %s80
    %p87 = scmp.eq.s32.totalorder %s14, 7
    %p88 = por %p86, %p87
    %p89 = scmp.ne.s32.totalorder %s80, %s81
    %p90 = scmp.eq.s32.totalorder %s14, 0
    %p91 = por %p89, %p90
    %p92 = scmp.ne.s32.totalorder %s80, %s81
    %p93 = scmp.eq.s32.totalorder %s15, 7
    %p94 = por %p92, %p93
    %p96 = scmp.ne.s32.totalorder %s81, %s95
    %p97 = scmp.eq.s32.totalorder %s15, 0
    %p98 = por %p96, %p97
    %s99 = ssub.s32 %s17, %s24
    %s100 = ssub.s32 %s16, %s28
    %s101 = sor.u32 %s99, %s100
    %p102 = scmp.eq.s32.totalorder %s101, 0
    %s104 = sadd.s32 %s103, 1
    %s105 = scalar_select %p102, %s103, %s104
    %p108 = pneg %p102
    %p109 = scmp.eq.s32.totalorder %s9, 7
    %p110 = por %p108, %p109
    %p111 = scmp.ne.s32.totalorder %s103, %s106
    %p112 = scmp.eq.s32.totalorder %s9, 0
    %p113 = por %p111, %p112
    %p114 = scmp.ne.s32.totalorder %s103, %s106
    %p115 = scmp.eq.s32.totalorder %s14, 7
    %p116 = por %p114, %p115
    %p117 = scmp.ne.s32.totalorder %s106, %s107
    %p118 = scmp.eq.s32.totalorder %s14, 0
    %p119 = por %p117, %p118
    %p120 = scmp.ne.s32.totalorder %s106, %s107
    %p121 = scmp.eq.s32.totalorder %s15, 7
    %p122 = por %p120, %p121
    %p124 = scmp.ne.s32.totalorder %s107, %s123
    %p125 = scmp.eq.s32.totalorder %s15, 0
    %p126 = por %p124, %p125
    %p127 = scmp.le.s32.totalorder 1, %s9
    %p128 = scmp.lt.s32.totalorder %s9, 9
    %p129 = pnand %p127, %p128
    %p130 = pneg %p129
    // Predicated region
    $region9: #{_lambda_.21} parent=5 // pred_check
      _
    $region10: #{_lambda_.21} parent=5 // pred_check_branch
      %132 = sbr.rel (%p129) target = $region12
    $region11: #{_lambda_.21} parent=5 // pred_region
      %s133 = ssub.s32 %s9, 1
      // Predicated region
      $region13: #{_lambda_.21} parent=11 // pred_check
        %p134 = pneg %p70
      $region14: #{_lambda_.21} parent=11 // pred_check_branch
        %136 = sbr.rel (%p134) target = $region16
      $region15: #{_lambda_.21} parent=11 // pred_region
        _
      $region16: #{_lambda_.21} parent=11 // pred_fallthru
        _
      // Predicated region
      $region17: #{_lambda_.21} parent=11 // pred_check
        %p137 = pneg %p91
      $region18: #{_lambda_.21} parent=11 // pred_check_branch
        %139 = sbr.rel (%p137) target = $region20
      $region19: #{_lambda_.21} parent=11 // pred_region
        _
      $region20: #{_lambda_.21} parent=11 // pred_fallthru
        _
    $region12: #{_lambda_.21} parent=5 // pred_fallthru
      _
    %p140 = scmp.lt.s32.totalorder %s9, 8
    // Predicated region
    $region21: #{_lambda_.21} parent=5 // pred_check
      %p141 = pneg %p140
    $region22: #{_lambda_.21} parent=5 // pred_check_branch
      %143 = sbr.rel (%p141) target = $region24
    $region23: #{_lambda_.21} parent=5 // pred_region
      // Predicated region
      $region25: #{_lambda_.21} parent=23 // pred_check
        %p144 = pneg %p43
      $region26: #{_lambda_.21} parent=23 // pred_check_branch
        %146 = sbr.rel (%p144) target = $region28
      $region27: #{_lambda_.21} parent=23 // pred_region
        %p147 = scmp.lt.s32.totalorder %s17, 3
        %s148 = scalar_select %p147, %s17, 3
        %p149 = scmp.lt.s32.totalorder %s16, 1
        %s150 = scalar_select %p149, %s16, 1
        %s151 = smul.addr %s148, 2
        %s152 = sadd.s32 %s150, %s151
        %s153 = smul.addr %s152, 4
        %s154 = scalar_lea.vmem %s0, %s153
      $region28: #{_lambda_.21} parent=23 // pred_fallthru
        _
    $region24: #{_lambda_.21} parent=5 // pred_fallthru
      _
    %p155 = scmp.le.s32.totalorder 1, %s9
    %p156 = scmp.lt.s32.totalorder %s9, 9
    %p157 = pnand %p155, %p156
    %p158 = pneg %p157
    // Predicated region
    $region29: #{_lambda_.21} parent=5 // pred_check
      _
    $region30: #{_lambda_.21} parent=5 // pred_check_branch
      %160 = sbr.rel (%p157) target = $region32
    $region31: #{_lambda_.21} parent=5 // pred_region
      %s161 = ssub.s32 %s9, 1
      %p162 = scmp.lt.s32.totalorder %s19, 3
      %s163 = scalar_select %p162, %s19, 3
      %p164 = scmp.lt.s32.totalorder %s18, 1
      %s165 = scalar_select %p164, %s18, 1
      %s166 = smul.addr %s163, 2
      %s167 = sadd.s32 %s165, %s166
      %s168 = smul.addr %s167, 4
      %s169 = scalar_lea.vmem %s0, %s168
      %p170 = pneg %p49
      %p171 = pneg %p46
      %p172 = pneg %p70
      %p173 = pneg %p67
      %p174 = pneg %p91
      %p175 = pneg %p88
      %p176 = pneg %p119
      %p177 = pneg %p116
      %p178 = scmp.lt.s32.totalorder %s19, 3
      %s179 = scalar_select %p178, %s19, 3
      %p180 = scmp.lt.s32.totalorder %s18, 1
      %s181 = scalar_select %p180, %s18, 1
      %s182 = smul.addr %s179, 2
      %s183 = sadd.s32 %s181, %s182
      %s184 = smul.addr %s183, 4
      %s185 = scalar_lea.vmem %s3, %s184
      %p186 = scmp.lt.s32.totalorder %s19, 3
      %s187 = scalar_select %p186, %s19, 3
      %p188 = scmp.lt.s32.totalorder %s18, 1
      %s189 = scalar_select %p188, %s18, 1
      %s190 = smul.addr %s187, 2
      %s191 = sadd.s32 %s189, %s190
      %s192 = smul.addr %s191, 4
      %s193 = scalar_lea.vmem %s0, %s192
      %p194 = scmp.lt.s32.totalorder %s19, 3
      %s195 = scalar_select %p194, %s19, 3
      %p196 = scmp.lt.s32.totalorder %s18, 1
      %s197 = scalar_select %p196, %s18, 1
      %s198 = smul.addr %s195, 2
      %s199 = sadd.s32 %s197, %s198
      %s200 = smul.addr %s199, 4
      %s201 = scalar_lea.vmem %s3, %s200
      %p202 = scmp.eq.s32.totalorder %s19, 0
      // Predicated region
      $region33: #{_lambda_.21} parent=31 // pred_check
        %p203 = pneg %p202
      $region34: #{_lambda_.21} parent=31 // pred_check_branch
        %205 = sbr.rel (%p203) target = $region36
      $region35: #{_lambda_.21} parent=31 // pred_region
        %206 = vst [vmem:[#allocation2] sm:$0xff] 0.0
      $region36: #{_lambda_.21} parent=31 // pred_fallthru
        _
      %v207 = vld [vmem:[%s193] sm:$0xf]
      %v208 = vunpack.c.l.bf16 %v207
      %v209 = vld [vmem:[%s1] sm:$0x1]
      %v211 = vlaneseq
      %v212 = vshrl.u32 %v211, 7
      %v213 = vsub.s32 0, %v212
      %v214 = vrot.slane %v209, %v213
      %v216 = vmul.f32 %v208, %v214
      %v217 = vld [vmem:[%s2] sm:$0x1]
      %v219 = vlaneseq
      %v220 = vshrl.u32 %v219, 7
      %v221 = vsub.s32 0, %v220
      %v222 = vrot.slane %v217, %v221
      %v224 = vadd.f32 %v216, %v222
      %v225 = vld [vmem:[#allocation2] sm:$0xff]
      %vm226 = vcmp.gt.f32.partialorder %v225, 1.0
      %v227 = vsel %vm226, 1, 0
      %v228 = vcvt.s32.f32 %v227
      %v229 = vmul.f32 %v225, 0.9
      %v230 = vadd.f32 %v229, %v224
      %v231 = vsub.f32 %v230, %v228
      %232 = vst [vmem:[#allocation2] sm:$0xff] %v231
      %vm233 = vcmp.gt.f32.partialorder %v231, 1.0
      %v234 = vsel %vm233, 1, 0
      %v235 = vcvt.s32.f32 %v234
      %v236 = vpack.c.bf16 %v235, %v235
      %237 = vst [vmem:[%s201] sm:$0xf] %v236
      %p238 = scmp.lt.s32.totalorder %s19, 3
      %s239 = scalar_select %p238, %s19, 3
      %p240 = scmp.lt.s32.totalorder %s18, 1
      %s241 = scalar_select %p240, %s18, 1
      %s242 = smul.addr %s239, 2
      %s243 = sadd.s32 %s241, %s242
      %s244 = smul.addr %s243, 4
      %s245 = scalar_lea.vmem %s3, %s244
      // Predicated region
      $region37: #{_lambda_.21} parent=31 // pred_check
        %p246 = pneg %p116
      $region38: #{_lambda_.21} parent=31 // pred_check_branch
        %248 = sbr.rel (%p246) target = $region40
      $region39: #{_lambda_.21} parent=31 // pred_region
        _
      $region40: #{_lambda_.21} parent=31 // pred_fallthru
        _
    $region32: #{_lambda_.21} parent=5 // pred_fallthru
      _
    %p249 = scmp.le.s32.totalorder 2, %s9
    // Predicated region
    $region41: #{_lambda_.21} parent=5 // pred_check
      %p250 = pneg %p249
    $region42: #{_lambda_.21} parent=5 // pred_check_branch
      %252 = sbr.rel (%p250) target = $region44
    $region43: #{_lambda_.21} parent=5 // pred_region
      %s253 = ssub.s32 %s9, 2
      // Predicated region
      $region45: #{_lambda_.21} parent=43 // pred_check
        %p254 = pneg %p122
      $region46: #{_lambda_.21} parent=43 // pred_check_branch
        %256 = sbr.rel (%p254) target = $region48
      $region47: #{_lambda_.21} parent=43 // pred_region
        %p257 = scmp.lt.s32.totalorder %s21, 3
        %s258 = scalar_select %p257, %s21, 3
        %p259 = scmp.lt.s32.totalorder %s20, 1
        %s260 = scalar_select %p259, %s20, 1
        %s261 = smul.addr %s258, 2
        %s262 = sadd.s32 %s260, %s261
        %s263 = smul.addr %s262, 4
        %s264 = scalar_lea.vmem %s3, %s263
      $region48: #{_lambda_.21} parent=43 // pred_fallthru
        _
    $region44: #{_lambda_.21} parent=5 // pred_fallthru
      _
  $region6: #{_lambda_.21} parent=0 // loop_footer
    %s13 = sadd.s32 1, %s9
  $region7: #{_lambda_.21} parent=0 // loop_footer_branch
    %8 = sbr.rel target = $region3
  $region8: #{_lambda_.21} parent=0 // loop_exit
    _

// kernel: _lambda_.22
$region0: #{_lambda_.22}
  #allocation0 [shape = 'u32[]', space=smem, size = 0x4, offset = 0x4, fixed_abs, tag = 'smem constant byte address 0x4 - core index']
  #allocation1 [shape = 'u32[144,128]{1,0:T(1,128)}', space=vmem, size = 0x12000, scoped, tag = 'internal scratch']
  %s0 = inlined_call_operand.vmem [shape: bf16[64,1152], index: 0, kind: input, shape index: {}]
  %s1 = inlined_call_operand.vmem [shape: bf16[1152,128], index: 1, kind: input, shape index: {}]
  %s2 = inlined_call_operand.vmem [shape: bf16[64,128], index: 2, kind: output, shape index: {0}]
  %s3 = inlined_call_operand.vmem [shape: f32[2,2,128], index: 3, kind: output, shape index: {1}]
  %4 = xla_tuple %s2, %s3
  %s5 = sld [smem:[#allocation0]]
  $region49: #{_lambda_.22} parent=0
    _
  %s7 = ssub.s32 1, %s5
  %s8 = scalar_select 0, %s7, %s5
  loop: start=0, step=1, limit=4
  $region2: #{_lambda_.22} parent=0 // loop_pre_header
    _
  $region3: #{_lambda_.22} parent=0 // loop_header
    %s10 = sphi 0, %s14
    %p11 = scmp.ge.s32.totalorder %s10, 4
    %s20 = sphi 0, %s22
    %s23 = sphi 0, %s20
    %s24 = sphi 0, %s23
    %s40 = sphi 0, %s24
    %s44 = sphi 0, %s44
    %s46 = sphi 0, %s44
    %s47 = sphi 0, %s46
    %s61 = sphi 0, %s47
    %s67 = sphi 0, %s69
    %s70 = sphi 0, %s67
    %s71 = sphi 0, %s70
    %s87 = sphi 0, %s71
    %s93 = sphi 0, %s95
    %s96 = sphi 0, %s93
    %s97 = sphi 0, %s96
    %s113 = sphi 0, %s97
  $region4: #{_lambda_.22} parent=0 // loop_header_branch
    %13 = sbr.rel (%p11) target = $region8
  $region5: #{_lambda_.22} parent=0 // loop_body
    %s15 = ssub.s32 %s10, 1
    %s16 = ssub.s32 %s10, 2
    %s17 = sadd.s32 %s10, 1
    %s18 = ssub.s32 %s10, %s17
    %p19 = scmp.eq.s32.totalorder %s18, 0
    %s21 = sadd.s32 %s20, 1
    %s22 = scalar_select %p19, %s20, %s21
    %p25 = pneg %p19
    %p26 = scmp.eq.s32.totalorder %s10, 1
    %p27 = por %p25, %p26
    %p28 = scmp.ne.s32.totalorder %s20, %s23
    %p29 = scmp.eq.s32.totalorder %s10, 0
    %p30 = por %p28, %p29
    %p31 = scmp.ne.s32.totalorder %s20, %s23
    %p32 = scmp.eq.s32.totalorder %s15, 1
    %p33 = por %p31, %p32
    %p34 = scmp.ne.s32.totalorder %s23, %s24
    %p35 = scmp.eq.s32.totalorder %s15, 0
    %p36 = por %p34, %p35
    %p37 = scmp.ne.s32.totalorder %s23, %s24
    %p38 = scmp.eq.s32.totalorder %s16, 1
    %p39 = por %p37, %p38
    %p41 = scmp.ne.s32.totalorder %s24, %s40
    %p42 = scmp.eq.s32.totalorder %s16, 0
    %p43 = por %p41, %p42
    %s45 = sadd.s32 %s44, 1
    %p48 = scmp.eq.s32.totalorder %s10, 1
    %p49 = scmp.ne.s32.totalorder %s44, %s46
    %p50 = scmp.eq.s32.totalorder %s10, 0
    %p51 = por %p49, %p50
    %p52 = scmp.ne.s32.totalorder %s44, %s46
    %p53 = scmp.eq.s32.totalorder %s15, 1
    %p54 = por %p52, %p53
    %p55 = scmp.ne.s32.totalorder %s46, %s47
    %p56 = scmp.eq.s32.totalorder %s15, 0
    %p57 = por %p55, %p56
    %p58 = scmp.ne.s32.totalorder %s46, %s47
    %p59 = scmp.eq.s32.totalorder %s16, 1
    %p60 = por %p58, %p59
    %p62 = scmp.ne.s32.totalorder %s47, %s61
    %p63 = scmp.eq.s32.totalorder %s16, 0
    %p64 = por %p62, %p63
    %s65 = ssub.s32 %s10, %s17
    %p66 = scmp.eq.s32.totalorder %s65, 0
    %s68 = sadd.s32 %s67, 1
    %s69 = scalar_select %p66, %s67, %s68
    %p72 = pneg %p66
    %p73 = scmp.eq.s32.totalorder %s10, 1
    %p74 = por %p72, %p73
    %p75 = scmp.ne.s32.totalorder %s67, %s70
    %p76 = scmp.eq.s32.totalorder %s10, 0
    %p77 = por %p75, %p76
    %p78 = scmp.ne.s32.totalorder %s67, %s70
    %p79 = scmp.eq.s32.totalorder %s15, 1
    %p80 = por %p78, %p79
    %p81 = scmp.ne.s32.totalorder %s70, %s71
    %p82 = scmp.eq.s32.totalorder %s15, 0
    %p83 = por %p81, %p82
    %p84 = scmp.ne.s32.totalorder %s70, %s71
    %p85 = scmp.eq.s32.totalorder %s16, 1
    %p86 = por %p84, %p85
    %p88 = scmp.ne.s32.totalorder %s71, %s87
    %p89 = scmp.eq.s32.totalorder %s16, 0
    %p90 = por %p88, %p89
    %s91 = ssub.s32 %s10, %s17
    %p92 = scmp.eq.s32.totalorder %s91, 0
    %s94 = sadd.s32 %s93, 1
    %s95 = scalar_select %p92, %s93, %s94
    %p98 = pneg %p92
    %p99 = scmp.eq.s32.totalorder %s10, 1
    %p100 = por %p98, %p99
    %p101 = scmp.ne.s32.totalorder %s93, %s96
    %p102 = scmp.eq.s32.totalorder %s10, 0
    %p103 = por %p101, %p102
    %p104 = scmp.ne.s32.totalorder %s93, %s96
    %p105 = scmp.eq.s32.totalorder %s15, 1
    %p106 = por %p104, %p105
    %p107 = scmp.ne.s32.totalorder %s96, %s97
    %p108 = scmp.eq.s32.totalorder %s15, 0
    %p109 = por %p107, %p108
    %p110 = scmp.ne.s32.totalorder %s96, %s97
    %p111 = scmp.eq.s32.totalorder %s16, 1
    %p112 = por %p110, %p111
    %p114 = scmp.ne.s32.totalorder %s97, %s113
    %p115 = scmp.eq.s32.totalorder %s16, 0
    %p116 = por %p114, %p115
    %p117 = scmp.le.s32.totalorder 1, %s10
    %p118 = scmp.lt.s32.totalorder %s10, 3
    %p119 = pnand %p117, %p118
    %p120 = pneg %p119
    // Predicated region
    $region9: #{_lambda_.22} parent=5 // pred_check
      _
    $region10: #{_lambda_.22} parent=5 // pred_check_branch
      %122 = sbr.rel (%p119) target = $region12
    $region11: #{_lambda_.22} parent=5 // pred_region
      %s123 = ssub.s32 %s10, 1
      // Predicated region
      $region13: #{_lambda_.22} parent=11 // pred_check
        %p124 = pneg %p57
      $region14: #{_lambda_.22} parent=11 // pred_check_branch
        %126 = sbr.rel (%p124) target = $region16
      $region15: #{_lambda_.22} parent=11 // pred_region
        _
      $region16: #{_lambda_.22} parent=11 // pred_fallthru
        _
    $region12: #{_lambda_.22} parent=5 // pred_fallthru
      _
    %p127 = scmp.lt.s32.totalorder %s10, 2
    // Predicated region
    $region17: #{_lambda_.22} parent=5 // pred_check
      %p128 = pneg %p127
    $region18: #{_lambda_.22} parent=5 // pred_check_branch
      %130 = sbr.rel (%p128) target = $region20
    $region19: #{_lambda_.22} parent=5 // pred_region
      // Predicated region
      $region21: #{_lambda_.22} parent=19 // pred_check
        %p131 = pneg %p30
      $region22: #{_lambda_.22} parent=19 // pred_check_branch
        %133 = sbr.rel (%p131) target = $region24
      $region23: #{_lambda_.22} parent=19 // pred_region
        %s134 = smul.u32 4, %s10
        %p135 = scmp.lt.s32.totalorder %s134, 7
        %s136 = scalar_select %p135, %s134, 7
        %s137 = smul.addr %s136, 9
        %s138 = smul.addr %s137, 4
        %s139 = scalar_lea.vmem %s0, %s138
        %s140 = smul.u32 4, %s10
      $region24: #{_lambda_.22} parent=19 // pred_fallthru
        _
    $region20: #{_lambda_.22} parent=5 // pred_fallthru
      _
    %p141 = scmp.le.s32.totalorder 1, %s10
    %p142 = scmp.lt.s32.totalorder %s10, 3
    %p143 = pnand %p141, %p142
    %p144 = pneg %p143
    // Predicated region
    $region25: #{_lambda_.22} parent=5 // pred_check
      _
    $region26: #{_lambda_.22} parent=5 // pred_check_branch
      %146 = sbr.rel (%p143) target = $region28
    $region27: #{_lambda_.22} parent=5 // pred_region
      %s147 = ssub.s32 %s10, 1
      %s148 = smul.u32 4, %s15
      %p149 = scmp.lt.s32.totalorder %s148, 7
      %s150 = scalar_select %p149, %s148, 7
      %s151 = smul.addr %s150, 9
      %s152 = smul.addr %s151, 4
      %s153 = scalar_lea.vmem %s0, %s152
      %p154 = pneg %p36
      %p155 = pneg %p33
      %p156 = pneg %p57
      %p157 = pneg %p54
      %p158 = pneg %p83
      %p159 = pneg %p80
      %s160 = smul.u32 4, %s15
      %p161 = scmp.lt.s32.totalorder %s160, 7
      %s162 = scalar_select %p161, %s160, 7
      %s163 = smul.addr %s162, 4
      %s164 = scalar_lea.vmem %s2, %s163
      %p165 = pneg %p109
      %p166 = pneg %p106
      %p167 = scmp.lt.s32.totalorder %s15, 1
      %s168 = scalar_select %p167, %s15, 1
      %s169 = smul.addr %s168, 2
      %s170 = scalar_lea.vmem %s3, %s169
      %s171 = smul.u32 4, %s15
      %p172 = scmp.lt.s32.totalorder %s171, 7
      %s173 = scalar_select %p172, %s171, 7
      %s174 = smul.addr %s173, 9
      %s175 = smul.addr %s174, 4
      %s176 = scalar_lea.vmem %s0, %s175
      %s177 = smul.u32 4, %s15
      %s178 = smul.u32 4, %s15
      %p179 = scmp.lt.s32.totalorder %s178, 7
      %s180 = scalar_select %p179, %s178, 7
      %s181 = smul.addr %s180, 4
      %s182 = scalar_lea.vmem %s2, %s181
      %s183 = smul.u32 4, %s15
      %p184 = scmp.lt.s32.totalorder %s15, 1
      %s185 = scalar_select %p184, %s15, 1
      %s186 = smul.addr %s185, 2
      %s187 = scalar_lea.vmem %s3, %s186
      %v189 = vld [vmem:[%s176] sm:$0xff]
      %v190 = vld [vmem:[%s176 + $0x8] sm:$0xff]
      %v191 = vld [vmem:[%s176 + $0x10] sm:$0xff]
      %v192 = vld [vmem:[%s176 + $0x18] sm:$0xff]
      %v193 = vld [vmem:[%s176 + $0x20] sm:$0xf]
      %v194 = vld [vmem:[%s176 + $0x24] sm:$0xff]
      %v195 = vld [vmem:[%s176 + $0x2c] sm:$0xff]
      %v196 = vld [vmem:[%s176 + $0x34] sm:$0xff]
      %v197 = vld [vmem:[%s176 + $0x3c] sm:$0xff]
      %v198 = vld [vmem:[%s176 + $0x44] sm:$0xf]
      %v199 = vld [vmem:[%s176 + $0x48] sm:$0xff]
      %v200 = vld [vmem:[%s176 + $0x50] sm:$0xff]
      %v201 = vld [vmem:[%s176 + $0x58] sm:$0xff]
      %v202 = vld [vmem:[%s176 + $0x60] sm:$0xff]
      %v203 = vld [vmem:[%s176 + $0x68] sm:$0xf]
      %v204 = vld [vmem:[%s176 + $0x6c] sm:$0xff]
      %v205 = vld [vmem:[%s176 + $0x74] sm:$0xff]
      %v206 = vld [vmem:[%s176 + $0x7c] sm:$0xff]
      %v207 = vld [vmem:[%s176 + $0x84] sm:$0xff]
      %v208 = vld [vmem:[%s176 + $0x8c] sm:$0xf]
      %v209 = vld [vmem:[%s1] sm:$0xf]
      %v210 = vld [vmem:[%s1 + $0x4] sm:$0xf]
      %v211 = vld [vmem:[%s1 + $0x8] sm:$0xf]
      %v212 = vld [vmem:[%s1 + $0xc] sm:$0xf]
      %v213 = vld [vmem:[%s1 + $0x10] sm:$0xf]
      %v214 = vld [vmem:[%s1 + $0x14] sm:$0xf]
      %v215 = vld [vmem:[%s1 + $0x18] sm:$0xf]
      %v216 = vld [vmem:[%s1 + $0x1c] sm:$0xf]
      %v217 = vld [vmem:[%s1 + $0x20] sm:$0xf]
      %v218 = vld [vmem:[%s1 + $0x24] sm:$0xf]
      %v219 = vld [vmem:[%s1 + $0x28] sm:$0xf]
      %v220 = vld [vmem:[%s1 + $0x2c] sm:$0xf]
      %v221 = vld [vmem:[%s1 + $0x30] sm:$0xf]
      %v222 = vld [vmem:[%s1 + $0x34] sm:$0xf]
      %v223 = vld [vmem:[%s1 + $0x38] sm:$0xf]
      %v224 = vld [vmem:[%s1 + $0x3c] sm:$0xf]
      %v225 = vld [vmem:[%s1 + $0x40] sm:$0xf]
      %v226 = vld [vmem:[%s1 + $0x44] sm:$0xf]
      %v227 = vld [vmem:[%s1 + $0x48] sm:$0xf]
      %v228 = vld [vmem:[%s1 + $0x4c] sm:$0xf]
      %v229 = vld [vmem:[%s1 + $0x50] sm:$0xf]
      %v230 = vld [vmem:[%s1 + $0x54] sm:$0xf]
      %v231 = vld [vmem:[%s1 + $0x58] sm:$0xf]
      %v232 = vld [vmem:[%s1 + $0x5c] sm:$0xf]
      %v233 = vld [vmem:[%s1 + $0x60] sm:$0xf]
      %v234 = vld [vmem:[%s1 + $0x64] sm:$0xf]
      %v235 = vld [vmem:[%s1 + $0x68] sm:$0xf]
      %v236 = vld [vmem:[%s1 + $0x6c] sm:$0xf]
      %v237 = vld [vmem:[%s1 + $0x70] sm:$0xf]
      %v238 = vld [vmem:[%s1 + $0x74] sm:$0xf]
      %v239 = vld [vmem:[%s1 + $0x78] sm:$0xf]
      %v240 = vld [vmem:[%s1 + $0x7c] sm:$0xf]
      %v241 = vld [vmem:[%s1 + $0x80] sm:$0xf]
      %v242 = vld [vmem:[%s1 + $0x84] sm:$0xf]
      %v243 = vld [vmem:[%s1 + $0x88] sm:$0xf]
      %v244 = vld [vmem:[%s1 + $0x8c] sm:$0xf]
      %v245 = vld [vmem:[%s1 + $0x90] sm:$0xf]
      %v246 = vld [vmem:[%s1 + $0x94] sm:$0xf]
      %v247 = vld [vmem:[%s1 + $0x98] sm:$0xf]
      %v248 = vld [vmem:[%s1 + $0x9c] sm:$0xf]
      %v249 = vld [vmem:[%s1 + $0xa0] sm:$0xf]
      %v250 = vld [vmem:[%s1 + $0xa4] sm:$0xf]
      %v251 = vld [vmem:[%s1 + $0xa8] sm:$0xf]
      %v252 = vld [vmem:[%s1 + $0xac] sm:$0xf]
      %v253 = vld [vmem:[%s1 + $0xb0] sm:$0xf]
      %v254 = vld [vmem:[%s1 + $0xb4] sm:$0xf]
      %v255 = vld [vmem:[%s1 + $0xb8] sm:$0xf]
      %v256 = vld [vmem:[%s1 + $0xbc] sm:$0xf]
      %v257 = vld [vmem:[%s1 + $0xc0] sm:$0xf]
      %v258 = vld [vmem:[%s1 + $0xc4] sm:$0xf]
      %v259 = vld [vmem:[%s1 + $0xc8] sm:$0xf]
      %v260 = vld [vmem:[%s1 + $0xcc] sm:$0xf]
      %v261 = vld [vmem:[%s1 + $0xd0] sm:$0xf]
      %v262 = vld [vmem:[%s1 + $0xd4] sm:$0xf]
      %v263 = vld [vmem:[%s1 + $0xd8] sm:$0xf]
      %v264 = vld [vmem:[%s1 + $0xdc] sm:$0xf]
      %v265 = vld [vmem:[%s1 + $0xe0] sm:$0xf]
      %v266 = vld [vmem:[%s1 + $0xe4] sm:$0xf]
      %v267 = vld [vmem:[%s1 + $0xe8] sm:$0xf]
      %v268 = vld [vmem:[%s1 + $0xec] sm:$0xf]
      %v269 = vld [vmem:[%s1 + $0xf0] sm:$0xf]
      %v270 = vld [vmem:[%s1 + $0xf4] sm:$0xf]
      %v271 = vld [vmem:[%s1 + $0xf8] sm:$0xf]
      %v272 = vld [vmem:[%s1 + $0xfc] sm:$0xf]
      %v273 = vld [vmem:[%s1 + $0x100] sm:$0xf]
      %v274 = vld [vmem:[%s1 + $0x104] sm:$0xf]
      %v275 = vld [vmem:[%s1 + $0x108] sm:$0xf]
      %v276 = vld [vmem:[%s1 + $0x10c] sm:$0xf]
      %v277 = vld [vmem:[%s1 + $0x110] sm:$0xf]
      %v278 = vld [vmem:[%s1 + $0x114] sm:$0xf]
      %v279 = vld [vmem:[%s1 + $0x118] sm:$0xf]
      %v280 = vld [vmem:[%s1 + $0x11c] sm:$0xf]
      %v281 = vld [vmem:[%s1 + $0x120] sm:$0xf]
      %v282 = vld [vmem:[%s1 + $0x124] sm:$0xf]
      %v283 = vld [vmem:[%s1 + $0x128] sm:$0xf]
      %v284 = vld [vmem:[%s1 + $0x12c] sm:$0xf]
      %v285 = vld [vmem:[%s1 + $0x130] sm:$0xf]
      %v286 = vld [vmem:[%s1 + $0x134] sm:$0xf]
      %v287 = vld [vmem:[%s1 + $0x138] sm:$0xf]
      %v288 = vld [vmem:[%s1 + $0x13c] sm:$0xf]
      %v289 = vld [vmem:[%s1 + $0x140] sm:$0xf]
      %v290 = vld [vmem:[%s1 + $0x144] sm:$0xf]
      %v291 = vld [vmem:[%s1 + $0x148] sm:$0xf]
      %v292 = vld [vmem:[%s1 + $0x14c] sm:$0xf]
      %v293 = vld [vmem:[%s1 + $0x150] sm:$0xf]
      %v294 = vld [vmem:[%s1 + $0x154] sm:$0xf]
      %v295 = vld [vmem:[%s1 + $0x158] sm:$0xf]
      %v296 = vld [vmem:[%s1 + $0x15c] sm:$0xf]
      %v297 = vld [vmem:[%s1 + $0x160] sm:$0xf]
      %v298 = vld [vmem:[%s1 + $0x164] sm:$0xf]
      %v299 = vld [vmem:[%s1 + $0x168] sm:$0xf]
      %v300 = vld [vmem:[%s1 + $0x16c] sm:$0xf]
      %v301 = vld [vmem:[%s1 + $0x170] sm:$0xf]
      %v302 = vld [vmem:[%s1 + $0x174] sm:$0xf]
      %v303 = vld [vmem:[%s1 + $0x178] sm:$0xf]
      %v304 = vld [vmem:[%s1 + $0x17c] sm:$0xf]
      %v305 = vld [vmem:[%s1 + $0x180] sm:$0xf]
      %v306 = vld [vmem:[%s1 + $0x184] sm:$0xf]
      %v307 = vld [vmem:[%s1 + $0x188] sm:$0xf]
      %v308 = vld [vmem:[%s1 + $0x18c] sm:$0xf]
      %v309 = vld [vmem:[%s1 + $0x190] sm:$0xf]
      %v310 = vld [vmem:[%s1 + $0x194] sm:$0xf]
      %v311 = vld [vmem:[%s1 + $0x198] sm:$0xf]
      %v312 = vld [vmem:[%s1 + $0x19c] sm:$0xf]
      %v313 = vld [vmem:[%s1 + $0x1a0] sm:$0xf]
      %v314 = vld [vmem:[%s1 + $0x1a4] sm:$0xf]
      %v315 = vld [vmem:[%s1 + $0x1a8] sm:$0xf]
      %v316 = vld [vmem:[%s1 + $0x1ac] sm:$0xf]
      %v317 = vld [vmem:[%s1 + $0x1b0] sm:$0xf]
      %v318 = vld [vmem:[%s1 + $0x1b4] sm:$0xf]
      %v319 = vld [vmem:[%s1 + $0x1b8] sm:$0xf]
      %v320 = vld [vmem:[%s1 + $0x1bc] sm:$0xf]
      %v321 = vld [vmem:[%s1 + $0x1c0] sm:$0xf]
      %v322 = vld [vmem:[%s1 + $0x1c4] sm:$0xf]
      %v323 = vld [vmem:[%s1 + $0x1c8] sm:$0xf]
      %v324 = vld [vmem:[%s1 + $0x1cc] sm:$0xf]
      %v325 = vld [vmem:[%s1 + $0x1d0] sm:$0xf]
      %v326 = vld [vmem:[%s1 + $0x1d4] sm:$0xf]
      %v327 = vld [vmem:[%s1 + $0x1d8] sm:$0xf]
      %v328 = vld [vmem:[%s1 + $0x1dc] sm:$0xf]
      %v329 = vld [vmem:[%s1 + $0x1e0] sm:$0xf]
      %v330 = vld [vmem:[%s1 + $0x1e4] sm:$0xf]
      %v331 = vld [vmem:[%s1 + $0x1e8] sm:$0xf]
      %v332 = vld [vmem:[%s1 + $0x1ec] sm:$0xf]
      %v333 = vld [vmem:[%s1 + $0x1f0] sm:$0xf]
      %v334 = vld [vmem:[%s1 + $0x1f4] sm:$0xf]
      %v335 = vld [vmem:[%s1 + $0x1f8] sm:$0xf]
      %v336 = vld [vmem:[%s1 + $0x1fc] sm:$0xf]
      %v337 = vld [vmem:[%s1 + $0x200] sm:$0xf]
      %v338 = vld [vmem:[%s1 + $0x204] sm:$0xf]
      %v339 = vld [vmem:[%s1 + $0x208] sm:$0xf]
      %v340 = vld [vmem:[%s1 + $0x20c] sm:$0xf]
      %v341 = vld [vmem:[%s1 + $0x210] sm:$0xf]
      %v342 = vld [vmem:[%s1 + $0x214] sm:$0xf]
      %v343 = vld [vmem:[%s1 + $0x218] sm:$0xf]
      %v344 = vld [vmem:[%s1 + $0x21c] sm:$0xf]
      %v345 = vld [vmem:[%s1 + $0x220] sm:$0xf]
      %v346 = vld [vmem:[%s1 + $0x224] sm:$0xf]
      %v347 = vld [vmem:[%s1 + $0x228] sm:$0xf]
      %v348 = vld [vmem:[%s1 + $0x22c] sm:$0xf]
      %v349 = vld [vmem:[%s1 + $0x230] sm:$0xf]
      %v350 = vld [vmem:[%s1 + $0x234] sm:$0xf]
      %v351 = vld [vmem:[%s1 + $0x238] sm:$0xf]
      %v352 = vld [vmem:[%s1 + $0x23c] sm:$0xf]
      %v373 = vunpack.c.l.b16 %v189
      %v374 = vunpack.c.h.b16 %v189
      %v375 = vunpack.c.l.b16 %v190
      %v376 = vunpack.c.h.b16 %v190
      %v377 = vunpack.c.l.b16 %v191
      %v378 = vunpack.c.h.b16 %v191
      %v379 = vunpack.c.l.b16 %v192
      %v380 = vunpack.c.h.b16 %v192
      %v381 = vunpack.c.l.b16 %v193
      %v382 = vunpack.c.l.b16 %v194
      %v383 = vunpack.c.h.b16 %v194
      %v384 = vunpack.c.l.b16 %v195
      %v385 = vunpack.c.h.b16 %v195
      %v386 = vunpack.c.l.b16 %v196
      %v387 = vunpack.c.h.b16 %v196
      %v388 = vunpack.c.l.b16 %v197
      %v389 = vunpack.c.h.b16 %v197
      %v390 = vunpack.c.l.b16 %v198
      %v391 = vunpack.c.l.b16 %v199
      %v392 = vunpack.c.h.b16 %v199
      %v393 = vunpack.c.l.b16 %v200
      %v394 = vunpack.c.h.b16 %v200
      %v395 = vunpack.c.l.b16 %v201
      %v396 = vunpack.c.h.b16 %v201
      %v397 = vunpack.c.l.b16 %v202
      %v398 = vunpack.c.h.b16 %v202
      %v399 = vunpack.c.l.b16 %v203
      %v400 = vunpack.c.l.b16 %v204
      %v401 = vunpack.c.h.b16 %v204
      %v402 = vunpack.c.l.b16 %v205
      %v403 = vunpack.c.h.b16 %v205
      %v404 = vunpack.c.l.b16 %v206
      %v405 = vunpack.c.h.b16 %v206
      %v406 = vunpack.c.l.b16 %v207
      %v407 = vunpack.c.h.b16 %v207
      %v408 = vunpack.c.l.b16 %v208
      %v409 = vpack.c.b16 %v382, %v373
      %v410 = vpack.c.b16 %v383, %v374
      %v411 = vpack.c.b16 %v384, %v375
      %v412 = vpack.c.b16 %v385, %v376
      %v413 = vpack.c.b16 %v386, %v377
      %v414 = vpack.c.b16 %v387, %v378
      %v415 = vpack.c.b16 %v388, %v379
      %v416 = vpack.c.b16 %v389, %v380
      %v417 = vpack.c.b16 %v390, %v381
      %v418 = vpack.c.b16 %v400, %v391
      %v419 = vpack.c.b16 %v401, %v392
      %v420 = vpack.c.b16 %v402, %v393
      %v421 = vpack.c.b16 %v403, %v394
      %v422 = vpack.c.b16 %v404, %v395
      %v423 = vpack.c.b16 %v405, %v396
      %v424 = vpack.c.b16 %v406, %v397
      %v425 = vpack.c.b16 %v407, %v398
      %v426 = vpack.c.b16 %v408, %v399
      %v589 = vunpack.c.l.b16 %v209
      %v590 = vunpack.c.l.b16 %v210
      %v591 = vunpack.c.l.b16 %v211
      %v592 = vunpack.c.l.b16 %v212
      %v593 = vunpack.c.l.b16 %v213
      %v594 = vunpack.c.l.b16 %v214
      %v595 = vunpack.c.l.b16 %v215
      %v596 = vunpack.c.l.b16 %v216
      %v597 = vunpack.c.l.b16 %v217
      %v598 = vunpack.c.l.b16 %v218
      %v599 = vunpack.c.l.b16 %v219
      %v600 = vunpack.c.l.b16 %v220
      %v601 = vunpack.c.l.b16 %v221
      %v602 = vunpack.c.l.b16 %v222
      %v603 = vunpack.c.l.b16 %v223
      %v604 = vunpack.c.l.b16 %v224
      %v605 = vunpack.c.l.b16 %v225
      %v606 = vunpack.c.l.b16 %v226
      %v607 = vunpack.c.l.b16 %v227
      %v608 = vunpack.c.l.b16 %v228
      %v609 = vunpack.c.l.b16 %v229
      %v610 = vunpack.c.l.b16 %v230
      %v611 = vunpack.c.l.b16 %v231
      %v612 = vunpack.c.l.b16 %v232
      %v613 = vunpack.c.l.b16 %v233
      %v614 = vunpack.c.l.b16 %v234
      %v615 = vunpack.c.l.b16 %v235
      %v616 = vunpack.c.l.b16 %v236
      %v617 = vunpack.c.l.b16 %v237
      %v618 = vunpack.c.l.b16 %v238
      %v619 = vunpack.c.l.b16 %v239
      %v620 = vunpack.c.l.b16 %v240
      %v621 = vunpack.c.l.b16 %v241
      %v622 = vunpack.c.l.b16 %v242
      %v623 = vunpack.c.l.b16 %v243
      %v624 = vunpack.c.l.b16 %v244
      %v625 = vunpack.c.l.b16 %v245
      %v626 = vunpack.c.l.b16 %v246
      %v627 = vunpack.c.l.b16 %v247
      %v628 = vunpack.c.l.b16 %v248
      %v629 = vunpack.c.l.b16 %v249
      %v630 = vunpack.c.l.b16 %v250
      %v631 = vunpack.c.l.b16 %v251
      %v632 = vunpack.c.l.b16 %v252
      %v633 = vunpack.c.l.b16 %v253
      %v634 = vunpack.c.l.b16 %v254
      %v635 = vunpack.c.l.b16 %v255
      %v636 = vunpack.c.l.b16 %v256
      %v637 = vunpack.c.l.b16 %v257
      %v638 = vunpack.c.l.b16 %v258
      %v639 = vunpack.c.l.b16 %v259
      %v640 = vunpack.c.l.b16 %v260
      %v641 = vunpack.c.l.b16 %v261
      %v642 = vunpack.c.l.b16 %v262
      %v643 = vunpack.c.l.b16 %v263
      %v644 = vunpack.c.l.b16 %v264
      %v645 = vunpack.c.l.b16 %v265
      %v646 = vunpack.c.l.b16 %v266
      %v647 = vunpack.c.l.b16 %v267
      %v648 = vunpack.c.l.b16 %v268
      %v649 = vunpack.c.l.b16 %v269
      %v650 = vunpack.c.l.b16 %v270
      %v651 = vunpack.c.l.b16 %v271
      %v652 = vunpack.c.l.b16 %v272
      %v653 = vunpack.c.l.b16 %v273
      %v654 = vunpack.c.l.b16 %v274
      %v655 = vunpack.c.l.b16 %v275
      %v656 = vunpack.c.l.b16 %v276
      %v657 = vunpack.c.l.b16 %v277
      %v658 = vunpack.c.l.b16 %v278
      %v659 = vunpack.c.l.b16 %v279
      %v660 = vunpack.c.l.b16 %v280
      %v661 = vunpack.c.l.b16 %v281
      %v662 = vunpack.c.l.b16 %v282
      %v663 = vunpack.c.l.b16 %v283
      %v664 = vunpack.c.l.b16 %v284
      %v665 = vunpack.c.l.b16 %v285
      %v666 = vunpack.c.l.b16 %v286
      %v667 = vunpack.c.l.b16 %v287
      %v668 = vunpack.c.l.b16 %v288
      %v669 = vunpack.c.l.b16 %v289
      %v670 = vunpack.c.l.b16 %v290
      %v671 = vunpack.c.l.b16 %v291
      %v672 = vunpack.c.l.b16 %v292
      %v673 = vunpack.c.l.b16 %v293
      %v674 = vunpack.c.l.b16 %v294
      %v675 = vunpack.c.l.b16 %v295
      %v676 = vunpack.c.l.b16 %v296
      %v677 = vunpack.c.l.b16 %v297
      %v678 = vunpack.c.l.b16 %v298
      %v679 = vunpack.c.l.b16 %v299
      %v680 = vunpack.c.l.b16 %v300
      %v681 = vunpack.c.l.b16 %v301
      %v682 = vunpack.c.l.b16 %v302
      %v683 = vunpack.c.l.b16 %v303
      %v684 = vunpack.c.l.b16 %v304
      %v685 = vunpack.c.l.b16 %v305
      %v686 = vunpack.c.l.b16 %v306
      %v687 = vunpack.c.l.b16 %v307
      %v688 = vunpack.c.l.b16 %v308
      %v689 = vunpack.c.l.b16 %v309
      %v690 = vunpack.c.l.b16 %v310
      %v691 = vunpack.c.l.b16 %v311
      %v692 = vunpack.c.l.b16 %v312
      %v693 = vunpack.c.l.b16 %v313
      %v694 = vunpack.c.l.b16 %v314
      %v695 = vunpack.c.l.b16 %v315
      %v696 = vunpack.c.l.b16 %v316
      %v697 = vunpack.c.l.b16 %v317
      %v698 = vunpack.c.l.b16 %v318
      %v699 = vunpack.c.l.b16 %v319
      %v700 = vunpack.c.l.b16 %v320
      %v701 = vunpack.c.l.b16 %v321
      %v702 = vunpack.c.l.b16 %v322
      %v703 = vunpack.c.l.b16 %v323
      %v704 = vunpack.c.l.b16 %v324
      %v705 = vunpack.c.l.b16 %v325
      %v706 = vunpack.c.l.b16 %v326
      %v707 = vunpack.c.l.b16 %v327
      %v708 = vunpack.c.l.b16 %v328
      %v709 = vunpack.c.l.b16 %v329
      %v710 = vunpack.c.l.b16 %v330
      %v711 = vunpack.c.l.b16 %v331
      %v712 = vunpack.c.l.b16 %v332
      %v713 = vunpack.c.l.b16 %v333
      %v714 = vunpack.c.l.b16 %v334
      %v715 = vunpack.c.l.b16 %v335
      %v716 = vunpack.c.l.b16 %v336
      %v717 = vunpack.c.l.b16 %v337
      %v718 = vunpack.c.l.b16 %v338
      %v719 = vunpack.c.l.b16 %v339
      %v720 = vunpack.c.l.b16 %v340
      %v721 = vunpack.c.l.b16 %v341
      %v722 = vunpack.c.l.b16 %v342
      %v723 = vunpack.c.l.b16 %v343
      %v724 = vunpack.c.l.b16 %v344
      %v725 = vunpack.c.l.b16 %v345
      %v726 = vunpack.c.l.b16 %v346
      %v727 = vunpack.c.l.b16 %v347
      %v728 = vunpack.c.l.b16 %v348
      %v729 = vunpack.c.l.b16 %v349
      %v730 = vunpack.c.l.b16 %v350
      %v731 = vunpack.c.l.b16 %v351
      %v732 = vunpack.c.l.b16 %v352
      %v733 = vpack.c.b16 %v590, %v589
      %v734 = vpack.c.b16 %v592, %v591
      %v735 = vpack.c.b16 %v594, %v593
      %v736 = vpack.c.b16 %v596, %v595
      %v737 = vpack.c.b16 %v598, %v597
      %v738 = vpack.c.b16 %v600, %v599
      %v739 = vpack.c.b16 %v602, %v601
      %v740 = vpack.c.b16 %v604, %v603
      %v741 = vpack.c.b16 %v606, %v605
      %v742 = vpack.c.b16 %v608, %v607
      %v743 = vpack.c.b16 %v610, %v609
      %v744 = vpack.c.b16 %v612, %v611
      %v745 = vpack.c.b16 %v614, %v613
      %v746 = vpack.c.b16 %v616, %v615
      %v747 = vpack.c.b16 %v618, %v617
      %v748 = vpack.c.b16 %v620, %v619
      %v749 = vpack.c.b16 %v622, %v621
      %v750 = vpack.c.b16 %v624, %v623
      %v751 = vpack.c.b16 %v626, %v625
      %v752 = vpack.c.b16 %v628, %v627
      %v753 = vpack.c.b16 %v630, %v629
      %v754 = vpack.c.b16 %v632, %v631
      %v755 = vpack.c.b16 %v634, %v633
      %v756 = vpack.c.b16 %v636, %v635
      %v757 = vpack.c.b16 %v638, %v637
      %v758 = vpack.c.b16 %v640, %v639
      %v759 = vpack.c.b16 %v642, %v641
      %v760 = vpack.c.b16 %v644, %v643
      %v761 = vpack.c.b16 %v646, %v645
      %v762 = vpack.c.b16 %v648, %v647
      %v763 = vpack.c.b16 %v650, %v649
      %v764 = vpack.c.b16 %v652, %v651
      %v765 = vpack.c.b16 %v654, %v653
      %v766 = vpack.c.b16 %v656, %v655
      %v767 = vpack.c.b16 %v658, %v657
      %v768 = vpack.c.b16 %v660, %v659
      %v769 = vpack.c.b16 %v662, %v661
      %v770 = vpack.c.b16 %v664, %v663
      %v771 = vpack.c.b16 %v666, %v665
      %v772 = vpack.c.b16 %v668, %v667
      %v773 = vpack.c.b16 %v670, %v669
      %v774 = vpack.c.b16 %v672, %v671
      %v775 = vpack.c.b16 %v674, %v673
      %v776 = vpack.c.b16 %v676, %v675
      %v777 = vpack.c.b16 %v678, %v677
      %v778 = vpack.c.b16 %v680, %v679
      %v779 = vpack.c.b16 %v682, %v681
      %v780 = vpack.c.b16 %v684, %v683
      %v781 = vpack.c.b16 %v686, %v685
      %v782 = vpack.c.b16 %v688, %v687
      %v783 = vpack.c.b16 %v690, %v689
      %v784 = vpack.c.b16 %v692, %v691
      %v785 = vpack.c.b16 %v694, %v693
      %v786 = vpack.c.b16 %v696, %v695
      %v787 = vpack.c.b16 %v698, %v697
      %v788 = vpack.c.b16 %v700, %v699
      %v789 = vpack.c.b16 %v702, %v701
      %v790 = vpack.c.b16 %v704, %v703
      %v791 = vpack.c.b16 %v706, %v705
      %v792 = vpack.c.b16 %v708, %v707
      %v793 = vpack.c.b16 %v710, %v709
      %v794 = vpack.c.b16 %v712, %v711
      %v795 = vpack.c.b16 %v714, %v713
      %v796 = vpack.c.b16 %v716, %v715
      %v797 = vpack.c.b16 %v718, %v717
      %v798 = vpack.c.b16 %v720, %v719
      %v799 = vpack.c.b16 %v722, %v721
      %v800 = vpack.c.b16 %v724, %v723
      %v801 = vpack.c.b16 %v726, %v725
      %v802 = vpack.c.b16 %v728, %v727
      %v803 = vpack.c.b16 %v730, %v729
      %v804 = vpack.c.b16 %v732, %v731
      %877 = vmatprep.subr.bf16.mxu0 0
      %878 = vmatpush1.bf16.msra.mxu0 %v733
      %879 = vmatprep.subr.bf16.mxu0 0
      %880 = vmatpush1.bf16.msra.mxu0 %v734
      %881 = vmatprep.subr.bf16.mxu0 0
      %882 = vmatpush1.bf16.msra.mxu0 %v735
      %883 = vmatprep.subr.bf16.mxu0 0
      %884 = vmatpush1.bf16.msra.mxu0 %v736
      %885 = vmatprep.subr.bf16.mxu0 0
      %886 = vmatpush1.bf16.msra.mxu0 %v737
      %887 = vmatprep.subr.bf16.mxu0 0
      %888 = vmatpush1.bf16.msra.mxu0 %v738
      %889 = vmatprep.subr.bf16.mxu0 0
      %890 = vmatpush1.bf16.msra.mxu0 %v739
      %891 = vmatprep.subr.bf16.mxu0 0
      %892 = vmatpush1.bf16.msra.mxu0 %v740
      %893 = vmatprep.subr.bf16.mxu0 0
      %894 = vmatpush1.bf16.msra.mxu0 %v741
      %895 = vmatprep.subr.bf16.mxu0 0
      %896 = vmatpush1.bf16.msra.mxu0 %v742
      %897 = vmatprep.subr.bf16.mxu0 0
      %898 = vmatpush1.bf16.msra.mxu0 %v743
      %899 = vmatprep.subr.bf16.mxu0 0
      %900 = vmatpush1.bf16.msra.mxu0 %v744
      %901 = vmatprep.subr.bf16.mxu0 0
      %902 = vmatpush1.bf16.msra.mxu0 %v745
      %903 = vmatprep.subr.bf16.mxu0 0
      %904 = vmatpush1.bf16.msra.mxu0 %v746
      %905 = vmatprep.subr.bf16.mxu0 0
      %906 = vmatpush1.bf16.msra.mxu0 %v747
      %907 = vmatprep.subr.bf16.mxu0 0
      %908 = vmatpush1.bf16.msra.mxu0 %v748
      %909 = vmatprep.mubr.bf16.mxu0 %v410
      %910 = vmatmul.mubr.bf16.gmra.mrb[0].mxu0 %v409
      %v911 = vpop.f32.mrb[0].mxu0
      %v912 = vadd.f32 0.0, %v911
      %v913 = vpop.f32.mrb[0].mxu0
      %v914 = vpop.f32.mrb[0].mxu0
      %v915 = vadd.f32 0.0, %v914
      %v916 = vpop.f32.mrb[0].mxu0
      %917 = vmatprep.mubr.bf16.mxu0 %v419
      %918 = vmatmul.mubr.bf16.gmra.mrb[0].mxu0 %v418
      %v919 = vpop.f32.mrb[0].mxu0
      %v920 = vadd.f32 0.0, %v919
      %v921 = vpop.f32.mrb[0].mxu0
      %v922 = vpop.f32.mrb[0].mxu0
      %v923 = vadd.f32 0.0, %v922
      %v924 = vpop.f32.mrb[0].mxu0
      %925 = vdwg.mxu0
      %926 = vmatprep.subr.bf16.mxu0 0
      %927 = vmatpush1.bf16.msra.mxu0 %v749
      %928 = vmatprep.subr.bf16.mxu0 0
      %929 = vmatpush1.bf16.msra.mxu0 %v750
      %930 = vmatprep.subr.bf16.mxu0 0
      %931 = vmatpush1.bf16.msra.mxu0 %v751
      %932 = vmatprep.subr.bf16.mxu0 0
      %933 = vmatpush1.bf16.msra.mxu0 %v752
      %934 = vmatprep.subr.bf16.mxu0 0
      %935 = vmatpush1.bf16.msra.mxu0 %v753
      %936 = vmatprep.subr.bf16.mxu0 0
      %937 = vmatpush1.bf16.msra.mxu0 %v754
      %938 = vmatprep.subr.bf16.mxu0 0
      %939 = vmatpush1.bf16.msra.mxu0 %v755
      %940 = vmatprep.subr.bf16.mxu0 0
      %941 = vmatpush1.bf16.msra.mxu0 %v756
      %942 = vmatprep.subr.bf16.mxu0 0
      %943 = vmatpush1.bf16.msra.mxu0 %v757
      %944 = vmatprep.subr.bf16.mxu0 0
      %945 = vmatpush1.bf16.msra.mxu0 %v758
      %946 = vmatprep.subr.bf16.mxu0 0
      %947 = vmatpush1.bf16.msra.mxu0 %v759
      %948 = vmatprep.subr.bf16.mxu0 0
      %949 = vmatpush1.bf16.msra.mxu0 %v760
      %950 = vmatprep.subr.bf16.mxu0 0
      %951 = vmatpush1.bf16.msra.mxu0 %v761
      %952 = vmatprep.subr.bf16.mxu0 0
      %953 = vmatpush1.bf16.msra.mxu0 %v762
      %954 = vmatprep.subr.bf16.mxu0 0
      %955 = vmatpush1.bf16.msra.mxu0 %v763
      %956 = vmatprep.subr.bf16.mxu0 0
      %957 = vmatpush1.bf16.msra.mxu0 %v764
      %958 = vmatprep.mubr.bf16.mxu0 %v412
      %959 = vmatmul.mubr.bf16.gmra.mrb[0].mxu0 %v411
      %v960 = vpop.f32.mrb[0].mxu0
      %v961 = vadd.f32 %v912, %v960
      %v962 = vpop.f32.mrb[0].mxu0
      %v963 = vpop.f32.mrb[0].mxu0
      %v964 = vadd.f32 %v915, %v963
      %v965 = vpop.f32.mrb[0].mxu0
      %966 = vmatprep.mubr.bf16.mxu0 %v421
      %967 = vmatmul.mubr.bf16.gmra.mrb[0].mxu0 %v420
      %v968 = vpop.f32.mrb[0].mxu0
      %v969 = vadd.f32 %v920, %v968
      %v970 = vpop.f32.mrb[0].mxu0
      %v971 = vpop.f32.mrb[0].mxu0
      %v972 = vadd.f32 %v923, %v971
      %v973 = vpop.f32.mrb[0].mxu0
      %974 = vdwg.mxu0
      %975 = vmatprep.subr.bf16.mxu0 0
      %976 = vmatpush1.bf16.msra.mxu0 %v765
      %977 = vmatprep.subr.bf16.mxu0 0
      %978 = vmatpush1.bf16.msra.mxu0 %v766
      %979 = vmatprep.subr.bf16.mxu0 0
      %980 = vmatpush1.bf16.msra.mxu0 %v767
      %981 = vmatprep.subr.bf16.mxu0 0
      %982 = vmatpush1.bf16.msra.mxu0 %v768
      %983 = vmatprep.subr.bf16.mxu0 0
      %984 = vmatpush1.bf16.msra.mxu0 %v769
      %985 = vmatprep.subr.bf16.mxu0 0
      %986 = vmatpush1.bf16.msra.mxu0 %v770
      %987 = vmatprep.subr.bf16.mxu0 0
      %988 = vmatpush1.bf16.msra.mxu0 %v771
      %989 = vmatprep.subr.bf16.mxu0 0
      %990 = vmatpush1.bf16.msra.mxu0 %v772
      %991 = vmatprep.subr.bf16.mxu0 0
      %992 = vmatpush1.bf16.msra.mxu0 %v773
      %993 = vmatprep.subr.bf16.mxu0 0
      %994 = vmatpush1.bf16.msra.mxu0 %v774
      %995 = vmatprep.subr.bf16.mxu0 0
      %996 = vmatpush1.bf16.msra.mxu0 %v775
      %997 = vmatprep.subr.bf16.mxu0 0
      %998 = vmatpush1.bf16.msra.mxu0 %v776
      %999 = vmatprep.subr.bf16.mxu0 0
      %1000 = vmatpush1.bf16.msra.mxu0 %v777
      %1001 = vmatprep.subr.bf16.mxu0 0
      %1002 = vmatpush1.bf16.msra.mxu0 %v778
      %1003 = vmatprep.subr.bf16.mxu0 0
      %1004 = vmatpush1.bf16.msra.mxu0 %v779
      %1005 = vmatprep.subr.bf16.mxu0 0
      %1006 = vmatpush1.bf16.msra.mxu0 %v780
      %1007 = vmatprep.mubr.bf16.mxu0 %v414
      %1008 = vmatmul.mubr.bf16.gmra.mrb[0].mxu0 %v413
      %v1009 = vpop.f32.mrb[0].mxu0
      %v1010 = vadd.f32 %v961, %v1009
      %v1011 = vpop.f32.mrb[0].mxu0
      %v1012 = vpop.f32.mrb[0].mxu0
      %v1013 = vadd.f32 %v964, %v1012
      %v1014 = vpop.f32.mrb[0].mxu0
      %1015 = vmatprep.mubr.bf16.mxu0 %v423
      %1016 = vmatmul.mubr.bf16.gmra.mrb[0].mxu0 %v422
      %v1017 = vpop.f32.mrb[0].mxu0
      %v1018 = vadd.f32 %v969, %v1017
      %v1019 = vpop.f32.mrb[0].mxu0
      %v1020 = vpop.f32.mrb[0].mxu0
      %v1021 = vadd.f32 %v972, %v1020
      %v1022 = vpop.f32.mrb[0].mxu0
      %1023 = vdwg.mxu0
      %1024 = vmatprep.subr.bf16.mxu0 0
      %1025 = vmatpush1.bf16.msra.mxu0 %v781
      %1026 = vmatprep.subr.bf16.mxu0 0
      %1027 = vmatpush1.bf16.msra.mxu0 %v782
      %1028 = vmatprep.subr.bf16.mxu0 0
      %1029 = vmatpush1.bf16.msra.mxu0 %v783
      %1030 = vmatprep.subr.bf16.mxu0 0
      %1031 = vmatpush1.bf16.msra.mxu0 %v784
      %1032 = vmatprep.subr.bf16.mxu0 0
      %1033 = vmatpush1.bf16.msra.mxu0 %v785
      %1034 = vmatprep.subr.bf16.mxu0 0
      %1035 = vmatpush1.bf16.msra.mxu0 %v786
      %1036 = vmatprep.subr.bf16.mxu0 0
      %1037 = vmatpush1.bf16.msra.mxu0 %v787
      %1038 = vmatprep.subr.bf16.mxu0 0
      %1039 = vmatpush1.bf16.msra.mxu0 %v788
      %1040 = vmatprep.subr.bf16.mxu0 0
      %1041 = vmatpush1.bf16.msra.mxu0 %v789
      %1042 = vmatprep.subr.bf16.mxu0 0
      %1043 = vmatpush1.bf16.msra.mxu0 %v790
      %1044 = vmatprep.subr.bf16.mxu0 0
      %1045 = vmatpush1.bf16.msra.mxu0 %v791
      %1046 = vmatprep.subr.bf16.mxu0 0
      %1047 = vmatpush1.bf16.msra.mxu0 %v792
      %1048 = vmatprep.subr.bf16.mxu0 0
      %1049 = vmatpush1.bf16.msra.mxu0 %v793
      %1050 = vmatprep.subr.bf16.mxu0 0
      %1051 = vmatpush1.bf16.msra.mxu0 %v794
      %1052 = vmatprep.subr.bf16.mxu0 0
      %1053 = vmatpush1.bf16.msra.mxu0 %v795
      %1054 = vmatprep.subr.bf16.mxu0 0
      %1055 = vmatpush1.bf16.msra.mxu0 %v796
      %1056 = vmatprep.mubr.bf16.mxu0 %v416
      %1057 = vmatmul.mubr.bf16.gmra.mrb[0].mxu0 %v415
      %v1058 = vpop.f32.mrb[0].mxu0
      %v1059 = vadd.f32 %v1010, %v1058
      %v1060 = vpop.f32.mrb[0].mxu0
      %v1061 = vpop.f32.mrb[0].mxu0
      %v1062 = vadd.f32 %v1013, %v1061
      %v1063 = vpop.f32.mrb[0].mxu0
      %1064 = vmatprep.mubr.bf16.mxu0 %v425
      %1065 = vmatmul.mubr.bf16.gmra.mrb[0].mxu0 %v424
      %v1066 = vpop.f32.mrb[0].mxu0
      %v1067 = vadd.f32 %v1018, %v1066
      %v1068 = vpop.f32.mrb[0].mxu0
      %v1069 = vpop.f32.mrb[0].mxu0
      %v1070 = vadd.f32 %v1021, %v1069
      %v1071 = vpop.f32.mrb[0].mxu0
      %1072 = vdwg.mxu0
      %1073 = vmatprep.subr.bf16.mxu0 0
      %1074 = vmatpush1.bf16.msra.mxu0 %v797
      %1075 = vmatprep.subr.bf16.mxu0 0
      %1076 = vmatpush1.bf16.msra.mxu0 %v798
      %1077 = vmatprep.subr.bf16.mxu0 0
      %1078 = vmatpush1.bf16.msra.mxu0 %v799
      %1079 = vmatprep.subr.bf16.mxu0 0
      %1080 = vmatpush1.bf16.msra.mxu0 %v800
      %1081 = vmatprep.subr.bf16.mxu0 0
      %1082 = vmatpush1.bf16.msra.mxu0 %v801
      %1083 = vmatprep.subr.bf16.mxu0 0
      %1084 = vmatpush1.bf16.msra.mxu0 %v802
      %1085 = vmatprep.subr.bf16.mxu0 0
      %1086 = vmatpush1.bf16.msra.mxu0 %v803
      %1087 = vmatprep.subr.bf16.mxu0 0
      %1088 = vmatpush1.bf16.msra.mxu0 %v804
      %1089 = vmatprep.subr.bf16.mxu0 0
      %1090 = vmatpush1.bf16.msra.mxu0 0
      %1091 = vmatprep.subr.bf16.mxu0 0
      %1092 = vmatpush1.bf16.msra.mxu0 0
      %1093 = vmatprep.subr.bf16.mxu0 0
      %1094 = vmatpush1.bf16.msra.mxu0 0
      %1095 = vmatprep.subr.bf16.mxu0 0
      %1096 = vmatpush1.bf16.msra.mxu0 0
      %1097 = vmatprep.subr.bf16.mxu0 0
      %1098 = vmatpush1.bf16.msra.mxu0 0
      %1099 = vmatprep.subr.bf16.mxu0 0
      %1100 = vmatpush1.bf16.msra.mxu0 0
      %1101 = vmatprep.subr.bf16.mxu0 0
      %1102 = vmatpush1.bf16.msra.mxu0 0
      %1103 = vmatprep.subr.bf16.mxu0 0
      %1104 = vmatpush1.bf16.msra.mxu0 0
      %1105 = vmatprep.mubr.bf16.mxu0 0
      %1106 = vmatmul.mubr.bf16.gmra.mrb[0].mxu0 %v417
      %v1107 = vpop.f32.mrb[0].mxu0
      %v1108 = vadd.f32 %v1059, %v1107
      %v1109 = vpop.f32.mrb[0].mxu0
      %v1110 = vpop.f32.mrb[0].mxu0
      %v1111 = vadd.f32 %v1062, %v1110
      %v1112 = vpop.f32.mrb[0].mxu0
      %1113 = vmatprep.mubr.bf16.mxu0 0
      %1114 = vmatmul.mubr.bf16.gmra.mrb[0].mxu0 %v426
      %v1115 = vpop.f32.mrb[0].mxu0
      %v1116 = vadd.f32 %v1067, %v1115
      %v1117 = vpop.f32.mrb[0].mxu0
      %v1118 = vpop.f32.mrb[0].mxu0
      %v1119 = vadd.f32 %v1070, %v1118
      %v1120 = vpop.f32.mrb[0].mxu0
      %1121 = vdwg.mxu0
      %v1122 = vpack.c.bf16 %v1111, %v1108
      %v1123 = vpack.c.bf16 %v1119, %v1116
      %v1126 = vunpack.c.l.b16 %v1122
      %v1127 = vunpack.c.h.b16 %v1122
      %v1128 = vunpack.c.l.b16 %v1123
      %v1129 = vunpack.c.h.b16 %v1123
      %v1130 = vpack.c.b16 %v1126, %v1126
      %v1131 = vpack.c.b16 %v1127, %v1127
      %v1132 = vpack.c.b16 %v1128, %v1128
      %v1133 = vpack.c.b16 %v1129, %v1129
      %1138 = vst [vmem:[%s182] sm:$0xf] %v1130
      %1139 = vst [vmem:[%s182 + $0x4] sm:$0xf] %v1131
      %1140 = vst [vmem:[%s182 + $0x8] sm:$0xf] %v1132
      %1141 = vst [vmem:[%s182 + $0xc] sm:$0xf] %v1133
      %v1142 = vadd.f32 %v1108, %v1111
      %v1143 = vadd.f32 %v1142, %v1116
      %v1144 = vadd.f32 %v1143, %v1119
      %v1145 = vrot.slane %v1144, 4
      %v1146 = vadd.f32 %v1144, %v1145
      %v1147 = vrot.slane %v1146, 2
      %v1148 = vadd.f32 %v1146, %v1147
      %v1149 = vrot.slane %v1148, 1
      %v1150 = vadd.f32 %v1148, %v1149
      %v1151 = vmul.f32 %v1108, %v1108
      %v1152 = vmul.f32 %v1111, %v1111
      %v1153 = vmul.f32 %v1116, %v1116
      %v1154 = vmul.f32 %v1119, %v1119
      %v1155 = vadd.f32 %v1151, %v1152
      %v1156 = vadd.f32 %v1155, %v1153
      %v1157 = vadd.f32 %v1156, %v1154
      %v1158 = vrot.slane %v1157, 4
      %v1159 = vadd.f32 %v1157, %v1158
      %v1160 = vrot.slane %v1159, 2
      %v1161 = vadd.f32 %v1159, %v1160
      %v1162 = vrot.slane %v1161, 1
      %v1163 = vadd.f32 %v1161, %v1162
      %vm1164 = vcmask 1040384
      %v1165 = vsel %vm1164, %v1150, %v1163
      %1166 = vst [vmem:[%s187] sm:$0x3] %v1165
      %s1167 = smul.u32 4, %s15
      %p1168 = scmp.lt.s32.totalorder %s1167, 7
      %s1169 = scalar_select %p1168, %s1167, 7
      %s1170 = smul.addr %s1169, 4
      %s1171 = scalar_lea.vmem %s2, %s1170
      %p1172 = scmp.lt.s32.totalorder %s15, 1
      %s1173 = scalar_select %p1172, %s15, 1
      %s1174 = smul.addr %s1173, 2
      %s1175 = scalar_lea.vmem %s3, %s1174
      // Predicated region
      $region29: #{_lambda_.22} parent=27 // pred_check
        %p1176 = pneg %p80
      $region30: #{_lambda_.22} parent=27 // pred_check_branch
        %1178 = sbr.rel (%p1176) target = $region32
      $region31: #{_lambda_.22} parent=27 // pred_region
        %s1179 = smul.u32 4, %s15
      $region32: #{_lambda_.22} parent=27 // pred_fallthru
        _
      // Predicated region
      $region33: #{_lambda_.22} parent=27 // pred_check
        %p1180 = pneg %p106
      $region34: #{_lambda_.22} parent=27 // pred_check_branch
        %1182 = sbr.rel (%p1180) target = $region36
      $region35: #{_lambda_.22} parent=27 // pred_region
        _
      $region36: #{_lambda_.22} parent=27 // pred_fallthru
        _
    $region28: #{_lambda_.22} parent=5 // pred_fallthru
      _
    %p1183 = scmp.le.s32.totalorder 2, %s10
    // Predicated region
    $region37: #{_lambda_.22} parent=5 // pred_check
      %p1184 = pneg %p1183
    $region38: #{_lambda_.22} parent=5 // pred_check_branch
      %1186 = sbr.rel (%p1184) target = $region40
    $region39: #{_lambda_.22} parent=5 // pred_region
      %s1187 = ssub.s32 %s10, 2
      // Predicated region
      $region41: #{_lambda_.22} parent=39 // pred_check
        %p1188 = pneg %p86
      $region42: #{_lambda_.22} parent=39 // pred_check_branch
        %1190 = sbr.rel (%p1188) target = $region44
      $region43: #{_lambda_.22} parent=39 // pred_region
        %s1191 = smul.u32 4, %s16
        %p1192 = scmp.lt.s32.totalorder %s1191, 7
        %s1193 = scalar_select %p1192, %s1191, 7
        %s1194 = smul.addr %s1193, 4
        %s1195 = scalar_lea.vmem %s2, %s1194
      $region44: #{_lambda_.22} parent=39 // pred_fallthru
        _
      // Predicated region
      $region45: #{_lambda_.22} parent=39 // pred_check
        %p1196 = pneg %p112
      $region46: #{_lambda_.22} parent=39 // pred_check_branch
        %1198 = sbr.rel (%p1196) target = $region48
      $region47: #{_lambda_.22} parent=39 // pred_region
        %p1199 = scmp.lt.s32.totalorder %s16, 1
        %s1200 = scalar_select %p1199, %s16, 1
        %s1201 = smul.addr %s1200, 2
        %s1202 = scalar_lea.vmem %s3, %s1201
      $region48: #{_lambda_.22} parent=39 // pred_fallthru
        _
    $region40: #{_lambda_.22} parent=5 // pred_fallthru
      _
  $region6: #{_lambda_.22} parent=0 // loop_footer
    %s14 = sadd.s32 1, %s10
  $region7: #{_lambda_.22} parent=0 // loop_footer_branch
    %9 = sbr.rel target = $region3
  $region8: #{_lambda_.22} parent=0 // loop_exit
    _

// kernel: _lambda_.24
$region0: #{_lambda_.24}
  #allocation0 [shape = 'u32[]', space=smem, size = 0x4, offset = 0x4, fixed_abs, tag = 'smem constant byte address 0x4 - core index']
  #allocation1 [shape = 'u32[144,128]{1,0:T(1,128)}', space=vmem, size = 0x12000, scoped, tag = 'internal scratch']
  %s0 = inlined_call_operand.vmem [shape: bf16[64,64], index: 0, kind: input, shape index: {}]
  %s1 = inlined_call_operand.vmem [shape: bf16[64,128], index: 1, kind: input, shape index: {}]
  %s2 = inlined_call_operand.vmem [shape: bf16[64,128], index: 2, kind: output, shape index: {0}]
  %s3 = inlined_call_operand.vmem [shape: f32[2,2,128], index: 3, kind: output, shape index: {1}]
  %4 = xla_tuple %s2, %s3
  %s5 = sld [smem:[#allocation0]]
  $region49: #{_lambda_.24} parent=0
    _
  %s7 = ssub.s32 1, %s5
  %s8 = scalar_select 0, %s7, %s5
  loop: start=0, step=1, limit=4
  $region2: #{_lambda_.24} parent=0 // loop_pre_header
    _
  $region3: #{_lambda_.24} parent=0 // loop_header
    %s10 = sphi 0, %s14
    %p11 = scmp.ge.s32.totalorder %s10, 4
    %s20 = sphi 0, %s22
    %s23 = sphi 0, %s20
    %s24 = sphi 0, %s23
    %s40 = sphi 0, %s24
    %s44 = sphi 0, %s44
    %s46 = sphi 0, %s44
    %s47 = sphi 0, %s46
    %s61 = sphi 0, %s47
    %s67 = sphi 0, %s69
    %s70 = sphi 0, %s67
    %s71 = sphi 0, %s70
    %s87 = sphi 0, %s71
    %s93 = sphi 0, %s95
    %s96 = sphi 0, %s93
    %s97 = sphi 0, %s96
    %s113 = sphi 0, %s97
  $region4: #{_lambda_.24} parent=0 // loop_header_branch
    %13 = sbr.rel (%p11) target = $region8
  $region5: #{_lambda_.24} parent=0 // loop_body
    %s15 = ssub.s32 %s10, 1
    %s16 = ssub.s32 %s10, 2
    %s17 = sadd.s32 %s10, 1
    %s18 = ssub.s32 %s10, %s17
    %p19 = scmp.eq.s32.totalorder %s18, 0
    %s21 = sadd.s32 %s20, 1
    %s22 = scalar_select %p19, %s20, %s21
    %p25 = pneg %p19
    %p26 = scmp.eq.s32.totalorder %s10, 1
    %p27 = por %p25, %p26
    %p28 = scmp.ne.s32.totalorder %s20, %s23
    %p29 = scmp.eq.s32.totalorder %s10, 0
    %p30 = por %p28, %p29
    %p31 = scmp.ne.s32.totalorder %s20, %s23
    %p32 = scmp.eq.s32.totalorder %s15, 1
    %p33 = por %p31, %p32
    %p34 = scmp.ne.s32.totalorder %s23, %s24
    %p35 = scmp.eq.s32.totalorder %s15, 0
    %p36 = por %p34, %p35
    %p37 = scmp.ne.s32.totalorder %s23, %s24
    %p38 = scmp.eq.s32.totalorder %s16, 1
    %p39 = por %p37, %p38
    %p41 = scmp.ne.s32.totalorder %s24, %s40
    %p42 = scmp.eq.s32.totalorder %s16, 0
    %p43 = por %p41, %p42
    %s45 = sadd.s32 %s44, 1
    %p48 = scmp.eq.s32.totalorder %s10, 1
    %p49 = scmp.ne.s32.totalorder %s44, %s46
    %p50 = scmp.eq.s32.totalorder %s10, 0
    %p51 = por %p49, %p50
    %p52 = scmp.ne.s32.totalorder %s44, %s46
    %p53 = scmp.eq.s32.totalorder %s15, 1
    %p54 = por %p52, %p53
    %p55 = scmp.ne.s32.totalorder %s46, %s47
    %p56 = scmp.eq.s32.totalorder %s15, 0
    %p57 = por %p55, %p56
    %p58 = scmp.ne.s32.totalorder %s46, %s47
    %p59 = scmp.eq.s32.totalorder %s16, 1
    %p60 = por %p58, %p59
    %p62 = scmp.ne.s32.totalorder %s47, %s61
    %p63 = scmp.eq.s32.totalorder %s16, 0
    %p64 = por %p62, %p63
    %s65 = ssub.s32 %s10, %s17
    %p66 = scmp.eq.s32.totalorder %s65, 0
    %s68 = sadd.s32 %s67, 1
    %s69 = scalar_select %p66, %s67, %s68
    %p72 = pneg %p66
    %p73 = scmp.eq.s32.totalorder %s10, 1
    %p74 = por %p72, %p73
    %p75 = scmp.ne.s32.totalorder %s67, %s70
    %p76 = scmp.eq.s32.totalorder %s10, 0
    %p77 = por %p75, %p76
    %p78 = scmp.ne.s32.totalorder %s67, %s70
    %p79 = scmp.eq.s32.totalorder %s15, 1
    %p80 = por %p78, %p79
    %p81 = scmp.ne.s32.totalorder %s70, %s71
    %p82 = scmp.eq.s32.totalorder %s15, 0
    %p83 = por %p81, %p82
    %p84 = scmp.ne.s32.totalorder %s70, %s71
    %p85 = scmp.eq.s32.totalorder %s16, 1
    %p86 = por %p84, %p85
    %p88 = scmp.ne.s32.totalorder %s71, %s87
    %p89 = scmp.eq.s32.totalorder %s16, 0
    %p90 = por %p88, %p89
    %s91 = ssub.s32 %s10, %s17
    %p92 = scmp.eq.s32.totalorder %s91, 0
    %s94 = sadd.s32 %s93, 1
    %s95 = scalar_select %p92, %s93, %s94
    %p98 = pneg %p92
    %p99 = scmp.eq.s32.totalorder %s10, 1
    %p100 = por %p98, %p99
    %p101 = scmp.ne.s32.totalorder %s93, %s96
    %p102 = scmp.eq.s32.totalorder %s10, 0
    %p103 = por %p101, %p102
    %p104 = scmp.ne.s32.totalorder %s93, %s96
    %p105 = scmp.eq.s32.totalorder %s15, 1
    %p106 = por %p104, %p105
    %p107 = scmp.ne.s32.totalorder %s96, %s97
    %p108 = scmp.eq.s32.totalorder %s15, 0
    %p109 = por %p107, %p108
    %p110 = scmp.ne.s32.totalorder %s96, %s97
    %p111 = scmp.eq.s32.totalorder %s16, 1
    %p112 = por %p110, %p111
    %p114 = scmp.ne.s32.totalorder %s97, %s113
    %p115 = scmp.eq.s32.totalorder %s16, 0
    %p116 = por %p114, %p115
    %p117 = scmp.le.s32.totalorder 1, %s10
    %p118 = scmp.lt.s32.totalorder %s10, 3
    %p119 = pnand %p117, %p118
    %p120 = pneg %p119
    // Predicated region
    $region9: #{_lambda_.24} parent=5 // pred_check
      _
    $region10: #{_lambda_.24} parent=5 // pred_check_branch
      %122 = sbr.rel (%p119) target = $region12
    $region11: #{_lambda_.24} parent=5 // pred_region
      %s123 = ssub.s32 %s10, 1
      // Predicated region
      $region13: #{_lambda_.24} parent=11 // pred_check
        %p124 = pneg %p57
      $region14: #{_lambda_.24} parent=11 // pred_check_branch
        %126 = sbr.rel (%p124) target = $region16
      $region15: #{_lambda_.24} parent=11 // pred_region
        _
      $region16: #{_lambda_.24} parent=11 // pred_fallthru
        _
    $region12: #{_lambda_.24} parent=5 // pred_fallthru
      _
    %p127 = scmp.lt.s32.totalorder %s10, 2
    // Predicated region
    $region17: #{_lambda_.24} parent=5 // pred_check
      %p128 = pneg %p127
    $region18: #{_lambda_.24} parent=5 // pred_check_branch
      %130 = sbr.rel (%p128) target = $region20
    $region19: #{_lambda_.24} parent=5 // pred_region
      // Predicated region
      $region21: #{_lambda_.24} parent=19 // pred_check
        %p131 = pneg %p30
      $region22: #{_lambda_.24} parent=19 // pred_check_branch
        %133 = sbr.rel (%p131) target = $region24
      $region23: #{_lambda_.24} parent=19 // pred_region
        %s134 = smul.u32 4, %s10
        %p135 = scmp.lt.s32.totalorder %s134, 7
        %s136 = scalar_select %p135, %s134, 7
        %s137 = smul.addr %s136, 4
        %s138 = scalar_lea.vmem %s0, %s137
        %s139 = smul.u32 4, %s10
      $region24: #{_lambda_.24} parent=19 // pred_fallthru
        _
    $region20: #{_lambda_.24} parent=5 // pred_fallthru
      _
    %p140 = scmp.le.s32.totalorder 1, %s10
    %p141 = scmp.lt.s32.totalorder %s10, 3
    %p142 = pnand %p140, %p141
    %p143 = pneg %p142
    // Predicated region
    $region25: #{_lambda_.24} parent=5 // pred_check
      _
    $region26: #{_lambda_.24} parent=5 // pred_check_branch
      %145 = sbr.rel (%p142) target = $region28
    $region27: #{_lambda_.24} parent=5 // pred_region
      %s146 = ssub.s32 %s10, 1
      %s147 = smul.u32 4, %s15
      %p148 = scmp.lt.s32.totalorder %s147, 7
      %s149 = scalar_select %p148, %s147, 7
      %s150 = smul.addr %s149, 4
      %s151 = scalar_lea.vmem %s0, %s150
      %p152 = pneg %p36
      %p153 = pneg %p33
      %p154 = pneg %p57
      %p155 = pneg %p54
      %p156 = pneg %p83
      %p157 = pneg %p80
      %s158 = smul.u32 4, %s15
      %p159 = scmp.lt.s32.totalorder %s158, 7
      %s160 = scalar_select %p159, %s158, 7
      %s161 = smul.addr %s160, 4
      %s162 = scalar_lea.vmem %s2, %s161
      %p163 = pneg %p109
      %p164 = pneg %p106
      %p165 = scmp.lt.s32.totalorder %s15, 1
      %s166 = scalar_select %p165, %s15, 1
      %s167 = smul.addr %s166, 2
      %s168 = scalar_lea.vmem %s3, %s167
      %s169 = smul.u32 4, %s15
      %p170 = scmp.lt.s32.totalorder %s169, 7
      %s171 = scalar_select %p170, %s169, 7
      %s172 = smul.addr %s171, 4
      %s173 = scalar_lea.vmem %s0, %s172
      %s174 = smul.u32 4, %s15
      %s175 = smul.u32 4, %s15
      %p176 = scmp.lt.s32.totalorder %s175, 7
      %s177 = scalar_select %p176, %s175, 7
      %s178 = smul.addr %s177, 4
      %s179 = scalar_lea.vmem %s2, %s178
      %s180 = smul.u32 4, %s15
      %p181 = scmp.lt.s32.totalorder %s15, 1
      %s182 = scalar_select %p181, %s15, 1
      %s183 = smul.addr %s182, 2
      %s184 = scalar_lea.vmem %s3, %s183
      %v186 = vld [vmem:[%s173] sm:$0xf]
      %v187 = vld [vmem:[%s173 + $0x4] sm:$0xf]
      %v188 = vld [vmem:[%s173 + $0x8] sm:$0xf]
      %v189 = vld [vmem:[%s173 + $0xc] sm:$0xf]
      %v190 = vld [vmem:[%s1] sm:$0xf]
      %v191 = vld [vmem:[%s1 + $0x4] sm:$0xf]
      %v192 = vld [vmem:[%s1 + $0x8] sm:$0xf]
      %v193 = vld [vmem:[%s1 + $0xc] sm:$0xf]
      %v194 = vld [vmem:[%s1 + $0x10] sm:$0xf]
      %v195 = vld [vmem:[%s1 + $0x14] sm:$0xf]
      %v196 = vld [vmem:[%s1 + $0x18] sm:$0xf]
      %v197 = vld [vmem:[%s1 + $0x1c] sm:$0xf]
      %v202 = vunpack.c.l.b16 %v186
      %v203 = vunpack.c.l.b16 %v187
      %v204 = vunpack.c.l.b16 %v188
      %v205 = vunpack.c.l.b16 %v189
      %v206 = vpack.c.b16 %v203, %v202
      %v207 = vpack.c.b16 %v205, %v204
      %v216 = vunpack.c.l.b16 %v190
      %v217 = vunpack.c.l.b16 %v191
      %v218 = vunpack.c.l.b16 %v192
      %v219 = vunpack.c.l.b16 %v193
      %v220 = vunpack.c.l.b16 %v194
      %v221 = vunpack.c.l.b16 %v195
      %v222 = vunpack.c.l.b16 %v196
      %v223 = vunpack.c.l.b16 %v197
      %v224 = vpack.c.b16 %v217, %v216
      %v225 = vpack.c.b16 %v219, %v218
      %v226 = vpack.c.b16 %v221, %v220
      %v227 = vpack.c.b16 %v223, %v222
      %vm232 = vcmask 523264
      %v234 = vsel %vm232, %v206, 0
      %v237 = vsel %vm232, %v207, 0
      %239 = vmatprep.subr.bf16.mxu0 0
      %240 = vmatpush1.bf16.msra.mxu0 %v224
      %241 = vmatprep.subr.bf16.mxu0 0
      %242 = vmatpush1.bf16.msra.mxu0 %v225
      %243 = vmatprep.subr.bf16.mxu0 0
      %244 = vmatpush1.bf16.msra.mxu0 %v226
      %245 = vmatprep.subr.bf16.mxu0 0
      %246 = vmatpush1.bf16.msra.mxu0 %v227
      %247 = vmatprep.subr.bf16.mxu0 0
      %248 = vmatpush1.bf16.msra.mxu0 0
      %249 = vmatprep.subr.bf16.mxu0 0
      %250 = vmatpush1.bf16.msra.mxu0 0
      %251 = vmatprep.subr.bf16.mxu0 0
      %252 = vmatpush1.bf16.msra.mxu0 0
      %253 = vmatprep.subr.bf16.mxu0 0
      %254 = vmatpush1.bf16.msra.mxu0 0
      %255 = vmatprep.subr.bf16.mxu0 0
      %256 = vmatpush1.bf16.msra.mxu0 0
      %257 = vmatprep.subr.bf16.mxu0 0
      %258 = vmatpush1.bf16.msra.mxu0 0
      %259 = vmatprep.subr.bf16.mxu0 0
      %260 = vmatpush1.bf16.msra.mxu0 0
      %261 = vmatprep.subr.bf16.mxu0 0
      %262 = vmatpush1.bf16.msra.mxu0 0
      %263 = vmatprep.subr.bf16.mxu0 0
      %264 = vmatpush1.bf16.msra.mxu0 0
      %265 = vmatprep.subr.bf16.mxu0 0
      %266 = vmatpush1.bf16.msra.mxu0 0
      %267 = vmatprep.subr.bf16.mxu0 0
      %268 = vmatpush1.bf16.msra.mxu0 0
      %269 = vmatprep.subr.bf16.mxu0 0
      %270 = vmatpush1.bf16.msra.mxu0 0
      %271 = vmatprep.mubr.bf16.mxu0 0
      %272 = vmatmul.mubr.bf16.gmra.mrb[0].mxu0 %v234
      %v273 = vpop.f32.mrb[0].mxu0
      %v274 = vadd.f32 0.0, %v273
      %v275 = vpop.f32.mrb[0].mxu0
      %v276 = vpop.f32.mrb[0].mxu0
      %v277 = vadd.f32 0.0, %v276
      %v278 = vpop.f32.mrb[0].mxu0
      %279 = vmatprep.mubr.bf16.mxu0 0
      %280 = vmatmul.mubr.bf16.gmra.mrb[0].mxu0 %v237
      %v281 = vpop.f32.mrb[0].mxu0
      %v282 = vadd.f32 0.0, %v281
      %v283 = vpop.f32.mrb[0].mxu0
      %v284 = vpop.f32.mrb[0].mxu0
      %v285 = vadd.f32 0.0, %v284
      %v286 = vpop.f32.mrb[0].mxu0
      %287 = vdwg.mxu0
      %v288 = vpack.c.bf16 %v277, %v274
      %v289 = vpack.c.bf16 %v285, %v282
      %v292 = vunpack.c.l.b16 %v288
      %v293 = vunpack.c.h.b16 %v288
      %v294 = vunpack.c.l.b16 %v289
      %v295 = vunpack.c.h.b16 %v289
      %v296 = vpack.c.b16 %v292, %v292
      %v297 = vpack.c.b16 %v293, %v293
      %v298 = vpack.c.b16 %v294, %v294
      %v299 = vpack.c.b16 %v295, %v295
      %304 = vst [vmem:[%s179] sm:$0xf] %v296
      %305 = vst [vmem:[%s179 + $0x4] sm:$0xf] %v297
      %306 = vst [vmem:[%s179 + $0x8] sm:$0xf] %v298
      %307 = vst [vmem:[%s179 + $0xc] sm:$0xf] %v299
      %v308 = vadd.f32 %v274, %v277
      %v309 = vadd.f32 %v308, %v282
      %v310 = vadd.f32 %v309, %v285
      %v311 = vrot.slane %v310, 4
      %v312 = vadd.f32 %v310, %v311
      %v313 = vrot.slane %v312, 2
      %v314 = vadd.f32 %v312, %v313
      %v315 = vrot.slane %v314, 1
      %v316 = vadd.f32 %v314, %v315
      %v317 = vmul.f32 %v274, %v274
      %v318 = vmul.f32 %v277, %v277
      %v319 = vmul.f32 %v282, %v282
      %v320 = vmul.f32 %v285, %v285
      %v321 = vadd.f32 %v317, %v318
      %v322 = vadd.f32 %v321, %v319
      %v323 = vadd.f32 %v322, %v320
      %v324 = vrot.slane %v323, 4
      %v325 = vadd.f32 %v323, %v324
      %v326 = vrot.slane %v325, 2
      %v327 = vadd.f32 %v325, %v326
      %v328 = vrot.slane %v327, 1
      %v329 = vadd.f32 %v327, %v328
      %vm330 = vcmask 1040384
      %v331 = vsel %vm330, %v316, %v329
      %332 = vst [vmem:[%s184] sm:$0x3] %v331
      %s333 = smul.u32 4, %s15
      %p334 = scmp.lt.s32.totalorder %s333, 7
      %s335 = scalar_select %p334, %s333, 7
      %s336 = smul.addr %s335, 4
      %s337 = scalar_lea.vmem %s2, %s336
      %p338 = scmp.lt.s32.totalorder %s15, 1
      %s339 = scalar_select %p338, %s15, 1
      %s340 = smul.addr %s339, 2
      %s341 = scalar_lea.vmem %s3, %s340
      // Predicated region
      $region29: #{_lambda_.24} parent=27 // pred_check
        %p342 = pneg %p80
      $region30: #{_lambda_.24} parent=27 // pred_check_branch
        %344 = sbr.rel (%p342) target = $region32
      $region31: #{_lambda_.24} parent=27 // pred_region
        %s345 = smul.u32 4, %s15
      $region32: #{_lambda_.24} parent=27 // pred_fallthru
        _
      // Predicated region
      $region33: #{_lambda_.24} parent=27 // pred_check
        %p346 = pneg %p106
      $region34: #{_lambda_.24} parent=27 // pred_check_branch
        %348 = sbr.rel (%p346) target = $region36
      $region35: #{_lambda_.24} parent=27 // pred_region
        _
      $region36: #{_lambda_.24} parent=27 // pred_fallthru
        _
    $region28: #{_lambda_.24} parent=5 // pred_fallthru
      _
    %p349 = scmp.le.s32.totalorder 2, %s10
    // Predicated region
    $region37: #{_lambda_.24} parent=5 // pred_check
      %p350 = pneg %p349
    $region38: #{_lambda_.24} parent=5 // pred_check_branch
      %352 = sbr.rel (%p350) target = $region40
    $region39: #{_lambda_.24} parent=5 // pred_region
      %s353 = ssub.s32 %s10, 2
      // Predicated region
      $region41: #{_lambda_.24} parent=39 // pred_check
        %p354 = pneg %p86
      $region42: #{_lambda_.24} parent=39 // pred_check_branch
        %356 = sbr.rel (%p354) target = $region44
      $region43: #{_lambda_.24} parent=39 // pred_region
        %s357 = smul.u32 4, %s16
        %p358 = scmp.lt.s32.totalorder %s357, 7
        %s359 = scalar_select %p358, %s357, 7
        %s360 = smul.addr %s359, 4
        %s361 = scalar_lea.vmem %s2, %s360
      $region44: #{_lambda_.24} parent=39 // pred_fallthru
        _
      // Predicated region
      $region45: #{_lambda_.24} parent=39 // pred_check
        %p362 = pneg %p112
      $region46: #{_lambda_.24} parent=39 // pred_check_branch
        %364 = sbr.rel (%p362) target = $region48
      $region47: #{_lambda_.24} parent=39 // pred_region
        %p365 = scmp.lt.s32.totalorder %s16, 1
        %s366 = scalar_select %p365, %s16, 1
        %s367 = smul.addr %s366, 2
        %s368 = scalar_lea.vmem %s3, %s367
      $region48: #{_lambda_.24} parent=39 // pred_fallthru
        _
    $region40: #{_lambda_.24} parent=5 // pred_fallthru
      _
  $region6: #{_lambda_.24} parent=0 // loop_footer
    %s14 = sadd.s32 1, %s10
  $region7: #{_lambda_.24} parent=0 // loop_footer_branch
    %9 = sbr.rel target = $region3
  $region8: #{_lambda_.24} parent=0 // loop_exit
    _

// kernel: _lambda_.25
$region0: #{_lambda_.25}
  #allocation0 [shape = 'u32[]', space=smem, size = 0x4, offset = 0x4, fixed_abs, tag = 'smem constant byte address 0x4 - core index']
  #allocation1 [shape = 'u32[144,128]{1,0:T(1,128)}', space=vmem, size = 0x12000, scoped, tag = 'internal scratch']
  #allocation2 [shape = 'f32[8,128]{1,0:T(8,128)}', space=vmem, size = 0x1000, scoped, tag = 'scratch operand']
  %s0 = inlined_call_operand.vmem [shape: bf16[4,16,128], index: 0, kind: input, shape index: {}]
  %s1 = inlined_call_operand.vmem [shape: f32[1,128], index: 1, kind: input, shape index: {}]
  %s2 = inlined_call_operand.vmem [shape: f32[1,128], index: 2, kind: input, shape index: {}]
  %s3 = inlined_call_operand.vmem [shape: bf16[4,16,128], index: 3, kind: input, shape index: {}]
  %s4 = inlined_call_operand.vmem [shape: bf16[4,16,128], index: 4, kind: output, shape index: {}]
  %s5 = sld [smem:[#allocation0]]
  $region53: #{_lambda_.25} parent=0
    _
  %s7 = ssub.s32 1, %s5
  %s8 = scalar_select 0, %s7, %s5
  loop: start=0, step=1, limit=10
  $region2: #{_lambda_.25} parent=0 // loop_pre_header
    _
  $region3: #{_lambda_.25} parent=0 // loop_header
    %s10 = sphi 0, %s14
    %p11 = scmp.ge.s32.totalorder %s10, 10
    %s17 = sphi 0, %s29
    %s18 = sphi 0, %s25
    %s19 = sphi 0, %s17
    %s20 = sphi 0, %s18
    %s21 = sphi 0, %s19
    %s22 = sphi 0, %s20
    %s34 = sphi 0, %s36
    %s37 = sphi 0, %s34
    %s38 = sphi 0, %s37
    %s54 = sphi 0, %s38
    %s58 = sphi 0, %s58
    %s60 = sphi 0, %s58
    %s61 = sphi 0, %s60
    %s75 = sphi 0, %s61
    %s79 = sphi 0, %s79
    %s81 = sphi 0, %s79
    %s82 = sphi 0, %s81
    %s96 = sphi 0, %s82
    %s104 = sphi 0, %s106
    %s107 = sphi 0, %s104
    %s108 = sphi 0, %s107
    %s124 = sphi 0, %s108
    %s132 = sphi 0, %s134
    %s135 = sphi 0, %s132
    %s136 = sphi 0, %s135
    %s152 = sphi 0, %s136
  $region4: #{_lambda_.25} parent=0 // loop_header_branch
    %13 = sbr.rel (%p11) target = $region8
  $region5: #{_lambda_.25} parent=0 // loop_body
    %s15 = ssub.s32 %s10, 1
    %s16 = ssub.s32 %s10, 2
    %s23 = sadd.s32 1, %s18
    %p24 = scmp.ge.s32.totalorder %s23, 4
    %s25 = scalar_select %p24, 0, %s23
    %s26 = sadd.s32 1, %s17
    %s27 = scalar_select %p24, %s26, %s17
    %p28 = scmp.ge.s32.totalorder %s27, 2
    %s29 = scalar_select %p28, 0, %s27
    %s30 = ssub.s32 %s18, %s25
    %s31 = ssub.s32 %s17, %s29
    %s32 = sor.u32 %s30, %s31
    %p33 = scmp.eq.s32.totalorder %s32, 0
    %s35 = sadd.s32 %s34, 1
    %s36 = scalar_select %p33, %s34, %s35
    %p39 = pneg %p33
    %p40 = scmp.eq.s32.totalorder %s10, 7
    %p41 = por %p39, %p40
    %p42 = scmp.ne.s32.totalorder %s34, %s37
    %p43 = scmp.eq.s32.totalorder %s10, 0
    %p44 = por %p42, %p43
    %p45 = scmp.ne.s32.totalorder %s34, %s37
    %p46 = scmp.eq.s32.totalorder %s15, 7
    %p47 = por %p45, %p46
    %p48 = scmp.ne.s32.totalorder %s37, %s38
    %p49 = scmp.eq.s32.totalorder %s15, 0
    %p50 = por %p48, %p49
    %p51 = scmp.ne.s32.totalorder %s37, %s38
    %p52 = scmp.eq.s32.totalorder %s16, 7
    %p53 = por %p51, %p52
    %p55 = scmp.ne.s32.totalorder %s38, %s54
    %p56 = scmp.eq.s32.totalorder %s16, 0
    %p57 = por %p55, %p56
    %s59 = sadd.s32 %s58, 1
    %p62 = scmp.eq.s32.totalorder %s10, 7
    %p63 = scmp.ne.s32.totalorder %s58, %s60
    %p64 = scmp.eq.s32.totalorder %s10, 0
    %p65 = por %p63, %p64
    %p66 = scmp.ne.s32.totalorder %s58, %s60
    %p67 = scmp.eq.s32.totalorder %s15, 7
    %p68 = por %p66, %p67
    %p69 = scmp.ne.s32.totalorder %s60, %s61
    %p70 = scmp.eq.s32.totalorder %s15, 0
    %p71 = por %p69, %p70
    %p72 = scmp.ne.s32.totalorder %s60, %s61
    %p73 = scmp.eq.s32.totalorder %s16, 7
    %p74 = por %p72, %p73
    %p76 = scmp.ne.s32.totalorder %s61, %s75
    %p77 = scmp.eq.s32.totalorder %s16, 0
    %p78 = por %p76, %p77
    %s80 = sadd.s32 %s79, 1
    %p83 = scmp.eq.s32.totalorder %s10, 7
    %p84 = scmp.ne.s32.totalorder %s79, %s81
    %p85 = scmp.eq.s32.totalorder %s10, 0
    %p86 = por %p84, %p85
    %p87 = scmp.ne.s32.totalorder %s79, %s81
    %p88 = scmp.eq.s32.totalorder %s15, 7
    %p89 = por %p87, %p88
    %p90 = scmp.ne.s32.totalorder %s81, %s82
    %p91 = scmp.eq.s32.totalorder %s15, 0
    %p92 = por %p90, %p91
    %p93 = scmp.ne.s32.totalorder %s81, %s82
    %p94 = scmp.eq.s32.totalorder %s16, 7
    %p95 = por %p93, %p94
    %p97 = scmp.ne.s32.totalorder %s82, %s96
    %p98 = scmp.eq.s32.totalorder %s16, 0
    %p99 = por %p97, %p98
    %s100 = ssub.s32 %s18, %s25
    %s101 = ssub.s32 %s17, %s29
    %s102 = sor.u32 %s100, %s101
    %p103 = scmp.eq.s32.totalorder %s102, 0
    %s105 = sadd.s32 %s104, 1
    %s106 = scalar_select %p103, %s104, %s105
    %p109 = pneg %p103
    %p110 = scmp.eq.s32.totalorder %s10, 7
    %p111 = por %p109, %p110
    %p112 = scmp.ne.s32.totalorder %s104, %s107
    %p113 = scmp.eq.s32.totalorder %s10, 0
    %p114 = por %p112, %p113
    %p115 = scmp.ne.s32.totalorder %s104, %s107
    %p116 = scmp.eq.s32.totalorder %s15, 7
    %p117 = por %p115, %p116
    %p118 = scmp.ne.s32.totalorder %s107, %s108
    %p119 = scmp.eq.s32.totalorder %s15, 0
    %p120 = por %p118, %p119
    %p121 = scmp.ne.s32.totalorder %s107, %s108
    %p122 = scmp.eq.s32.totalorder %s16, 7
    %p123 = por %p121, %p122
    %p125 = scmp.ne.s32.totalorder %s108, %s124
    %p126 = scmp.eq.s32.totalorder %s16, 0
    %p127 = por %p125, %p126
    %s128 = ssub.s32 %s18, %s25
    %s129 = ssub.s32 %s17, %s29
    %s130 = sor.u32 %s128, %s129
    %p131 = scmp.eq.s32.totalorder %s130, 0
    %s133 = sadd.s32 %s132, 1
    %s134 = scalar_select %p131, %s132, %s133
    %p137 = pneg %p131
    %p138 = scmp.eq.s32.totalorder %s10, 7
    %p139 = por %p137, %p138
    %p140 = scmp.ne.s32.totalorder %s132, %s135
    %p141 = scmp.eq.s32.totalorder %s10, 0
    %p142 = por %p140, %p141
    %p143 = scmp.ne.s32.totalorder %s132, %s135
    %p144 = scmp.eq.s32.totalorder %s15, 7
    %p145 = por %p143, %p144
    %p146 = scmp.ne.s32.totalorder %s135, %s136
    %p147 = scmp.eq.s32.totalorder %s15, 0
    %p148 = por %p146, %p147
    %p149 = scmp.ne.s32.totalorder %s135, %s136
    %p150 = scmp.eq.s32.totalorder %s16, 7
    %p151 = por %p149, %p150
    %p153 = scmp.ne.s32.totalorder %s136, %s152
    %p154 = scmp.eq.s32.totalorder %s16, 0
    %p155 = por %p153, %p154
    %p156 = scmp.le.s32.totalorder 1, %s10
    %p157 = scmp.lt.s32.totalorder %s10, 9
    %p158 = pnand %p156, %p157
    %p159 = pneg %p158
    // Predicated region
    $region9: #{_lambda_.25} parent=5 // pred_check
      _
    $region10: #{_lambda_.25} parent=5 // pred_check_branch
      %161 = sbr.rel (%p158) target = $region12
    $region11: #{_lambda_.25} parent=5 // pred_region
      %s162 = ssub.s32 %s10, 1
      // Predicated region
      $region13: #{_lambda_.25} parent=11 // pred_check
        %p163 = pneg %p71
      $region14: #{_lambda_.25} parent=11 // pred_check_branch
        %165 = sbr.rel (%p163) target = $region16
      $region15: #{_lambda_.25} parent=11 // pred_region
        _
      $region16: #{_lambda_.25} parent=11 // pred_fallthru
        _
      // Predicated region
      $region17: #{_lambda_.25} parent=11 // pred_check
        %p166 = pneg %p92
      $region18: #{_lambda_.25} parent=11 // pred_check_branch
        %168 = sbr.rel (%p166) target = $region20
      $region19: #{_lambda_.25} parent=11 // pred_region
        _
      $region20: #{_lambda_.25} parent=11 // pred_fallthru
        _
    $region12: #{_lambda_.25} parent=5 // pred_fallthru
      _
    %p169 = scmp.lt.s32.totalorder %s10, 8
    // Predicated region
    $region21: #{_lambda_.25} parent=5 // pred_check
      %p170 = pneg %p169
    $region22: #{_lambda_.25} parent=5 // pred_check_branch
      %172 = sbr.rel (%p170) target = $region24
    $region23: #{_lambda_.25} parent=5 // pred_region
      // Predicated region
      $region25: #{_lambda_.25} parent=23 // pred_check
        %p173 = pneg %p44
      $region26: #{_lambda_.25} parent=23 // pred_check_branch
        %175 = sbr.rel (%p173) target = $region28
      $region27: #{_lambda_.25} parent=23 // pred_region
        %p176 = scmp.lt.s32.totalorder %s18, 3
        %s177 = scalar_select %p176, %s18, 3
        %p178 = scmp.lt.s32.totalorder %s17, 1
        %s179 = scalar_select %p178, %s17, 1
        %s180 = smul.addr %s177, 2
        %s181 = sadd.s32 %s179, %s180
        %s182 = smul.addr %s181, 4
        %s183 = scalar_lea.vmem %s0, %s182
      $region28: #{_lambda_.25} parent=23 // pred_fallthru
        _
      // Predicated region
      $region29: #{_lambda_.25} parent=23 // pred_check
        %p184 = pneg %p114
      $region30: #{_lambda_.25} parent=23 // pred_check_branch
        %186 = sbr.rel (%p184) target = $region32
      $region31: #{_lambda_.25} parent=23 // pred_region
        %p187 = scmp.lt.s32.totalorder %s18, 3
        %s188 = scalar_select %p187, %s18, 3
        %p189 = scmp.lt.s32.totalorder %s17, 1
        %s190 = scalar_select %p189, %s17, 1
        %s191 = smul.addr %s188, 2
        %s192 = sadd.s32 %s190, %s191
        %s193 = smul.addr %s192, 4
        %s194 = scalar_lea.vmem %s3, %s193
      $region32: #{_lambda_.25} parent=23 // pred_fallthru
        _
    $region24: #{_lambda_.25} parent=5 // pred_fallthru
      _
    %p195 = scmp.le.s32.totalorder 1, %s10
    %p196 = scmp.lt.s32.totalorder %s10, 9
    %p197 = pnand %p195, %p196
    %p198 = pneg %p197
    // Predicated region
    $region33: #{_lambda_.25} parent=5 // pred_check
      _
    $region34: #{_lambda_.25} parent=5 // pred_check_branch
      %200 = sbr.rel (%p197) target = $region36
    $region35: #{_lambda_.25} parent=5 // pred_region
      %s201 = ssub.s32 %s10, 1
      %p202 = scmp.lt.s32.totalorder %s20, 3
      %s203 = scalar_select %p202, %s20, 3
      %p204 = scmp.lt.s32.totalorder %s19, 1
      %s205 = scalar_select %p204, %s19, 1
      %s206 = smul.addr %s203, 2
      %s207 = sadd.s32 %s205, %s206
      %s208 = smul.addr %s207, 4
      %s209 = scalar_lea.vmem %s0, %s208
      %p210 = pneg %p50
      %p211 = pneg %p47
      %p212 = pneg %p71
      %p213 = pneg %p68
      %p214 = pneg %p92
      %p215 = pneg %p89
      %p216 = scmp.lt.s32.totalorder %s20, 3
      %s217 = scalar_select %p216, %s20, 3
      %p218 = scmp.lt.s32.totalorder %s19, 1
      %s219 = scalar_select %p218, %s19, 1
      %s220 = smul.addr %s217, 2
      %s221 = sadd.s32 %s219, %s220
      %s222 = smul.addr %s221, 4
      %s223 = scalar_lea.vmem %s3, %s222
      %p224 = pneg %p120
      %p225 = pneg %p117
      %p226 = pneg %p148
      %p227 = pneg %p145
      %p228 = scmp.lt.s32.totalorder %s20, 3
      %s229 = scalar_select %p228, %s20, 3
      %p230 = scmp.lt.s32.totalorder %s19, 1
      %s231 = scalar_select %p230, %s19, 1
      %s232 = smul.addr %s229, 2
      %s233 = sadd.s32 %s231, %s232
      %s234 = smul.addr %s233, 4
      %s235 = scalar_lea.vmem %s4, %s234
      %p236 = scmp.lt.s32.totalorder %s20, 3
      %s237 = scalar_select %p236, %s20, 3
      %p238 = scmp.lt.s32.totalorder %s19, 1
      %s239 = scalar_select %p238, %s19, 1
      %s240 = smul.addr %s237, 2
      %s241 = sadd.s32 %s239, %s240
      %s242 = smul.addr %s241, 4
      %s243 = scalar_lea.vmem %s0, %s242
      %p244 = scmp.lt.s32.totalorder %s20, 3
      %s245 = scalar_select %p244, %s20, 3
      %p246 = scmp.lt.s32.totalorder %s19, 1
      %s247 = scalar_select %p246, %s19, 1
      %s248 = smul.addr %s245, 2
      %s249 = sadd.s32 %s247, %s248
      %s250 = smul.addr %s249, 4
      %s251 = scalar_lea.vmem %s3, %s250
      %p252 = scmp.lt.s32.totalorder %s20, 3
      %s253 = scalar_select %p252, %s20, 3
      %p254 = scmp.lt.s32.totalorder %s19, 1
      %s255 = scalar_select %p254, %s19, 1
      %s256 = smul.addr %s253, 2
      %s257 = sadd.s32 %s255, %s256
      %s258 = smul.addr %s257, 4
      %s259 = scalar_lea.vmem %s4, %s258
      %p260 = scmp.eq.s32.totalorder %s20, 0
      // Predicated region
      $region37: #{_lambda_.25} parent=35 // pred_check
        %p261 = pneg %p260
      $region38: #{_lambda_.25} parent=35 // pred_check_branch
        %263 = sbr.rel (%p261) target = $region40
      $region39: #{_lambda_.25} parent=35 // pred_region
        %264 = vst [vmem:[#allocation2] sm:$0xff] 0.0
      $region40: #{_lambda_.25} parent=35 // pred_fallthru
        _
      %v265 = vld [vmem:[%s243] sm:$0xf]
      %v266 = vunpack.c.l.bf16 %v265
      %v267 = vld [vmem:[%s1] sm:$0x1]
      %v269 = vlaneseq
      %v270 = vshrl.u32 %v269, 7
      %v271 = vsub.s32 0, %v270
      %v272 = vrot.slane %v267, %v271
      %v274 = vmul.f32 %v266, %v272
      %v275 = vld [vmem:[%s2] sm:$0x1]
      %v277 = vlaneseq
      %v278 = vshrl.u32 %v277, 7
      %v279 = vsub.s32 0, %v278
      %v280 = vrot.slane %v275, %v279
      %v282 = vadd.f32 %v274, %v280
      %v283 = vld [vmem:[%s251] sm:$0xf]
      %v284 = vunpack.c.l.bf16 %v283
      %v285 = vadd.f32 %v282, %v284
      %v286 = vld [vmem:[#allocation2] sm:$0xff]
      %vm287 = vcmp.gt.f32.partialorder %v286, 1.0
      %v288 = vsel %vm287, 1, 0
      %v289 = vcvt.s32.f32 %v288
      %v290 = vmul.f32 %v286, 0.9
      %v291 = vadd.f32 %v290, %v285
      %v292 = vsub.f32 %v291, %v289
      %293 = vst [vmem:[#allocation2] sm:$0xff] %v292
      %vm294 = vcmp.gt.f32.partialorder %v292, 1.0
      %v295 = vsel %vm294, 1, 0
      %v296 = vcvt.s32.f32 %v295
      %v297 = vpack.c.bf16 %v296, %v296
      %298 = vst [vmem:[%s259] sm:$0xf] %v297
      %p299 = scmp.lt.s32.totalorder %s20, 3
      %s300 = scalar_select %p299, %s20, 3
      %p301 = scmp.lt.s32.totalorder %s19, 1
      %s302 = scalar_select %p301, %s19, 1
      %s303 = smul.addr %s300, 2
      %s304 = sadd.s32 %s302, %s303
      %s305 = smul.addr %s304, 4
      %s306 = scalar_lea.vmem %s4, %s305
      // Predicated region
      $region41: #{_lambda_.25} parent=35 // pred_check
        %p307 = pneg %p145
      $region42: #{_lambda_.25} parent=35 // pred_check_branch
        %309 = sbr.rel (%p307) target = $region44
      $region43: #{_lambda_.25} parent=35 // pred_region
        _
      $region44: #{_lambda_.25} parent=35 // pred_fallthru
        _
    $region36: #{_lambda_.25} parent=5 // pred_fallthru
      _
    %p310 = scmp.le.s32.totalorder 2, %s10
    // Predicated region
    $region45: #{_lambda_.25} parent=5 // pred_check
      %p311 = pneg %p310
    $region46: #{_lambda_.25} parent=5 // pred_check_branch
      %313 = sbr.rel (%p311) target = $region48
    $region47: #{_lambda_.25} parent=5 // pred_region
      %s314 = ssub.s32 %s10, 2
      // Predicated region
      $region49: #{_lambda_.25} parent=47 // pred_check
        %p315 = pneg %p151
      $region50: #{_lambda_.25} parent=47 // pred_check_branch
        %317 = sbr.rel (%p315) target = $region52
      $region51: #{_lambda_.25} parent=47 // pred_region
        %p318 = scmp.lt.s32.totalorder %s22, 3
        %s319 = scalar_select %p318, %s22, 3
        %p320 = scmp.lt.s32.totalorder %s21, 1
        %s321 = scalar_select %p320, %s21, 1
        %s322 = smul.addr %s319, 2
        %s323 = sadd.s32 %s321, %s322
        %s324 = smul.addr %s323, 4
        %s325 = scalar_lea.vmem %s4, %s324
      $region52: #{_lambda_.25} parent=47 // pred_fallthru
        _
    $region48: #{_lambda_.25} parent=5 // pred_fallthru
      _
  $region6: #{_lambda_.25} parent=0 // loop_footer
    %s14 = sadd.s32 1, %s10
  $region7: #{_lambda_.25} parent=0 // loop_footer_branch
    %9 = sbr.rel target = $region3
  $region8: #{_lambda_.25} parent=0 // loop_exit
    _

</llo_original>
